<compile_context>
chip_gen: v7x
topology: tpu7x:2x2x1
jax: 0.10.0
libtpu: 0.0.40
codegen_flags: <defaults>
</compile_context>

<pallas_src>
import jax
import jax.numpy as jnp
from jax.experimental import pallas as pl
from jax.experimental.pallas import tpu as pltpu


def _round_up(x, m):
    return (x + m - 1) // m * m


def bahdanau_kernel(q_ref, items_ref, mask_ref, wt_ref, ut_ref, v_ref,
                    blend_ref, attn_ref):
    TB, Npad, Dipad = items_ref.shape
    A = wt_ref.shape[1]

    q = q_ref[...]            # [TB, Dq]
    items = items_ref[...]    # [TB, Npad, Dipad]
    mask = mask_ref[...]      # [TB, Npad]

    # Projected query / items (MXU; M dims are TB and TB*Npad -> near-native tiles).
    proj_q = jnp.dot(q, wt_ref[...], preferred_element_type=jnp.float32)       # [TB, A]
    proj_items = jnp.dot(items.reshape(TB * Npad, Dipad), ut_ref[...],
                         preferred_element_type=jnp.float32)                   # [TB*Npad, A]
    proj_items = proj_items.reshape(TB, Npad, A)

    # Additive combine + tanh (VPU + EUP).
    tanh_items = jnp.tanh(proj_items + proj_q[:, None, :])                     # [TB, Npad, A]

    # reactivity = <tanh, v>: elementwise mul + lane reduce (no matvec, no transposes).
    v = v_ref[...].reshape(1, 1, A)
    react = jnp.sum(tanh_items * v, axis=-1)                                   # [TB, Npad]

    # Mask invalid/padded items with a large finite negative, softmax over N.
    react = jnp.where(mask > 0.5, react, -1e30)
    m = jnp.max(react, axis=-1, keepdims=True)
    e = jnp.exp(react - m)
    s = jnp.sum(e, axis=-1, keepdims=True)
    inv_s = pl.reciprocal(s, approx=True)          # EUP vrcp seed...
    inv_s = inv_s * (2.0 - s * inv_s)              # ...+ one Newton step -> near-exact
    attn = e * inv_s                                                           # [TB, Npad]

    # blended = sum_n attn * items  (padded items have attn == 0, so padding is inert).
    blend = jnp.sum(attn[:, :, None] * items, axis=1)                          # [TB, Dipad]

    blend_ref[...] = blend.astype(blend_ref.dtype)
    attn_ref[...] = attn.astype(attn_ref.dtype)


def _choose_tb(B, Dq, N_pad, Di_pad, A, budget_bytes=20 << 20):
    """Pick the batch tile so double-buffered IO + resident weights fit a VMEM budget."""
    def step_bytes(tb):
        io = tb * (Dq + N_pad * Di_pad + 2 * N_pad + Di_pad)   # inputs + outputs per step
        weights = Dq * A + Di_pad * A + A
        return 4 * (2 * io + weights)

    tb = 128
    while tb > 8 and step_bytes(tb) > budget_bytes:
        tb //= 2
    # Prefer >= 2 grid steps so both TensorCores get work on v7x megacore.
    while tb > 8 and _round_up(B, tb) // tb < 2:
        tb //= 2
    return tb


def bahdanau_attention(query, items, mask, w, u, v):
    """query: [B, Dq], items: [B, N, Di], mask: [B, N] (float 0/1)
    w: [A, Dq] (PyTorch Linear weight), u: [A, Di], v: [1, A]
    Returns (blended [B, Di], attention [B, 1, N])  -- matches the PyTorch forward."""
    B, N, Di = items.shape
    Dq = query.shape[-1]
    A = w.shape[0]

    # Lane-dense padding of the item axis / feature axis (full-width vector stores).
    N_pad = _round_up(N, 128)
    Di_pad = _round_up(Di, 128)

    wt = jnp.transpose(w).astype(jnp.float32)    # [Dq, A]
    ut = jnp.transpose(u).astype(jnp.float32)    # [Di, A]
    v = v.astype(jnp.float32)
    query = query.astype(jnp.float32)
    items = items.astype(jnp.float32)
    mask = mask.astype(jnp.float32)

    if Di_pad != Di:
        ut = jnp.pad(ut, ((0, Di_pad - Di), (0, 0)))
        items = jnp.pad(items, ((0, 0), (0, 0), (0, Di_pad - Di)))
    if N_pad != N:
        items = jnp.pad(items, ((0, 0), (0, N_pad - N), (0, 0)))
        mask = jnp.pad(mask, ((0, 0), (0, N_pad - N)))   # zero mask == invalid/padded

    TB = _choose_tb(B, Dq, N_pad, Di_pad, A)
    B_pad = _round_up(B, TB)
    if B_pad != B:
        query = jnp.pad(query, ((0, B_pad - B), (0, 0)))
        items = jnp.pad(items, ((0, B_pad - B), (0, 0), (0, 0)))
        mask = jnp.pad(mask, ((0, B_pad - B), (0, 0)))

    # Rough per-step VMEM footprint -> explicit scoped-VMEM limit (v7x: 64 MiB physical).
    step_bytes = 4 * (2 * TB * (Dq + N_pad * Di_pad + 2 * N_pad + Di_pad)
                      + Dq * A + Di_pad * A + A)
    vmem_limit = int(min(max(step_bytes * 3 // 2, 8 << 20), 32 << 20))

    grid = (B_pad // TB,)

    blended, attn = pl.pallas_call(
        bahdanau_kernel,
        out_shape=(
            jax.ShapeDtypeStruct((B_pad, Di_pad), jnp.float32),
            jax.ShapeDtypeStruct((B_pad, N_pad), jnp.float32),
        ),
        grid_spec=pltpu.PrefetchScalarGridSpec(
            num_scalar_prefetch=0,
            grid=grid,
            in_specs=[
                pl.BlockSpec((TB, Dq), lambda b: (b, 0)),
                pl.BlockSpec((TB, N_pad, Di_pad), lambda b: (b, 0, 0)),
                pl.BlockSpec((TB, N_pad), lambda b: (b, 0)),
                # Weights: constant block index -> fetched once, stays VMEM-resident.
                pl.BlockSpec((Dq, A), lambda b: (0, 0)),
                pl.BlockSpec((Di_pad, A), lambda b: (0, 0)),
                pl.BlockSpec((1, A), lambda b: (0, 0)),
            ],
            out_specs=[
                pl.BlockSpec((TB, Di_pad), lambda b: (b, 0)),
                pl.BlockSpec((TB, N_pad), lambda b: (b, 0)),
            ],
        ),
        compiler_params=pltpu.CompilerParams(
            dimension_semantics=("parallel",),
            vmem_limit_bytes=vmem_limit),
    )(query, items, mask, wt, ut, v)

    # PyTorch forward returns attention_scores still unsqueezed: [B, 1, N].
    return blended[:B, :Di], attn[:B, :N].reshape(B, 1, N)


def _reference(query, items, mask, w, u, v):
    proj_q = query @ w.T                       # [B, A]
    proj_i = jnp.einsum("bnd,ad->bna", items, u)
    t = jnp.tanh(proj_q[:, None, :] + proj_i)  # [B, N, A]
    react = jnp.einsum("bna,a->bn", t, v[0])
    react = jnp.where(mask == 0, -jnp.inf, react)
    attn = jax.nn.softmax(react, axis=1)
    blended = jnp.einsum("bn,bnd->bd", attn, items)
    return blended, attn[:, None, :]


if __name__ == "__main__":
    # small shapes: batch=2, num_items=8, item_dim=query_dim=attention_dim=32
    B, N, Di, Dq, A = 2, 8, 32, 32, 32

    key = jax.random.PRNGKey(0)
    k_q, k_i, k_w, k_u, k_v = jax.random.split(key, 5)

    query = jax.random.normal(k_q, (B, Dq), dtype=jnp.float32)
    items = jax.random.normal(k_i, (B, N, Di), dtype=jnp.float32)
    # mask: 1 for valid, 0 for invalid (last two items of batch 1 invalid)
    mask = jnp.ones((B, N), dtype=jnp.float32).at[1, -2:].set(0.0)

    # deterministic parameter init (mirrors nn.Linear / nn.Parameter shapes)
    w = jax.random.normal(k_w, (A, Dq), dtype=jnp.float32) * 0.1   # W.weight
    u = jax.random.normal(k_u, (A, Di), dtype=jnp.float32) * 0.1   # U.weight
    v = jax.random.normal(k_v, (1, A), dtype=jnp.float32)          # v

    fn = jax.jit(bahdanau_attention)
    blended, attn = fn(query, items, mask, w, u, v)
    jax.block_until_ready((blended, attn))

    ref_b, ref_a = _reference(query, items, mask, w, u, v)
    assert blended.shape == (B, Di) and attn.shape == (B, 1, N)
    assert jnp.allclose(blended, ref_b, atol=1e-4, rtol=1e-4), \
        float(jnp.max(jnp.abs(blended - ref_b)))
    assert jnp.allclose(attn, ref_a, atol=1e-5, rtol=1e-4), \
        float(jnp.max(jnp.abs(attn - ref_a)))

    print("KERNEL_OK")
</pallas_src>

<mosaic_0001>
module attributes {stable_mosaic.version = 11 : i64} {
  func.func @bahdanau_kernel(%arg0: i32, %arg1: memref<8x32xf32, #tpu.memory_space<vmem>>, %arg2: memref<8x128x128xf32, #tpu.memory_space<vmem>>, %arg3: memref<8x128xf32, #tpu.memory_space<vmem>>, %arg4: memref<32x32xf32, #tpu.memory_space<vmem>>, %arg5: memref<128x32xf32, #tpu.memory_space<vmem>>, %arg6: memref<1x32xf32, #tpu.memory_space<vmem>>, %arg7: memref<8x128xf32, #tpu.memory_space<vmem>>, %arg8: memref<8x128xf32, #tpu.memory_space<vmem>>) attributes {dimension_semantics = [#tpu.dimension_semantics<parallel>], iteration_bounds = array<i64: 1>, scalar_prefetch = 0 : i64, scratch_operands = 0 : i64, tpu.core_type = #tpu.core_type<tc>, window_params = [{transform_indices = @transform_0, window_bounds = array<i64: 8, 32>}, {transform_indices = @transform_1, window_bounds = array<i64: 8, 128, 128>}, {transform_indices = @transform_2, window_bounds = array<i64: 8, 128>}, {pipeline_mode = #tpu.pipeline_mode<synchronous>, transform_indices = @transform_3, window_bounds = array<i64: 32, 32>}, {pipeline_mode = #tpu.pipeline_mode<synchronous>, transform_indices = @transform_4, window_bounds = array<i64: 128, 32>}, {pipeline_mode = #tpu.pipeline_mode<synchronous>, transform_indices = @transform_5, window_bounds = array<i64: 1, 32>}, {transform_indices = @transform_6, window_bounds = array<i64: 8, 128>}, {transform_indices = @transform_7, window_bounds = array<i64: 8, 128>}]} {
    %c0 = arith.constant 0 : index
    %c0_0 = arith.constant 0 : index
    %0 = vector.load %arg1[%c0, %c0_0] : memref<8x32xf32, #tpu.memory_space<vmem>>, vector<8x32xf32>
    %c0_1 = arith.constant 0 : index
    %c0_2 = arith.constant 0 : index
    %c0_3 = arith.constant 0 : index
    %1 = vector.load %arg2[%c0_1, %c0_2, %c0_3] : memref<8x128x128xf32, #tpu.memory_space<vmem>>, vector<8x128x128xf32>
    %c0_4 = arith.constant 0 : index
    %c0_5 = arith.constant 0 : index
    %2 = vector.load %arg3[%c0_4, %c0_5] : memref<8x128xf32, #tpu.memory_space<vmem>>, vector<8x128xf32>
    %c0_6 = arith.constant 0 : index
    %c0_7 = arith.constant 0 : index
    %3 = vector.load %arg4[%c0_6, %c0_7] : memref<32x32xf32, #tpu.memory_space<vmem>>, vector<32x32xf32>
    %cst = arith.constant dense<0.000000e+00> : vector<8x32xf32>
    %4 = tpu.matmul %0, %3, %cst {dimension_numbers = #tpu.dot_dimension_numbers<[1], [0], [0], [1], [0, 0, 1, 1], [], []>} : vector<8x32xf32>, vector<32x32xf32>, vector<8x32xf32> -> vector<8x32xf32>
    %5 = vector.shape_cast %1 : vector<8x128x128xf32> to vector<1024x128xf32>
    %c0_8 = arith.constant 0 : index
    %c0_9 = arith.constant 0 : index
    %6 = vector.load %arg5[%c0_8, %c0_9] : memref<128x32xf32, #tpu.memory_space<vmem>>, vector<128x32xf32>
    %cst_10 = arith.constant dense<0.000000e+00> : vector<1024x32xf32>
    %7 = tpu.matmul %5, %6, %cst_10 {dimension_numbers = #tpu.dot_dimension_numbers<[1], [0], [0], [1], [0, 0, 1, 1], [], []>} : vector<1024x128xf32>, vector<128x32xf32>, vector<1024x32xf32> -> vector<1024x32xf32>
    %8 = vector.shape_cast %7 : vector<1024x32xf32> to vector<8x128x32xf32>
    %9 = vector.shape_cast %4 : vector<8x32xf32> to vector<8x1x32xf32>
    %10 = vector.broadcast %9 : vector<8x1x32xf32> to vector<8x128x32xf32>
    %11 = arith.addf %8, %10 : vector<8x128x32xf32>
    %12 = math.tanh %11 : vector<8x128x32xf32>
    %c0_11 = arith.constant 0 : index
    %c0_12 = arith.constant 0 : index
    %13 = vector.load %arg6[%c0_11, %c0_12] : memref<1x32xf32, #tpu.memory_space<vmem>>, vector<1x32xf32>
    %14 = vector.shape_cast %13 : vector<1x32xf32> to vector<1x1x32xf32>
    %15 = vector.broadcast %14 : vector<1x1x32xf32> to vector<8x128x32xf32>
    %16 = arith.mulf %12, %15 : vector<8x128x32xf32>
    %cst_13 = arith.constant dense<0.000000e+00> : vector<8x128xf32>
    %17 = vector.multi_reduction <add>, %16, %cst_13 [2] : vector<8x128x32xf32> to vector<8x128xf32>
    %cst_14 = arith.constant 5.000000e-01 : f32
    %18 = vector.broadcast %cst_14 : f32 to vector<8x128xf32>
    %19 = arith.cmpf ogt, %2, %18 : vector<8x128xf32>
    %cst_15 = arith.constant -1.000000e+30 : f32
    %20 = vector.broadcast %cst_15 : f32 to vector<8x128xf32>
    %21 = arith.select %19, %17, %20 : vector<8x128xi1>, vector<8x128xf32>
    %cst_16 = arith.constant dense<0xFF800000> : vector<8xf32>
    %22 = vector.multi_reduction <maximumf>, %21, %cst_16 [1] : vector<8x128xf32> to vector<8xf32>
    %23 = vector.shape_cast %22 : vector<8xf32> to vector<8x1xf32>
    %24 = vector.broadcast %23 : vector<8x1xf32> to vector<8x128xf32>
    %25 = arith.subf %21, %24 : vector<8x128xf32>
    %26 = math.exp %25 : vector<8x128xf32>
    %cst_17 = arith.constant dense<0.000000e+00> : vector<8xf32>
    %27 = vector.multi_reduction <add>, %26, %cst_17 [1] : vector<8x128xf32> to vector<8xf32>
    %28 = vector.shape_cast %27 : vector<8xf32> to vector<8x1xf32>
    %29 = tpu.reciprocal %28 {approx = true} : vector<8x1xf32> -> vector<8x1xf32>
    %30 = arith.mulf %28, %29 : vector<8x1xf32>
    %cst_18 = arith.constant 2.000000e+00 : f32
    %31 = vector.broadcast %cst_18 : f32 to vector<8x1xf32>
    %32 = arith.subf %31, %30 : vector<8x1xf32>
    %33 = arith.mulf %29, %32 : vector<8x1xf32>
    %34 = vector.broadcast %33 : vector<8x1xf32> to vector<8x128xf32>
    %35 = arith.mulf %26, %34 : vector<8x128xf32>
    %36 = vector.shape_cast %35 : vector<8x128xf32> to vector<8x128x1xf32>
    %37 = vector.broadcast %36 : vector<8x128x1xf32> to vector<8x128x128xf32>
    %38 = arith.mulf %37, %1 : vector<8x128x128xf32>
    %cst_19 = arith.constant dense<0.000000e+00> : vector<8x128xf32>
    %39 = vector.multi_reduction <add>, %38, %cst_19 [1] : vector<8x128x128xf32> to vector<8x128xf32>
    %c0_20 = arith.constant 0 : index
    %c0_21 = arith.constant 0 : index
    %40 = vector.load %arg7[%c0_20, %c0_21] : memref<8x128xf32, #tpu.memory_space<vmem>>, vector<8x128xf32>
    tpu.vector_store %arg7[%c0_20, %c0_21], %39 {strides = array<i32>} : memref<8x128xf32, #tpu.memory_space<vmem>>, vector<8x128xf32>,
    %c0_22 = arith.constant 0 : index
    %c0_23 = arith.constant 0 : index
    %41 = vector.load %arg8[%c0_22, %c0_23] : memref<8x128xf32, #tpu.memory_space<vmem>>, vector<8x128xf32>
    tpu.vector_store %arg8[%c0_22, %c0_23], %35 {strides = array<i32>} : memref<8x128xf32, #tpu.memory_space<vmem>>, vector<8x128xf32>,
    return
  }
  func.func @transform_0(%arg0: i32) -> (i32, i32) {
    %c0_i32 = arith.constant 0 : i32
    %c0_i32_0 = arith.constant 0 : i32
    return %arg0, %c0_i32 : i32, i32
  }
  func.func @transform_1(%arg0: i32) -> (i32, i32, i32) {
    %c0_i32 = arith.constant 0 : i32
    %c0_i32_0 = arith.constant 0 : i32
    %c0_i32_1 = arith.constant 0 : i32
    return %arg0, %c0_i32, %c0_i32_0 : i32, i32, i32
  }
  func.func @transform_2(%arg0: i32) -> (i32, i32) {
    %c0_i32 = arith.constant 0 : i32
    %c0_i32_0 = arith.constant 0 : i32
    return %arg0, %c0_i32 : i32, i32
  }
  func.func @transform_3(%arg0: i32) -> (i32, i32) {
    %c0_i32 = arith.constant 0 : i32
    %c0_i32_0 = arith.constant 0 : i32
    %c0_i32_1 = arith.constant 0 : i32
    return %c0_i32, %c0_i32_0 : i32, i32
  }
  func.func @transform_4(%arg0: i32) -> (i32, i32) {
    %c0_i32 = arith.constant 0 : i32
    %c0_i32_0 = arith.constant 0 : i32
    %c0_i32_1 = arith.constant 0 : i32
    return %c0_i32, %c0_i32_0 : i32, i32
  }
  func.func @transform_5(%arg0: i32) -> (i32, i32) {
    %c0_i32 = arith.constant 0 : i32
    %c0_i32_0 = arith.constant 0 : i32
    %c0_i32_1 = arith.constant 0 : i32
    return %c0_i32, %c0_i32_0 : i32, i32
  }
  func.func @transform_6(%arg0: i32) -> (i32, i32) {
    %c0_i32 = arith.constant 0 : i32
    %c0_i32_0 = arith.constant 0 : i32
    return %arg0, %c0_i32 : i32, i32
  }
  func.func @transform_7(%arg0: i32) -> (i32, i32) {
    %c0_i32 = arith.constant 0 : i32
    %c0_i32_0 = arith.constant 0 : i32
    return %arg0, %c0_i32 : i32, i32
  }
}

</mosaic_0001>

<llo_original>
// kernel: bahdanau_attention.1
$region0: #{bahdanau_attention.1}
  #allocation0 [shape = 'u32[]', space=smem, size = 0x4, offset = 0x4, fixed_abs, tag = 'smem constant byte address 0x4 - core index']
  #allocation1 [shape = 'u32[144,128]{1,0:T(1,128)}', space=vmem, size = 0x12000, scoped, tag = 'internal scratch']
  %s0 = inlined_call_operand.vmem [shape: f32[8,32], index: 0, kind: input, shape index: {}]
  %s1 = inlined_call_operand.vmem [shape: f32[8,128,128], index: 1, kind: input, shape index: {}]
  %s2 = inlined_call_operand.vmem [shape: f32[8,128], index: 2, kind: input, shape index: {}]
  %s3 = inlined_call_operand.vmem [shape: f32[32,32], index: 3, kind: input, shape index: {}]
  %s4 = inlined_call_operand.vmem [shape: f32[128,32], index: 4, kind: input, shape index: {}]
  %s5 = inlined_call_operand.vmem [shape: f32[1,32], index: 5, kind: input, shape index: {}]
  %s6 = inlined_call_operand.vmem [shape: f32[8,128], index: 6, kind: output, shape index: {0}]
  %s7 = inlined_call_operand.vmem [shape: f32[8,128], index: 7, kind: output, shape index: {1}]
  %8 = xla_tuple %s6, %s7
  %s9 = sld [smem:[#allocation0]]
  $region42: #{bahdanau_attention.1} parent=0
    _
  %s11 = ssub.s32 1, %s9
  %s12 = scalar_select 0, %s11, %s9
  // Predicated region
  $region2: #{bahdanau_attention.1} parent=0 // pred_check
    _
  $region3: #{bahdanau_attention.1} parent=0 // pred_check_branch
    %14 = sbr.rel (0) target = $region5
  $region4: #{bahdanau_attention.1} parent=0 // pred_region
    _
  $region5: #{bahdanau_attention.1} parent=0 // pred_fallthru
    _
  // Predicated region
  $region6: #{bahdanau_attention.1} parent=0 // pred_check
    _
  $region7: #{bahdanau_attention.1} parent=0 // pred_check_branch
    %16 = sbr.rel (0) target = $region9
  $region8: #{bahdanau_attention.1} parent=0 // pred_region
    _
  $region9: #{bahdanau_attention.1} parent=0 // pred_fallthru
    _
  // Predicated region
  $region10: #{bahdanau_attention.1} parent=0 // pred_check
    _
  $region11: #{bahdanau_attention.1} parent=0 // pred_check_branch
    %18 = sbr.rel (0) target = $region13
  $region12: #{bahdanau_attention.1} parent=0 // pred_region
    _
  $region13: #{bahdanau_attention.1} parent=0 // pred_fallthru
    _
  // Predicated region
  $region14: #{bahdanau_attention.1} parent=0 // pred_check
    _
  $region15: #{bahdanau_attention.1} parent=0 // pred_check_branch
    %20 = sbr.rel (0) target = $region17
  $region16: #{bahdanau_attention.1} parent=0 // pred_region
    _
  $region17: #{bahdanau_attention.1} parent=0 // pred_fallthru
    _
  // Predicated region
  $region18: #{bahdanau_attention.1} parent=0 // pred_check
    _
  $region19: #{bahdanau_attention.1} parent=0 // pred_check_branch
    %22 = sbr.rel (0) target = $region21
  $region20: #{bahdanau_attention.1} parent=0 // pred_region
    _
  $region21: #{bahdanau_attention.1} parent=0 // pred_fallthru
    _
  // Predicated region
  $region22: #{bahdanau_attention.1} parent=0 // pred_check
    _
  $region23: #{bahdanau_attention.1} parent=0 // pred_check_branch
    %24 = sbr.rel (0) target = $region25
  $region24: #{bahdanau_attention.1} parent=0 // pred_region
    _
  $region25: #{bahdanau_attention.1} parent=0 // pred_fallthru
    _
  %v25 = vld [vmem:[%s0] sm:$0xff]
  %v26 = vld [vmem:[%s1] sm:$0xff]
  %v27 = vld [vmem:[%s1 + $0x8] sm:$0xff]
  %v28 = vld [vmem:[%s1 + $0x10] sm:$0xff]
  %v29 = vld [vmem:[%s1 + $0x18] sm:$0xff]
  %v30 = vld [vmem:[%s1 + $0x20] sm:$0xff]
  %v31 = vld [vmem:[%s1 + $0x28] sm:$0xff]
  %v32 = vld [vmem:[%s1 + $0x30] sm:$0xff]
  %v33 = vld [vmem:[%s1 + $0x38] sm:$0xff]
  %v34 = vld [vmem:[%s1 + $0x40] sm:$0xff]
  %v35 = vld [vmem:[%s1 + $0x48] sm:$0xff]
  %v36 = vld [vmem:[%s1 + $0x50] sm:$0xff]
  %v37 = vld [vmem:[%s1 + $0x58] sm:$0xff]
  %v38 = vld [vmem:[%s1 + $0x60] sm:$0xff]
  %v39 = vld [vmem:[%s1 + $0x68] sm:$0xff]
  %v40 = vld [vmem:[%s1 + $0x70] sm:$0xff]
  %v41 = vld [vmem:[%s1 + $0x78] sm:$0xff]
  %v42 = vld [vmem:[%s1 + $0x80] sm:$0xff]
  %v43 = vld [vmem:[%s1 + $0x88] sm:$0xff]
  %v44 = vld [vmem:[%s1 + $0x90] sm:$0xff]
  %v45 = vld [vmem:[%s1 + $0x98] sm:$0xff]
  %v46 = vld [vmem:[%s1 + $0xa0] sm:$0xff]
  %v47 = vld [vmem:[%s1 + $0xa8] sm:$0xff]
  %v48 = vld [vmem:[%s1 + $0xb0] sm:$0xff]
  %v49 = vld [vmem:[%s1 + $0xb8] sm:$0xff]
  %v50 = vld [vmem:[%s1 + $0xc0] sm:$0xff]
  %v51 = vld [vmem:[%s1 + $0xc8] sm:$0xff]
  %v52 = vld [vmem:[%s1 + $0xd0] sm:$0xff]
  %v53 = vld [vmem:[%s1 + $0xd8] sm:$0xff]
  %v54 = vld [vmem:[%s1 + $0xe0] sm:$0xff]
  %v55 = vld [vmem:[%s1 + $0xe8] sm:$0xff]
  %v56 = vld [vmem:[%s1 + $0xf0] sm:$0xff]
  %v57 = vld [vmem:[%s1 + $0xf8] sm:$0xff]
  %v58 = vld [vmem:[%s1 + $0x100] sm:$0xff]
  %v59 = vld [vmem:[%s1 + $0x108] sm:$0xff]
  %v60 = vld [vmem:[%s1 + $0x110] sm:$0xff]
  %v61 = vld [vmem:[%s1 + $0x118] sm:$0xff]
  %v62 = vld [vmem:[%s1 + $0x120] sm:$0xff]
  %v63 = vld [vmem:[%s1 + $0x128] sm:$0xff]
  %v64 = vld [vmem:[%s1 + $0x130] sm:$0xff]
  %v65 = vld [vmem:[%s1 + $0x138] sm:$0xff]
  %v66 = vld [vmem:[%s1 + $0x140] sm:$0xff]
  %v67 = vld [vmem:[%s1 + $0x148] sm:$0xff]
  %v68 = vld [vmem:[%s1 + $0x150] sm:$0xff]
  %v69 = vld [vmem:[%s1 + $0x158] sm:$0xff]
  %v70 = vld [vmem:[%s1 + $0x160] sm:$0xff]
  %v71 = vld [vmem:[%s1 + $0x168] sm:$0xff]
  %v72 = vld [vmem:[%s1 + $0x170] sm:$0xff]
  %v73 = vld [vmem:[%s1 + $0x178] sm:$0xff]
  %v74 = vld [vmem:[%s1 + $0x180] sm:$0xff]
  %v75 = vld [vmem:[%s1 + $0x188] sm:$0xff]
  %v76 = vld [vmem:[%s1 + $0x190] sm:$0xff]
  %v77 = vld [vmem:[%s1 + $0x198] sm:$0xff]
  %v78 = vld [vmem:[%s1 + $0x1a0] sm:$0xff]
  %v79 = vld [vmem:[%s1 + $0x1a8] sm:$0xff]
  %v80 = vld [vmem:[%s1 + $0x1b0] sm:$0xff]
  %v81 = vld [vmem:[%s1 + $0x1b8] sm:$0xff]
  %v82 = vld [vmem:[%s1 + $0x1c0] sm:$0xff]
  %v83 = vld [vmem:[%s1 + $0x1c8] sm:$0xff]
  %v84 = vld [vmem:[%s1 + $0x1d0] sm:$0xff]
  %v85 = vld [vmem:[%s1 + $0x1d8] sm:$0xff]
  %v86 = vld [vmem:[%s1 + $0x1e0] sm:$0xff]
  %v87 = vld [vmem:[%s1 + $0x1e8] sm:$0xff]
  %v88 = vld [vmem:[%s1 + $0x1f0] sm:$0xff]
  %v89 = vld [vmem:[%s1 + $0x1f8] sm:$0xff]
  %v90 = vld [vmem:[%s1 + $0x200] sm:$0xff]
  %v91 = vld [vmem:[%s1 + $0x208] sm:$0xff]
  %v92 = vld [vmem:[%s1 + $0x210] sm:$0xff]
  %v93 = vld [vmem:[%s1 + $0x218] sm:$0xff]
  %v94 = vld [vmem:[%s1 + $0x220] sm:$0xff]
  %v95 = vld [vmem:[%s1 + $0x228] sm:$0xff]
  %v96 = vld [vmem:[%s1 + $0x230] sm:$0xff]
  %v97 = vld [vmem:[%s1 + $0x238] sm:$0xff]
  %v98 = vld [vmem:[%s1 + $0x240] sm:$0xff]
  %v99 = vld [vmem:[%s1 + $0x248] sm:$0xff]
  %v100 = vld [vmem:[%s1 + $0x250] sm:$0xff]
  %v101 = vld [vmem:[%s1 + $0x258] sm:$0xff]
  %v102 = vld [vmem:[%s1 + $0x260] sm:$0xff]
  %v103 = vld [vmem:[%s1 + $0x268] sm:$0xff]
  %v104 = vld [vmem:[%s1 + $0x270] sm:$0xff]
  %v105 = vld [vmem:[%s1 + $0x278] sm:$0xff]
  %v106 = vld [vmem:[%s1 + $0x280] sm:$0xff]
  %v107 = vld [vmem:[%s1 + $0x288] sm:$0xff]
  %v108 = vld [vmem:[%s1 + $0x290] sm:$0xff]
  %v109 = vld [vmem:[%s1 + $0x298] sm:$0xff]
  %v110 = vld [vmem:[%s1 + $0x2a0] sm:$0xff]
  %v111 = vld [vmem:[%s1 + $0x2a8] sm:$0xff]
  %v112 = vld [vmem:[%s1 + $0x2b0] sm:$0xff]
  %v113 = vld [vmem:[%s1 + $0x2b8] sm:$0xff]
  %v114 = vld [vmem:[%s1 + $0x2c0] sm:$0xff]
  %v115 = vld [vmem:[%s1 + $0x2c8] sm:$0xff]
  %v116 = vld [vmem:[%s1 + $0x2d0] sm:$0xff]
  %v117 = vld [vmem:[%s1 + $0x2d8] sm:$0xff]
  %v118 = vld [vmem:[%s1 + $0x2e0] sm:$0xff]
  %v119 = vld [vmem:[%s1 + $0x2e8] sm:$0xff]
  %v120 = vld [vmem:[%s1 + $0x2f0] sm:$0xff]
  %v121 = vld [vmem:[%s1 + $0x2f8] sm:$0xff]
  %v122 = vld [vmem:[%s1 + $0x300] sm:$0xff]
  %v123 = vld [vmem:[%s1 + $0x308] sm:$0xff]
  %v124 = vld [vmem:[%s1 + $0x310] sm:$0xff]
  %v125 = vld [vmem:[%s1 + $0x318] sm:$0xff]
  %v126 = vld [vmem:[%s1 + $0x320] sm:$0xff]
  %v127 = vld [vmem:[%s1 + $0x328] sm:$0xff]
  %v128 = vld [vmem:[%s1 + $0x330] sm:$0xff]
  %v129 = vld [vmem:[%s1 + $0x338] sm:$0xff]
  %v130 = vld [vmem:[%s1 + $0x340] sm:$0xff]
  %v131 = vld [vmem:[%s1 + $0x348] sm:$0xff]
  %v132 = vld [vmem:[%s1 + $0x350] sm:$0xff]
  %v133 = vld [vmem:[%s1 + $0x358] sm:$0xff]
  %v134 = vld [vmem:[%s1 + $0x360] sm:$0xff]
  %v135 = vld [vmem:[%s1 + $0x368] sm:$0xff]
  %v136 = vld [vmem:[%s1 + $0x370] sm:$0xff]
  %v137 = vld [vmem:[%s1 + $0x378] sm:$0xff]
  %v138 = vld [vmem:[%s1 + $0x380] sm:$0xff]
  %v139 = vld [vmem:[%s1 + $0x388] sm:$0xff]
  %v140 = vld [vmem:[%s1 + $0x390] sm:$0xff]
  %v141 = vld [vmem:[%s1 + $0x398] sm:$0xff]
  %v142 = vld [vmem:[%s1 + $0x3a0] sm:$0xff]
  %v143 = vld [vmem:[%s1 + $0x3a8] sm:$0xff]
  %v144 = vld [vmem:[%s1 + $0x3b0] sm:$0xff]
  %v145 = vld [vmem:[%s1 + $0x3b8] sm:$0xff]
  %v146 = vld [vmem:[%s1 + $0x3c0] sm:$0xff]
  %v147 = vld [vmem:[%s1 + $0x3c8] sm:$0xff]
  %v148 = vld [vmem:[%s1 + $0x3d0] sm:$0xff]
  %v149 = vld [vmem:[%s1 + $0x3d8] sm:$0xff]
  %v150 = vld [vmem:[%s1 + $0x3e0] sm:$0xff]
  %v151 = vld [vmem:[%s1 + $0x3e8] sm:$0xff]
  %v152 = vld [vmem:[%s1 + $0x3f0] sm:$0xff]
  %v153 = vld [vmem:[%s1 + $0x3f8] sm:$0xff]
  %v154 = vld [vmem:[%s2] sm:$0xff]
  %v155 = vld [vmem:[%s3] sm:$0xff]
  %v156 = vld [vmem:[%s3 + $0x8] sm:$0xff]
  %v157 = vld [vmem:[%s3 + $0x10] sm:$0xff]
  %v158 = vld [vmem:[%s3 + $0x18] sm:$0xff]
  %vm159 = vcmask 261120
  %v161 = vsel %vm159, %v25, 0
  %163 = vmatprep.subr.mxu0 0.0
  %164 = vmatpush1.msra.mxu0 %v155
  %165 = vmatprep.subr.mxu0 0.0
  %166 = vmatpush1.msra.mxu0 %v156
  %167 = vmatprep.subr.mxu0 0.0
  %168 = vmatpush1.msra.mxu0 %v157
  %169 = vmatprep.subr.mxu0 0.0
  %170 = vmatpush1.msra.mxu0 %v158
  %171 = vmatprep.subr.mxu0 0.0
  %172 = vmatpush1.msra.mxu0 0.0
  %173 = vmatprep.subr.mxu0 0.0
  %174 = vmatpush1.msra.mxu0 0.0
  %175 = vmatprep.subr.mxu0 0.0
  %176 = vmatpush1.msra.mxu0 0.0
  %177 = vmatprep.subr.mxu0 0.0
  %178 = vmatpush1.msra.mxu0 0.0
  %179 = vmatprep.subr.mxu0 0.0
  %180 = vmatpush1.msra.mxu0 0.0
  %181 = vmatprep.subr.mxu0 0.0
  %182 = vmatpush1.msra.mxu0 0.0
  %183 = vmatprep.subr.mxu0 0.0
  %184 = vmatpush1.msra.mxu0 0.0
  %185 = vmatprep.subr.mxu0 0.0
  %186 = vmatpush1.msra.mxu0 0.0
  %187 = vmatprep.subr.mxu0 0.0
  %188 = vmatpush1.msra.mxu0 0.0
  %189 = vmatprep.subr.mxu0 0.0
  %190 = vmatpush1.msra.mxu0 0.0
  %191 = vmatprep.subr.mxu0 0.0
  %192 = vmatpush1.msra.mxu0 0.0
  %193 = vmatprep.subr.mxu0 0.0
  %194 = vmatpush1.msra.mxu0 0.0
  %195 = vmatprep.subr.mxu0 0.0
  %196 = vmatpush1.msra.mxu0 0.0
  %197 = vmatprep.subr.mxu0 0.0
  %198 = vmatpush1.msra.mxu0 0.0
  %199 = vmatprep.subr.mxu0 0.0
  %200 = vmatpush1.msra.mxu0 0.0
  %201 = vmatprep.subr.mxu0 0.0
  %202 = vmatpush1.msra.mxu0 0.0
  %203 = vmatprep.subr.mxu0 0.0
  %204 = vmatpush1.msra.mxu0 0.0
  %205 = vmatprep.subr.mxu0 0.0
  %206 = vmatpush1.msra.mxu0 0.0
  %207 = vmatprep.subr.mxu0 0.0
  %208 = vmatpush1.msra.mxu0 0.0
  %209 = vmatprep.subr.mxu0 0.0
  %210 = vmatpush1.msra.mxu0 0.0
  %211 = vmatprep.subr.mxu0 0.0
  %212 = vmatpush1.msra.mxu0 0.0
  %213 = vmatprep.subr.mxu0 0.0
  %214 = vmatpush1.msra.mxu0 0.0
  %215 = vmatprep.subr.mxu0 0.0
  %216 = vmatpush1.msra.mxu0 0.0
  %217 = vmatprep.subr.mxu0 0.0
  %218 = vmatpush1.msra.mxu0 0.0
  %219 = vmatprep.subr.mxu0 0.0
  %220 = vmatpush1.msra.mxu0 0.0
  %221 = vmatprep.subr.mxu0 0.0
  %222 = vmatpush1.msra.mxu0 0.0
  %223 = vmatprep.subr.mxu0 0.0
  %224 = vmatpush1.msra.mxu0 0.0
  %225 = vmatprep.subr.mxu0 0.0
  %226 = vmatpush1.msra.mxu0 0.0
  %227 = vmatprep.mubr.f32.mxu0 0.0
  %228 = vmatmul.mubr.f32.gmra.mrb[0].mxu0 %v161
  %v229 = vpop.f32.mrb[0].mxu0
  %v230 = vadd.f32 0.0, %v229
  %v231 = vpop.f32.mrb[0].mxu0
  %232 = vdwg.mxu0
  %v233 = vld [vmem:[%s4] sm:$0xff]
  %v234 = vld [vmem:[%s4 + $0x8] sm:$0xff]
  %v235 = vld [vmem:[%s4 + $0x10] sm:$0xff]
  %v236 = vld [vmem:[%s4 + $0x18] sm:$0xff]
  %v237 = vld [vmem:[%s4 + $0x20] sm:$0xff]
  %v238 = vld [vmem:[%s4 + $0x28] sm:$0xff]
  %v239 = vld [vmem:[%s4 + $0x30] sm:$0xff]
  %v240 = vld [vmem:[%s4 + $0x38] sm:$0xff]
  %v241 = vld [vmem:[%s4 + $0x40] sm:$0xff]
  %v242 = vld [vmem:[%s4 + $0x48] sm:$0xff]
  %v243 = vld [vmem:[%s4 + $0x50] sm:$0xff]
  %v244 = vld [vmem:[%s4 + $0x58] sm:$0xff]
  %v245 = vld [vmem:[%s4 + $0x60] sm:$0xff]
  %v246 = vld [vmem:[%s4 + $0x68] sm:$0xff]
  %v247 = vld [vmem:[%s4 + $0x70] sm:$0xff]
  %v248 = vld [vmem:[%s4 + $0x78] sm:$0xff]
  %249 = vmatprep.subr.mxu0 0.0
  %250 = vmatpush1.msra.mxu0 %v233
  %251 = vmatprep.subr.mxu0 0.0
  %252 = vmatpush1.msra.mxu0 %v234
  %253 = vmatprep.subr.mxu0 0.0
  %254 = vmatpush1.msra.mxu0 %v235
  %255 = vmatprep.subr.mxu0 0.0
  %256 = vmatpush1.msra.mxu0 %v236
  %257 = vmatprep.subr.mxu0 0.0
  %258 = vmatpush1.msra.mxu0 %v237
  %259 = vmatprep.subr.mxu0 0.0
  %260 = vmatpush1.msra.mxu0 %v238
  %261 = vmatprep.subr.mxu0 0.0
  %262 = vmatpush1.msra.mxu0 %v239
  %263 = vmatprep.subr.mxu0 0.0
  %264 = vmatpush1.msra.mxu0 %v240
  %265 = vmatprep.subr.mxu0 0.0
  %266 = vmatpush1.msra.mxu0 %v241
  %267 = vmatprep.subr.mxu0 0.0
  %268 = vmatpush1.msra.mxu0 %v242
  %269 = vmatprep.subr.mxu0 0.0
  %270 = vmatpush1.msra.mxu0 %v243
  %271 = vmatprep.subr.mxu0 0.0
  %272 = vmatpush1.msra.mxu0 %v244
  %273 = vmatprep.subr.mxu0 0.0
  %274 = vmatpush1.msra.mxu0 %v245
  %275 = vmatprep.subr.mxu0 0.0
  %276 = vmatpush1.msra.mxu0 %v246
  %277 = vmatprep.subr.mxu0 0.0
  %278 = vmatpush1.msra.mxu0 %v247
  %279 = vmatprep.subr.mxu0 0.0
  %280 = vmatpush1.msra.mxu0 %v248
  %281 = vmatprep.subr.mxu0 0.0
  %282 = vmatpush1.msra.mxu0 0.0
  %283 = vmatprep.subr.mxu0 0.0
  %284 = vmatpush1.msra.mxu0 0.0
  %285 = vmatprep.subr.mxu0 0.0
  %286 = vmatpush1.msra.mxu0 0.0
  %287 = vmatprep.subr.mxu0 0.0
  %288 = vmatpush1.msra.mxu0 0.0
  %289 = vmatprep.subr.mxu0 0.0
  %290 = vmatpush1.msra.mxu0 0.0
  %291 = vmatprep.subr.mxu0 0.0
  %292 = vmatpush1.msra.mxu0 0.0
  %293 = vmatprep.subr.mxu0 0.0
  %294 = vmatpush1.msra.mxu0 0.0
  %295 = vmatprep.subr.mxu0 0.0
  %296 = vmatpush1.msra.mxu0 0.0
  %297 = vmatprep.subr.mxu0 0.0
  %298 = vmatpush1.msra.mxu0 0.0
  %299 = vmatprep.subr.mxu0 0.0
  %300 = vmatpush1.msra.mxu0 0.0
  %301 = vmatprep.subr.mxu0 0.0
  %302 = vmatpush1.msra.mxu0 0.0
  %303 = vmatprep.subr.mxu0 0.0
  %304 = vmatpush1.msra.mxu0 0.0
  %305 = vmatprep.subr.mxu0 0.0
  %306 = vmatpush1.msra.mxu0 0.0
  %307 = vmatprep.subr.mxu0 0.0
  %308 = vmatpush1.msra.mxu0 0.0
  %309 = vmatprep.subr.mxu0 0.0
  %310 = vmatpush1.msra.mxu0 0.0
  %311 = vmatprep.subr.mxu0 0.0
  %312 = vmatpush1.msra.mxu0 0.0
  %313 = vmatprep.mubr.f32.mxu0 0.0
  %314 = vmatmul.mubr.f32.gmra.mrb[0].mxu0 %v26
  %v315 = vpop.f32.mrb[0].mxu0
  %v316 = vadd.f32 0.0, %v315
  %v317 = vpop.f32.mrb[0].mxu0
  %318 = vmatprep.mubr.f32.mxu0 0.0
  %319 = vmatmul.mubr.f32.gmra.mrb[0].mxu0 %v27
  %v320 = vpop.f32.mrb[0].mxu0
  %v321 = vadd.f32 0.0, %v320
  %v322 = vpop.f32.mrb[0].mxu0
  %323 = vmatprep.mubr.f32.mxu0 0.0
  %324 = vmatmul.mubr.f32.gmra.mrb[0].mxu0 %v28
  %v325 = vpop.f32.mrb[0].mxu0
  %v326 = vadd.f32 0.0, %v325
  %v327 = vpop.f32.mrb[0].mxu0
  %328 = vmatprep.mubr.f32.mxu0 0.0
  %329 = vmatmul.mubr.f32.gmra.mrb[0].mxu0 %v29
  %v330 = vpop.f32.mrb[0].mxu0
  %v331 = vadd.f32 0.0, %v330
  %v332 = vpop.f32.mrb[0].mxu0
  %333 = vmatprep.mubr.f32.mxu0 0.0
  %334 = vmatmul.mubr.f32.gmra.mrb[0].mxu0 %v30
  %v335 = vpop.f32.mrb[0].mxu0
  %v336 = vadd.f32 0.0, %v335
  %v337 = vpop.f32.mrb[0].mxu0
  %338 = vmatprep.mubr.f32.mxu0 0.0
  %339 = vmatmul.mubr.f32.gmra.mrb[0].mxu0 %v31
  %v340 = vpop.f32.mrb[0].mxu0
  %v341 = vadd.f32 0.0, %v340
  %v342 = vpop.f32.mrb[0].mxu0
  %343 = vmatprep.mubr.f32.mxu0 0.0
  %344 = vmatmul.mubr.f32.gmra.mrb[0].mxu0 %v32
  %v345 = vpop.f32.mrb[0].mxu0
  %v346 = vadd.f32 0.0, %v345
  %v347 = vpop.f32.mrb[0].mxu0
  %348 = vmatprep.mubr.f32.mxu0 0.0
  %349 = vmatmul.mubr.f32.gmra.mrb[0].mxu0 %v33
  %v350 = vpop.f32.mrb[0].mxu0
  %v351 = vadd.f32 0.0, %v350
  %v352 = vpop.f32.mrb[0].mxu0
  %353 = vmatprep.mubr.f32.mxu0 0.0
  %354 = vmatmul.mubr.f32.gmra.mrb[0].mxu0 %v34
  %v355 = vpop.f32.mrb[0].mxu0
  %v356 = vadd.f32 0.0, %v355
  %v357 = vpop.f32.mrb[0].mxu0
  %358 = vmatprep.mubr.f32.mxu0 0.0
  %359 = vmatmul.mubr.f32.gmra.mrb[0].mxu0 %v35
  %v360 = vpop.f32.mrb[0].mxu0
  %v361 = vadd.f32 0.0, %v360
  %v362 = vpop.f32.mrb[0].mxu0
  %363 = vmatprep.mubr.f32.mxu0 0.0
  %364 = vmatmul.mubr.f32.gmra.mrb[0].mxu0 %v36
  %v365 = vpop.f32.mrb[0].mxu0
  %v366 = vadd.f32 0.0, %v365
  %v367 = vpop.f32.mrb[0].mxu0
  %368 = vmatprep.mubr.f32.mxu0 0.0
  %369 = vmatmul.mubr.f32.gmra.mrb[0].mxu0 %v37
  %v370 = vpop.f32.mrb[0].mxu0
  %v371 = vadd.f32 0.0, %v370
  %v372 = vpop.f32.mrb[0].mxu0
  %373 = vmatprep.mubr.f32.mxu0 0.0
  %374 = vmatmul.mubr.f32.gmra.mrb[0].mxu0 %v38
  %v375 = vpop.f32.mrb[0].mxu0
  %v376 = vadd.f32 0.0, %v375
  %v377 = vpop.f32.mrb[0].mxu0
  %378 = vmatprep.mubr.f32.mxu0 0.0
  %379 = vmatmul.mubr.f32.gmra.mrb[0].mxu0 %v39
  %v380 = vpop.f32.mrb[0].mxu0
  %v381 = vadd.f32 0.0, %v380
  %v382 = vpop.f32.mrb[0].mxu0
  %383 = vmatprep.mubr.f32.mxu0 0.0
  %384 = vmatmul.mubr.f32.gmra.mrb[0].mxu0 %v40
  %v385 = vpop.f32.mrb[0].mxu0
  %v386 = vadd.f32 0.0, %v385
  %v387 = vpop.f32.mrb[0].mxu0
  %388 = vmatprep.mubr.f32.mxu0 0.0
  %389 = vmatmul.mubr.f32.gmra.mrb[0].mxu0 %v41
  %v390 = vpop.f32.mrb[0].mxu0
  %v391 = vadd.f32 0.0, %v390
  %v392 = vpop.f32.mrb[0].mxu0
  %393 = vmatprep.mubr.f32.mxu0 0.0
  %394 = vmatmul.mubr.f32.gmra.mrb[0].mxu0 %v42
  %v395 = vpop.f32.mrb[0].mxu0
  %v396 = vadd.f32 0.0, %v395
  %v397 = vpop.f32.mrb[0].mxu0
  %398 = vmatprep.mubr.f32.mxu0 0.0
  %399 = vmatmul.mubr.f32.gmra.mrb[0].mxu0 %v43
  %v400 = vpop.f32.mrb[0].mxu0
  %v401 = vadd.f32 0.0, %v400
  %v402 = vpop.f32.mrb[0].mxu0
  %403 = vmatprep.mubr.f32.mxu0 0.0
  %404 = vmatmul.mubr.f32.gmra.mrb[0].mxu0 %v44
  %v405 = vpop.f32.mrb[0].mxu0
  %v406 = vadd.f32 0.0, %v405
  %v407 = vpop.f32.mrb[0].mxu0
  %408 = vmatprep.mubr.f32.mxu0 0.0
  %409 = vmatmul.mubr.f32.gmra.mrb[0].mxu0 %v45
  %v410 = vpop.f32.mrb[0].mxu0
  %v411 = vadd.f32 0.0, %v410
  %v412 = vpop.f32.mrb[0].mxu0
  %413 = vmatprep.mubr.f32.mxu0 0.0
  %414 = vmatmul.mubr.f32.gmra.mrb[0].mxu0 %v46
  %v415 = vpop.f32.mrb[0].mxu0
  %v416 = vadd.f32 0.0, %v415
  %v417 = vpop.f32.mrb[0].mxu0
  %418 = vmatprep.mubr.f32.mxu0 0.0
  %419 = vmatmul.mubr.f32.gmra.mrb[0].mxu0 %v47
  %v420 = vpop.f32.mrb[0].mxu0
  %v421 = vadd.f32 0.0, %v420
  %v422 = vpop.f32.mrb[0].mxu0
  %423 = vmatprep.mubr.f32.mxu0 0.0
  %424 = vmatmul.mubr.f32.gmra.mrb[0].mxu0 %v48
  %v425 = vpop.f32.mrb[0].mxu0
  %v426 = vadd.f32 0.0, %v425
  %v427 = vpop.f32.mrb[0].mxu0
  %428 = vmatprep.mubr.f32.mxu0 0.0
  %429 = vmatmul.mubr.f32.gmra.mrb[0].mxu0 %v49
  %v430 = vpop.f32.mrb[0].mxu0
  %v431 = vadd.f32 0.0, %v430
  %v432 = vpop.f32.mrb[0].mxu0
  %433 = vmatprep.mubr.f32.mxu0 0.0
  %434 = vmatmul.mubr.f32.gmra.mrb[0].mxu0 %v50
  %v435 = vpop.f32.mrb[0].mxu0
  %v436 = vadd.f32 0.0, %v435
  %v437 = vpop.f32.mrb[0].mxu0
  %438 = vmatprep.mubr.f32.mxu0 0.0
  %439 = vmatmul.mubr.f32.gmra.mrb[0].mxu0 %v51
  %v440 = vpop.f32.mrb[0].mxu0
  %v441 = vadd.f32 0.0, %v440
  %v442 = vpop.f32.mrb[0].mxu0
  %443 = vmatprep.mubr.f32.mxu0 0.0
  %444 = vmatmul.mubr.f32.gmra.mrb[0].mxu0 %v52
  %v445 = vpop.f32.mrb[0].mxu0
  %v446 = vadd.f32 0.0, %v445
  %v447 = vpop.f32.mrb[0].mxu0
  %448 = vmatprep.mubr.f32.mxu0 0.0
  %449 = vmatmul.mubr.f32.gmra.mrb[0].mxu0 %v53
  %v450 = vpop.f32.mrb[0].mxu0
  %v451 = vadd.f32 0.0, %v450
  %v452 = vpop.f32.mrb[0].mxu0
  %453 = vmatprep.mubr.f32.mxu0 0.0
  %454 = vmatmul.mubr.f32.gmra.mrb[0].mxu0 %v54
  %v455 = vpop.f32.mrb[0].mxu0
  %v456 = vadd.f32 0.0, %v455
  %v457 = vpop.f32.mrb[0].mxu0
  %458 = vmatprep.mubr.f32.mxu0 0.0
  %459 = vmatmul.mubr.f32.gmra.mrb[0].mxu0 %v55
  %v460 = vpop.f32.mrb[0].mxu0
  %v461 = vadd.f32 0.0, %v460
  %v462 = vpop.f32.mrb[0].mxu0
  %463 = vmatprep.mubr.f32.mxu0 0.0
  %464 = vmatmul.mubr.f32.gmra.mrb[0].mxu0 %v56
  %v465 = vpop.f32.mrb[0].mxu0
  %v466 = vadd.f32 0.0, %v465
  %v467 = vpop.f32.mrb[0].mxu0
  %468 = vmatprep.mubr.f32.mxu0 0.0
  %469 = vmatmul.mubr.f32.gmra.mrb[0].mxu0 %v57
  %v470 = vpop.f32.mrb[0].mxu0
  %v471 = vadd.f32 0.0, %v470
  %v472 = vpop.f32.mrb[0].mxu0
  %473 = vmatprep.mubr.f32.mxu0 0.0
  %474 = vmatmul.mubr.f32.gmra.mrb[0].mxu0 %v58
  %v475 = vpop.f32.mrb[0].mxu0
  %v476 = vadd.f32 0.0, %v475
  %v477 = vpop.f32.mrb[0].mxu0
  %478 = vmatprep.mubr.f32.mxu0 0.0
  %479 = vmatmul.mubr.f32.gmra.mrb[0].mxu0 %v59
  %v480 = vpop.f32.mrb[0].mxu0
  %v481 = vadd.f32 0.0, %v480
  %v482 = vpop.f32.mrb[0].mxu0
  %483 = vmatprep.mubr.f32.mxu0 0.0
  %484 = vmatmul.mubr.f32.gmra.mrb[0].mxu0 %v60
  %v485 = vpop.f32.mrb[0].mxu0
  %v486 = vadd.f32 0.0, %v485
  %v487 = vpop.f32.mrb[0].mxu0
  %488 = vmatprep.mubr.f32.mxu0 0.0
  %489 = vmatmul.mubr.f32.gmra.mrb[0].mxu0 %v61
  %v490 = vpop.f32.mrb[0].mxu0
  %v491 = vadd.f32 0.0, %v490
  %v492 = vpop.f32.mrb[0].mxu0
  %493 = vmatprep.mubr.f32.mxu0 0.0
  %494 = vmatmul.mubr.f32.gmra.mrb[0].mxu0 %v62
  %v495 = vpop.f32.mrb[0].mxu0
  %v496 = vadd.f32 0.0, %v495
  %v497 = vpop.f32.mrb[0].mxu0
  %498 = vmatprep.mubr.f32.mxu0 0.0
  %499 = vmatmul.mubr.f32.gmra.mrb[0].mxu0 %v63
  %v500 = vpop.f32.mrb[0].mxu0
  %v501 = vadd.f32 0.0, %v500
  %v502 = vpop.f32.mrb[0].mxu0
  %503 = vmatprep.mubr.f32.mxu0 0.0
  %504 = vmatmul.mubr.f32.gmra.mrb[0].mxu0 %v64
  %v505 = vpop.f32.mrb[0].mxu0
  %v506 = vadd.f32 0.0, %v505
  %v507 = vpop.f32.mrb[0].mxu0
  %508 = vmatprep.mubr.f32.mxu0 0.0
  %509 = vmatmul.mubr.f32.gmra.mrb[0].mxu0 %v65
  %v510 = vpop.f32.mrb[0].mxu0
  %v511 = vadd.f32 0.0, %v510
  %v512 = vpop.f32.mrb[0].mxu0
  %513 = vmatprep.mubr.f32.mxu0 0.0
  %514 = vmatmul.mubr.f32.gmra.mrb[0].mxu0 %v66
  %v515 = vpop.f32.mrb[0].mxu0
  %v516 = vadd.f32 0.0, %v515
  %v517 = vpop.f32.mrb[0].mxu0
  %518 = vmatprep.mubr.f32.mxu0 0.0
  %519 = vmatmul.mubr.f32.gmra.mrb[0].mxu0 %v67
  %v520 = vpop.f32.mrb[0].mxu0
  %v521 = vadd.f32 0.0, %v520
  %v522 = vpop.f32.mrb[0].mxu0
  %523 = vmatprep.mubr.f32.mxu0 0.0
  %524 = vmatmul.mubr.f32.gmra.mrb[0].mxu0 %v68
  %v525 = vpop.f32.mrb[0].mxu0
  %v526 = vadd.f32 0.0, %v525
  %v527 = vpop.f32.mrb[0].mxu0
  %528 = vmatprep.mubr.f32.mxu0 0.0
  %529 = vmatmul.mubr.f32.gmra.mrb[0].mxu0 %v69
  %v530 = vpop.f32.mrb[0].mxu0
  %v531 = vadd.f32 0.0, %v530
  %v532 = vpop.f32.mrb[0].mxu0
  %533 = vmatprep.mubr.f32.mxu0 0.0
  %534 = vmatmul.mubr.f32.gmra.mrb[0].mxu0 %v70
  %v535 = vpop.f32.mrb[0].mxu0
  %v536 = vadd.f32 0.0, %v535
  %v537 = vpop.f32.mrb[0].mxu0
  %538 = vmatprep.mubr.f32.mxu0 0.0
  %539 = vmatmul.mubr.f32.gmra.mrb[0].mxu0 %v71
  %v540 = vpop.f32.mrb[0].mxu0
  %v541 = vadd.f32 0.0, %v540
  %v542 = vpop.f32.mrb[0].mxu0
  %543 = vmatprep.mubr.f32.mxu0 0.0
  %544 = vmatmul.mubr.f32.gmra.mrb[0].mxu0 %v72
  %v545 = vpop.f32.mrb[0].mxu0
  %v546 = vadd.f32 0.0, %v545
  %v547 = vpop.f32.mrb[0].mxu0
  %548 = vmatprep.mubr.f32.mxu0 0.0
  %549 = vmatmul.mubr.f32.gmra.mrb[0].mxu0 %v73
  %v550 = vpop.f32.mrb[0].mxu0
  %v551 = vadd.f32 0.0, %v550
  %v552 = vpop.f32.mrb[0].mxu0
  %553 = vmatprep.mubr.f32.mxu0 0.0
  %554 = vmatmul.mubr.f32.gmra.mrb[0].mxu0 %v74
  %v555 = vpop.f32.mrb[0].mxu0
  %v556 = vadd.f32 0.0, %v555
  %v557 = vpop.f32.mrb[0].mxu0
  %558 = vmatprep.mubr.f32.mxu0 0.0
  %559 = vmatmul.mubr.f32.gmra.mrb[0].mxu0 %v75
  %v560 = vpop.f32.mrb[0].mxu0
  %v561 = vadd.f32 0.0, %v560
  %v562 = vpop.f32.mrb[0].mxu0
  %563 = vmatprep.mubr.f32.mxu0 0.0
  %564 = vmatmul.mubr.f32.gmra.mrb[0].mxu0 %v76
  %v565 = vpop.f32.mrb[0].mxu0
  %v566 = vadd.f32 0.0, %v565
  %v567 = vpop.f32.mrb[0].mxu0
  %568 = vmatprep.mubr.f32.mxu0 0.0
  %569 = vmatmul.mubr.f32.gmra.mrb[0].mxu0 %v77
  %v570 = vpop.f32.mrb[0].mxu0
  %v571 = vadd.f32 0.0, %v570
  %v572 = vpop.f32.mrb[0].mxu0
  %573 = vmatprep.mubr.f32.mxu0 0.0
  %574 = vmatmul.mubr.f32.gmra.mrb[0].mxu0 %v78
  %v575 = vpop.f32.mrb[0].mxu0
  %v576 = vadd.f32 0.0, %v575
  %v577 = vpop.f32.mrb[0].mxu0
  %578 = vmatprep.mubr.f32.mxu0 0.0
  %579 = vmatmul.mubr.f32.gmra.mrb[0].mxu0 %v79
  %v580 = vpop.f32.mrb[0].mxu0
  %v581 = vadd.f32 0.0, %v580
  %v582 = vpop.f32.mrb[0].mxu0
  %583 = vmatprep.mubr.f32.mxu0 0.0
  %584 = vmatmul.mubr.f32.gmra.mrb[0].mxu0 %v80
  %v585 = vpop.f32.mrb[0].mxu0
  %v586 = vadd.f32 0.0, %v585
  %v587 = vpop.f32.mrb[0].mxu0
  %588 = vmatprep.mubr.f32.mxu0 0.0
  %589 = vmatmul.mubr.f32.gmra.mrb[0].mxu0 %v81
  %v590 = vpop.f32.mrb[0].mxu0
  %v591 = vadd.f32 0.0, %v590
  %v592 = vpop.f32.mrb[0].mxu0
  %593 = vmatprep.mubr.f32.mxu0 0.0
  %594 = vmatmul.mubr.f32.gmra.mrb[0].mxu0 %v82
  %v595 = vpop.f32.mrb[0].mxu0
  %v596 = vadd.f32 0.0, %v595
  %v597 = vpop.f32.mrb[0].mxu0
  %598 = vmatprep.mubr.f32.mxu0 0.0
  %599 = vmatmul.mubr.f32.gmra.mrb[0].mxu0 %v83
  %v600 = vpop.f32.mrb[0].mxu0
  %v601 = vadd.f32 0.0, %v600
  %v602 = vpop.f32.mrb[0].mxu0
  %603 = vmatprep.mubr.f32.mxu0 0.0
  %604 = vmatmul.mubr.f32.gmra.mrb[0].mxu0 %v84
  %v605 = vpop.f32.mrb[0].mxu0
  %v606 = vadd.f32 0.0, %v605
  %v607 = vpop.f32.mrb[0].mxu0
  %608 = vmatprep.mubr.f32.mxu0 0.0
  %609 = vmatmul.mubr.f32.gmra.mrb[0].mxu0 %v85
  %v610 = vpop.f32.mrb[0].mxu0
  %v611 = vadd.f32 0.0, %v610
  %v612 = vpop.f32.mrb[0].mxu0
  %613 = vmatprep.mubr.f32.mxu0 0.0
  %614 = vmatmul.mubr.f32.gmra.mrb[0].mxu0 %v86
  %v615 = vpop.f32.mrb[0].mxu0
  %v616 = vadd.f32 0.0, %v615
  %v617 = vpop.f32.mrb[0].mxu0
  %618 = vmatprep.mubr.f32.mxu0 0.0
  %619 = vmatmul.mubr.f32.gmra.mrb[0].mxu0 %v87
  %v620 = vpop.f32.mrb[0].mxu0
  %v621 = vadd.f32 0.0, %v620
  %v622 = vpop.f32.mrb[0].mxu0
  %623 = vmatprep.mubr.f32.mxu0 0.0
  %624 = vmatmul.mubr.f32.gmra.mrb[0].mxu0 %v88
  %v625 = vpop.f32.mrb[0].mxu0
  %v626 = vadd.f32 0.0, %v625
  %v627 = vpop.f32.mrb[0].mxu0
  %628 = vmatprep.mubr.f32.mxu0 0.0
  %629 = vmatmul.mubr.f32.gmra.mrb[0].mxu0 %v89
  %v630 = vpop.f32.mrb[0].mxu0
  %v631 = vadd.f32 0.0, %v630
  %v632 = vpop.f32.mrb[0].mxu0
  %633 = vmatprep.mubr.f32.mxu0 0.0
  %634 = vmatmul.mubr.f32.gmra.mrb[0].mxu0 %v90
  %v635 = vpop.f32.mrb[0].mxu0
  %v636 = vadd.f32 0.0, %v635
  %v637 = vpop.f32.mrb[0].mxu0
  %638 = vmatprep.mubr.f32.mxu0 0.0
  %639 = vmatmul.mubr.f32.gmra.mrb[0].mxu0 %v91
  %v640 = vpop.f32.mrb[0].mxu0
  %v641 = vadd.f32 0.0, %v640
  %v642 = vpop.f32.mrb[0].mxu0
  %643 = vmatprep.mubr.f32.mxu0 0.0
  %644 = vmatmul.mubr.f32.gmra.mrb[0].mxu0 %v92
  %v645 = vpop.f32.mrb[0].mxu0
  %v646 = vadd.f32 0.0, %v645
  %v647 = vpop.f32.mrb[0].mxu0
  %648 = vmatprep.mubr.f32.mxu0 0.0
  %649 = vmatmul.mubr.f32.gmra.mrb[0].mxu0 %v93
  %v650 = vpop.f32.mrb[0].mxu0
  %v651 = vadd.f32 0.0, %v650
  %v652 = vpop.f32.mrb[0].mxu0
  %653 = vmatprep.mubr.f32.mxu0 0.0
  %654 = vmatmul.mubr.f32.gmra.mrb[0].mxu0 %v94
  %v655 = vpop.f32.mrb[0].mxu0
  %v656 = vadd.f32 0.0, %v655
  %v657 = vpop.f32.mrb[0].mxu0
  %658 = vmatprep.mubr.f32.mxu0 0.0
  %659 = vmatmul.mubr.f32.gmra.mrb[0].mxu0 %v95
  %v660 = vpop.f32.mrb[0].mxu0
  %v661 = vadd.f32 0.0, %v660
  %v662 = vpop.f32.mrb[0].mxu0
  %663 = vmatprep.mubr.f32.mxu0 0.0
  %664 = vmatmul.mubr.f32.gmra.mrb[0].mxu0 %v96
  %v665 = vpop.f32.mrb[0].mxu0
  %v666 = vadd.f32 0.0, %v665
  %v667 = vpop.f32.mrb[0].mxu0
  %668 = vmatprep.mubr.f32.mxu0 0.0
  %669 = vmatmul.mubr.f32.gmra.mrb[0].mxu0 %v97
  %v670 = vpop.f32.mrb[0].mxu0
  %v671 = vadd.f32 0.0, %v670
  %v672 = vpop.f32.mrb[0].mxu0
  %673 = vmatprep.mubr.f32.mxu0 0.0
  %674 = vmatmul.mubr.f32.gmra.mrb[0].mxu0 %v98
  %v675 = vpop.f32.mrb[0].mxu0
  %v676 = vadd.f32 0.0, %v675
  %v677 = vpop.f32.mrb[0].mxu0
  %678 = vmatprep.mubr.f32.mxu0 0.0
  %679 = vmatmul.mubr.f32.gmra.mrb[0].mxu0 %v99
  %v680 = vpop.f32.mrb[0].mxu0
  %v681 = vadd.f32 0.0, %v680
  %v682 = vpop.f32.mrb[0].mxu0
  %683 = vmatprep.mubr.f32.mxu0 0.0
  %684 = vmatmul.mubr.f32.gmra.mrb[0].mxu0 %v100
  %v685 = vpop.f32.mrb[0].mxu0
  %v686 = vadd.f32 0.0, %v685
  %v687 = vpop.f32.mrb[0].mxu0
  %688 = vmatprep.mubr.f32.mxu0 0.0
  %689 = vmatmul.mubr.f32.gmra.mrb[0].mxu0 %v101
  %v690 = vpop.f32.mrb[0].mxu0
  %v691 = vadd.f32 0.0, %v690
  %v692 = vpop.f32.mrb[0].mxu0
  %693 = vmatprep.mubr.f32.mxu0 0.0
  %694 = vmatmul.mubr.f32.gmra.mrb[0].mxu0 %v102
  %v695 = vpop.f32.mrb[0].mxu0
  %v696 = vadd.f32 0.0, %v695
  %v697 = vpop.f32.mrb[0].mxu0
  %698 = vmatprep.mubr.f32.mxu0 0.0
  %699 = vmatmul.mubr.f32.gmra.mrb[0].mxu0 %v103
  %v700 = vpop.f32.mrb[0].mxu0
  %v701 = vadd.f32 0.0, %v700
  %v702 = vpop.f32.mrb[0].mxu0
  %703 = vmatprep.mubr.f32.mxu0 0.0
  %704 = vmatmul.mubr.f32.gmra.mrb[0].mxu0 %v104
  %v705 = vpop.f32.mrb[0].mxu0
  %v706 = vadd.f32 0.0, %v705
  %v707 = vpop.f32.mrb[0].mxu0
  %708 = vmatprep.mubr.f32.mxu0 0.0
  %709 = vmatmul.mubr.f32.gmra.mrb[0].mxu0 %v105
  %v710 = vpop.f32.mrb[0].mxu0
  %v711 = vadd.f32 0.0, %v710
  %v712 = vpop.f32.mrb[0].mxu0
  %713 = vmatprep.mubr.f32.mxu0 0.0
  %714 = vmatmul.mubr.f32.gmra.mrb[0].mxu0 %v106
  %v715 = vpop.f32.mrb[0].mxu0
  %v716 = vadd.f32 0.0, %v715
  %v717 = vpop.f32.mrb[0].mxu0
  %718 = vmatprep.mubr.f32.mxu0 0.0
  %719 = vmatmul.mubr.f32.gmra.mrb[0].mxu0 %v107
  %v720 = vpop.f32.mrb[0].mxu0
  %v721 = vadd.f32 0.0, %v720
  %v722 = vpop.f32.mrb[0].mxu0
  %723 = vmatprep.mubr.f32.mxu0 0.0
  %724 = vmatmul.mubr.f32.gmra.mrb[0].mxu0 %v108
  %v725 = vpop.f32.mrb[0].mxu0
  %v726 = vadd.f32 0.0, %v725
  %v727 = vpop.f32.mrb[0].mxu0
  %728 = vmatprep.mubr.f32.mxu0 0.0
  %729 = vmatmul.mubr.f32.gmra.mrb[0].mxu0 %v109
  %v730 = vpop.f32.mrb[0].mxu0
  %v731 = vadd.f32 0.0, %v730
  %v732 = vpop.f32.mrb[0].mxu0
  %733 = vmatprep.mubr.f32.mxu0 0.0
  %734 = vmatmul.mubr.f32.gmra.mrb[0].mxu0 %v110
  %v735 = vpop.f32.mrb[0].mxu0
  %v736 = vadd.f32 0.0, %v735
  %v737 = vpop.f32.mrb[0].mxu0
  %738 = vmatprep.mubr.f32.mxu0 0.0
  %739 = vmatmul.mubr.f32.gmra.mrb[0].mxu0 %v111
  %v740 = vpop.f32.mrb[0].mxu0
  %v741 = vadd.f32 0.0, %v740
  %v742 = vpop.f32.mrb[0].mxu0
  %743 = vmatprep.mubr.f32.mxu0 0.0
  %744 = vmatmul.mubr.f32.gmra.mrb[0].mxu0 %v112
  %v745 = vpop.f32.mrb[0].mxu0
  %v746 = vadd.f32 0.0, %v745
  %v747 = vpop.f32.mrb[0].mxu0
  %748 = vmatprep.mubr.f32.mxu0 0.0
  %749 = vmatmul.mubr.f32.gmra.mrb[0].mxu0 %v113
  %v750 = vpop.f32.mrb[0].mxu0
  %v751 = vadd.f32 0.0, %v750
  %v752 = vpop.f32.mrb[0].mxu0
  %753 = vmatprep.mubr.f32.mxu0 0.0
  %754 = vmatmul.mubr.f32.gmra.mrb[0].mxu0 %v114
  %v755 = vpop.f32.mrb[0].mxu0
  %v756 = vadd.f32 0.0, %v755
  %v757 = vpop.f32.mrb[0].mxu0
  %758 = vmatprep.mubr.f32.mxu0 0.0
  %759 = vmatmul.mubr.f32.gmra.mrb[0].mxu0 %v115
  %v760 = vpop.f32.mrb[0].mxu0
  %v761 = vadd.f32 0.0, %v760
  %v762 = vpop.f32.mrb[0].mxu0
  %763 = vmatprep.mubr.f32.mxu0 0.0
  %764 = vmatmul.mubr.f32.gmra.mrb[0].mxu0 %v116
  %v765 = vpop.f32.mrb[0].mxu0
  %v766 = vadd.f32 0.0, %v765
  %v767 = vpop.f32.mrb[0].mxu0
  %768 = vmatprep.mubr.f32.mxu0 0.0
  %769 = vmatmul.mubr.f32.gmra.mrb[0].mxu0 %v117
  %v770 = vpop.f32.mrb[0].mxu0
  %v771 = vadd.f32 0.0, %v770
  %v772 = vpop.f32.mrb[0].mxu0
  %773 = vmatprep.mubr.f32.mxu0 0.0
  %774 = vmatmul.mubr.f32.gmra.mrb[0].mxu0 %v118
  %v775 = vpop.f32.mrb[0].mxu0
  %v776 = vadd.f32 0.0, %v775
  %v777 = vpop.f32.mrb[0].mxu0
  %778 = vmatprep.mubr.f32.mxu0 0.0
  %779 = vmatmul.mubr.f32.gmra.mrb[0].mxu0 %v119
  %v780 = vpop.f32.mrb[0].mxu0
  %v781 = vadd.f32 0.0, %v780
  %v782 = vpop.f32.mrb[0].mxu0
  %783 = vmatprep.mubr.f32.mxu0 0.0
  %784 = vmatmul.mubr.f32.gmra.mrb[0].mxu0 %v120
  %v785 = vpop.f32.mrb[0].mxu0
  %v786 = vadd.f32 0.0, %v785
  %v787 = vpop.f32.mrb[0].mxu0
  %788 = vmatprep.mubr.f32.mxu0 0.0
  %789 = vmatmul.mubr.f32.gmra.mrb[0].mxu0 %v121
  %v790 = vpop.f32.mrb[0].mxu0
  %v791 = vadd.f32 0.0, %v790
  %v792 = vpop.f32.mrb[0].mxu0
  %793 = vmatprep.mubr.f32.mxu0 0.0
  %794 = vmatmul.mubr.f32.gmra.mrb[0].mxu0 %v122
  %v795 = vpop.f32.mrb[0].mxu0
  %v796 = vadd.f32 0.0, %v795
  %v797 = vpop.f32.mrb[0].mxu0
  %798 = vmatprep.mubr.f32.mxu0 0.0
  %799 = vmatmul.mubr.f32.gmra.mrb[0].mxu0 %v123
  %v800 = vpop.f32.mrb[0].mxu0
  %v801 = vadd.f32 0.0, %v800
  %v802 = vpop.f32.mrb[0].mxu0
  %803 = vmatprep.mubr.f32.mxu0 0.0
  %804 = vmatmul.mubr.f32.gmra.mrb[0].mxu0 %v124
  %v805 = vpop.f32.mrb[0].mxu0
  %v806 = vadd.f32 0.0, %v805
  %v807 = vpop.f32.mrb[0].mxu0
  %808 = vmatprep.mubr.f32.mxu0 0.0
  %809 = vmatmul.mubr.f32.gmra.mrb[0].mxu0 %v125
  %v810 = vpop.f32.mrb[0].mxu0
  %v811 = vadd.f32 0.0, %v810
  %v812 = vpop.f32.mrb[0].mxu0
  %813 = vmatprep.mubr.f32.mxu0 0.0
  %814 = vmatmul.mubr.f32.gmra.mrb[0].mxu0 %v126
  %v815 = vpop.f32.mrb[0].mxu0
  %v816 = vadd.f32 0.0, %v815
  %v817 = vpop.f32.mrb[0].mxu0
  %818 = vmatprep.mubr.f32.mxu0 0.0
  %819 = vmatmul.mubr.f32.gmra.mrb[0].mxu0 %v127
  %v820 = vpop.f32.mrb[0].mxu0
  %v821 = vadd.f32 0.0, %v820
  %v822 = vpop.f32.mrb[0].mxu0
  %823 = vmatprep.mubr.f32.mxu0 0.0
  %824 = vmatmul.mubr.f32.gmra.mrb[0].mxu0 %v128
  %v825 = vpop.f32.mrb[0].mxu0
  %v826 = vadd.f32 0.0, %v825
  %v827 = vpop.f32.mrb[0].mxu0
  %828 = vmatprep.mubr.f32.mxu0 0.0
  %829 = vmatmul.mubr.f32.gmra.mrb[0].mxu0 %v129
  %v830 = vpop.f32.mrb[0].mxu0
  %v831 = vadd.f32 0.0, %v830
  %v832 = vpop.f32.mrb[0].mxu0
  %833 = vmatprep.mubr.f32.mxu0 0.0
  %834 = vmatmul.mubr.f32.gmra.mrb[0].mxu0 %v130
  %v835 = vpop.f32.mrb[0].mxu0
  %v836 = vadd.f32 0.0, %v835
  %v837 = vpop.f32.mrb[0].mxu0
  %838 = vmatprep.mubr.f32.mxu0 0.0
  %839 = vmatmul.mubr.f32.gmra.mrb[0].mxu0 %v131
  %v840 = vpop.f32.mrb[0].mxu0
  %v841 = vadd.f32 0.0, %v840
  %v842 = vpop.f32.mrb[0].mxu0
  %843 = vmatprep.mubr.f32.mxu0 0.0
  %844 = vmatmul.mubr.f32.gmra.mrb[0].mxu0 %v132
  %v845 = vpop.f32.mrb[0].mxu0
  %v846 = vadd.f32 0.0, %v845
  %v847 = vpop.f32.mrb[0].mxu0
  %848 = vmatprep.mubr.f32.mxu0 0.0
  %849 = vmatmul.mubr.f32.gmra.mrb[0].mxu0 %v133
  %v850 = vpop.f32.mrb[0].mxu0
  %v851 = vadd.f32 0.0, %v850
  %v852 = vpop.f32.mrb[0].mxu0
  %853 = vmatprep.mubr.f32.mxu0 0.0
  %854 = vmatmul.mubr.f32.gmra.mrb[0].mxu0 %v134
  %v855 = vpop.f32.mrb[0].mxu0
  %v856 = vadd.f32 0.0, %v855
  %v857 = vpop.f32.mrb[0].mxu0
  %858 = vmatprep.mubr.f32.mxu0 0.0
  %859 = vmatmul.mubr.f32.gmra.mrb[0].mxu0 %v135
  %v860 = vpop.f32.mrb[0].mxu0
  %v861 = vadd.f32 0.0, %v860
  %v862 = vpop.f32.mrb[0].mxu0
  %863 = vmatprep.mubr.f32.mxu0 0.0
  %864 = vmatmul.mubr.f32.gmra.mrb[0].mxu0 %v136
  %v865 = vpop.f32.mrb[0].mxu0
  %v866 = vadd.f32 0.0, %v865
  %v867 = vpop.f32.mrb[0].mxu0
  %868 = vmatprep.mubr.f32.mxu0 0.0
  %869 = vmatmul.mubr.f32.gmra.mrb[0].mxu0 %v137
  %v870 = vpop.f32.mrb[0].mxu0
  %v871 = vadd.f32 0.0, %v870
  %v872 = vpop.f32.mrb[0].mxu0
  %873 = vmatprep.mubr.f32.mxu0 0.0
  %874 = vmatmul.mubr.f32.gmra.mrb[0].mxu0 %v138
  %v875 = vpop.f32.mrb[0].mxu0
  %v876 = vadd.f32 0.0, %v875
  %v877 = vpop.f32.mrb[0].mxu0
  %878 = vmatprep.mubr.f32.mxu0 0.0
  %879 = vmatmul.mubr.f32.gmra.mrb[0].mxu0 %v139
  %v880 = vpop.f32.mrb[0].mxu0
  %v881 = vadd.f32 0.0, %v880
  %v882 = vpop.f32.mrb[0].mxu0
  %883 = vmatprep.mubr.f32.mxu0 0.0
  %884 = vmatmul.mubr.f32.gmra.mrb[0].mxu0 %v140
  %v885 = vpop.f32.mrb[0].mxu0
  %v886 = vadd.f32 0.0, %v885
  %v887 = vpop.f32.mrb[0].mxu0
  %888 = vmatprep.mubr.f32.mxu0 0.0
  %889 = vmatmul.mubr.f32.gmra.mrb[0].mxu0 %v141
  %v890 = vpop.f32.mrb[0].mxu0
  %v891 = vadd.f32 0.0, %v890
  %v892 = vpop.f32.mrb[0].mxu0
  %893 = vmatprep.mubr.f32.mxu0 0.0
  %894 = vmatmul.mubr.f32.gmra.mrb[0].mxu0 %v142
  %v895 = vpop.f32.mrb[0].mxu0
  %v896 = vadd.f32 0.0, %v895
  %v897 = vpop.f32.mrb[0].mxu0
  %898 = vmatprep.mubr.f32.mxu0 0.0
  %899 = vmatmul.mubr.f32.gmra.mrb[0].mxu0 %v143
  %v900 = vpop.f32.mrb[0].mxu0
  %v901 = vadd.f32 0.0, %v900
  %v902 = vpop.f32.mrb[0].mxu0
  %903 = vmatprep.mubr.f32.mxu0 0.0
  %904 = vmatmul.mubr.f32.gmra.mrb[0].mxu0 %v144
  %v905 = vpop.f32.mrb[0].mxu0
  %v906 = vadd.f32 0.0, %v905
  %v907 = vpop.f32.mrb[0].mxu0
  %908 = vmatprep.mubr.f32.mxu0 0.0
  %909 = vmatmul.mubr.f32.gmra.mrb[0].mxu0 %v145
  %v910 = vpop.f32.mrb[0].mxu0
  %v911 = vadd.f32 0.0, %v910
  %v912 = vpop.f32.mrb[0].mxu0
  %913 = vmatprep.mubr.f32.mxu0 0.0
  %914 = vmatmul.mubr.f32.gmra.mrb[0].mxu0 %v146
  %v915 = vpop.f32.mrb[0].mxu0
  %v916 = vadd.f32 0.0, %v915
  %v917 = vpop.f32.mrb[0].mxu0
  %918 = vmatprep.mubr.f32.mxu0 0.0
  %919 = vmatmul.mubr.f32.gmra.mrb[0].mxu0 %v147
  %v920 = vpop.f32.mrb[0].mxu0
  %v921 = vadd.f32 0.0, %v920
  %v922 = vpop.f32.mrb[0].mxu0
  %923 = vmatprep.mubr.f32.mxu0 0.0
  %924 = vmatmul.mubr.f32.gmra.mrb[0].mxu0 %v148
  %v925 = vpop.f32.mrb[0].mxu0
  %v926 = vadd.f32 0.0, %v925
  %v927 = vpop.f32.mrb[0].mxu0
  %928 = vmatprep.mubr.f32.mxu0 0.0
  %929 = vmatmul.mubr.f32.gmra.mrb[0].mxu0 %v149
  %v930 = vpop.f32.mrb[0].mxu0
  %v931 = vadd.f32 0.0, %v930
  %v932 = vpop.f32.mrb[0].mxu0
  %933 = vmatprep.mubr.f32.mxu0 0.0
  %934 = vmatmul.mubr.f32.gmra.mrb[0].mxu0 %v150
  %v935 = vpop.f32.mrb[0].mxu0
  %v936 = vadd.f32 0.0, %v935
  %v937 = vpop.f32.mrb[0].mxu0
  %938 = vmatprep.mubr.f32.mxu0 0.0
  %939 = vmatmul.mubr.f32.gmra.mrb[0].mxu0 %v151
  %v940 = vpop.f32.mrb[0].mxu0
  %v941 = vadd.f32 0.0, %v940
  %v942 = vpop.f32.mrb[0].mxu0
  %943 = vmatprep.mubr.f32.mxu0 0.0
  %944 = vmatmul.mubr.f32.gmra.mrb[0].mxu0 %v152
  %v945 = vpop.f32.mrb[0].mxu0
  %v946 = vadd.f32 0.0, %v945
  %v947 = vpop.f32.mrb[0].mxu0
  %948 = vmatprep.mubr.f32.mxu0 0.0
  %949 = vmatmul.mubr.f32.gmra.mrb[0].mxu0 %v153
  %v950 = vpop.f32.mrb[0].mxu0
  %v951 = vadd.f32 0.0, %v950
  %v952 = vpop.f32.mrb[0].mxu0
  %953 = vdwg.mxu0
  %v955 = vcombine.high %v230, %v230
  %v957 = vunpack.c.l.s4 1966171168
  %v958 = vunpack.c.0.s8 %v957
  %v959 = vlaneseq
  %v960 = vshrl.u32 %v959, 7
  %v961 = vsub.s32 %v958, %v960
  %v962 = vrot.slane %v230, %v961
  %v964 = vunpack.c.l.s4 1966171168
  %v965 = vunpack.c.0.s8 %v964
  %v966 = vlaneseq
  %v967 = vshrl.u32 %v966, 7
  %v968 = vsub.s32 %v965, %v967
  %v969 = vrot.slane %v955, %v968
  %v970 = vcombine.high %v962, %v962
  %v971 = vcombine.high %v969, %v969
  %v973 = vunpack.c.l.s4 1966171168
  %v974 = vunpack.c.0.s8 %v973
  %v975 = vlaneseq
  %v976 = vshrl.u32 %v975, 7
  %v977 = vsub.s32 %v974, %v976
  %v978 = vrot.slane %v962, %v977
  %v980 = vunpack.c.l.s4 1966171168
  %v981 = vunpack.c.0.s8 %v980
  %v982 = vlaneseq
  %v983 = vshrl.u32 %v982, 7
  %v984 = vsub.s32 %v981, %v983
  %v985 = vrot.slane %v969, %v984
  %v987 = vunpack.c.l.s4 1966171168
  %v988 = vunpack.c.0.s8 %v987
  %v989 = vlaneseq
  %v990 = vshrl.u32 %v989, 7
  %v991 = vsub.s32 %v988, %v990
  %v992 = vrot.slane %v970, %v991
  %v994 = vunpack.c.l.s4 1966171168
  %v995 = vunpack.c.0.s8 %v994
  %v996 = vlaneseq
  %v997 = vshrl.u32 %v996, 7
  %v998 = vsub.s32 %v995, %v997
  %v999 = vrot.slane %v971, %v998
  %v1000 = vcombine.high %v978, %v978
  %v1001 = vcombine.high %v985, %v985
  %v1002 = vcombine.high %v992, %v992
  %v1003 = vcombine.high %v999, %v999
  %v1004 = vlaneseq
  %v1005 = vshrl.u32 %v1004, 7
  %v1006 = vsub.s32 0, %v1005
  %v1007 = vrot.slane %v978, %v1006
  %v1008 = vlaneseq
  %v1009 = vshrl.u32 %v1008, 7
  %v1010 = vsub.s32 0, %v1009
  %v1011 = vrot.slane %v992, %v1010
  %v1012 = vlaneseq
  %v1013 = vshrl.u32 %v1012, 7
  %v1014 = vsub.s32 0, %v1013
  %v1015 = vrot.slane %v1000, %v1014
  %v1016 = vlaneseq
  %v1017 = vshrl.u32 %v1016, 7
  %v1018 = vsub.s32 0, %v1017
  %v1019 = vrot.slane %v1002, %v1018
  %v1020 = vlaneseq
  %v1021 = vshrl.u32 %v1020, 7
  %v1022 = vsub.s32 0, %v1021
  %v1023 = vrot.slane %v985, %v1022
  %v1024 = vlaneseq
  %v1025 = vshrl.u32 %v1024, 7
  %v1026 = vsub.s32 0, %v1025
  %v1027 = vrot.slane %v999, %v1026
  %v1028 = vlaneseq
  %v1029 = vshrl.u32 %v1028, 7
  %v1030 = vsub.s32 0, %v1029
  %v1031 = vrot.slane %v1001, %v1030
  %v1032 = vlaneseq
  %v1033 = vshrl.u32 %v1032, 7
  %v1034 = vsub.s32 0, %v1033
  %v1035 = vrot.slane %v1003, %v1034
  %v1044 = vadd.f32 %v316, %v1007
  %v1045 = vadd.f32 %v321, %v1007
  %v1046 = vadd.f32 %v326, %v1007
  %v1047 = vadd.f32 %v331, %v1007
  %v1048 = vadd.f32 %v336, %v1007
  %v1049 = vadd.f32 %v341, %v1007
  %v1050 = vadd.f32 %v346, %v1007
  %v1051 = vadd.f32 %v351, %v1007
  %v1052 = vadd.f32 %v356, %v1007
  %v1053 = vadd.f32 %v361, %v1007
  %v1054 = vadd.f32 %v366, %v1007
  %v1055 = vadd.f32 %v371, %v1007
  %v1056 = vadd.f32 %v376, %v1007
  %v1057 = vadd.f32 %v381, %v1007
  %v1058 = vadd.f32 %v386, %v1007
  %v1059 = vadd.f32 %v391, %v1007
  %v1060 = vadd.f32 %v396, %v1011
  %v1061 = vadd.f32 %v401, %v1011
  %v1062 = vadd.f32 %v406, %v1011
  %v1063 = vadd.f32 %v411, %v1011
  %v1064 = vadd.f32 %v416, %v1011
  %v1065 = vadd.f32 %v421, %v1011
  %v1066 = vadd.f32 %v426, %v1011
  %v1067 = vadd.f32 %v431, %v1011
  %v1068 = vadd.f32 %v436, %v1011
  %v1069 = vadd.f32 %v441, %v1011
  %v1070 = vadd.f32 %v446, %v1011
  %v1071 = vadd.f32 %v451, %v1011
  %v1072 = vadd.f32 %v456, %v1011
  %v1073 = vadd.f32 %v461, %v1011
  %v1074 = vadd.f32 %v466, %v1011
  %v1075 = vadd.f32 %v471, %v1011
  %v1076 = vadd.f32 %v476, %v1015
  %v1077 = vadd.f32 %v481, %v1015
  %v1078 = vadd.f32 %v486, %v1015
  %v1079 = vadd.f32 %v491, %v1015
  %v1080 = vadd.f32 %v496, %v1015
  %v1081 = vadd.f32 %v501, %v1015
  %v1082 = vadd.f32 %v506, %v1015
  %v1083 = vadd.f32 %v511, %v1015
  %v1084 = vadd.f32 %v516, %v1015
  %v1085 = vadd.f32 %v521, %v1015
  %v1086 = vadd.f32 %v526, %v1015
  %v1087 = vadd.f32 %v531, %v1015
  %v1088 = vadd.f32 %v536, %v1015
  %v1089 = vadd.f32 %v541, %v1015
  %v1090 = vadd.f32 %v546, %v1015
  %v1091 = vadd.f32 %v551, %v1015
  %v1092 = vadd.f32 %v556, %v1019
  %v1093 = vadd.f32 %v561, %v1019
  %v1094 = vadd.f32 %v566, %v1019
  %v1095 = vadd.f32 %v571, %v1019
  %v1096 = vadd.f32 %v576, %v1019
  %v1097 = vadd.f32 %v581, %v1019
  %v1098 = vadd.f32 %v586, %v1019
  %v1099 = vadd.f32 %v591, %v1019
  %v1100 = vadd.f32 %v596, %v1019
  %v1101 = vadd.f32 %v601, %v1019
  %v1102 = vadd.f32 %v606, %v1019
  %v1103 = vadd.f32 %v611, %v1019
  %v1104 = vadd.f32 %v616, %v1019
  %v1105 = vadd.f32 %v621, %v1019
  %v1106 = vadd.f32 %v626, %v1019
  %v1107 = vadd.f32 %v631, %v1019
  %v1108 = vadd.f32 %v636, %v1023
  %v1109 = vadd.f32 %v641, %v1023
  %v1110 = vadd.f32 %v646, %v1023
  %v1111 = vadd.f32 %v651, %v1023
  %v1112 = vadd.f32 %v656, %v1023
  %v1113 = vadd.f32 %v661, %v1023
  %v1114 = vadd.f32 %v666, %v1023
  %v1115 = vadd.f32 %v671, %v1023
  %v1116 = vadd.f32 %v676, %v1023
  %v1117 = vadd.f32 %v681, %v1023
  %v1118 = vadd.f32 %v686, %v1023
  %v1119 = vadd.f32 %v691, %v1023
  %v1120 = vadd.f32 %v696, %v1023
  %v1121 = vadd.f32 %v701, %v1023
  %v1122 = vadd.f32 %v706, %v1023
  %v1123 = vadd.f32 %v711, %v1023
  %v1124 = vadd.f32 %v716, %v1027
  %v1125 = vadd.f32 %v721, %v1027
  %v1126 = vadd.f32 %v726, %v1027
  %v1127 = vadd.f32 %v731, %v1027
  %v1128 = vadd.f32 %v736, %v1027
  %v1129 = vadd.f32 %v741, %v1027
  %v1130 = vadd.f32 %v746, %v1027
  %v1131 = vadd.f32 %v751, %v1027
  %v1132 = vadd.f32 %v756, %v1027
  %v1133 = vadd.f32 %v761, %v1027
  %v1134 = vadd.f32 %v766, %v1027
  %v1135 = vadd.f32 %v771, %v1027
  %v1136 = vadd.f32 %v776, %v1027
  %v1137 = vadd.f32 %v781, %v1027
  %v1138 = vadd.f32 %v786, %v1027
  %v1139 = vadd.f32 %v791, %v1027
  %v1140 = vadd.f32 %v796, %v1031
  %v1141 = vadd.f32 %v801, %v1031
  %v1142 = vadd.f32 %v806, %v1031
  %v1143 = vadd.f32 %v811, %v1031
  %v1144 = vadd.f32 %v816, %v1031
  %v1145 = vadd.f32 %v821, %v1031
  %v1146 = vadd.f32 %v826, %v1031
  %v1147 = vadd.f32 %v831, %v1031
  %v1148 = vadd.f32 %v836, %v1031
  %v1149 = vadd.f32 %v841, %v1031
  %v1150 = vadd.f32 %v846, %v1031
  %v1151 = vadd.f32 %v851, %v1031
  %v1152 = vadd.f32 %v856, %v1031
  %v1153 = vadd.f32 %v861, %v1031
  %v1154 = vadd.f32 %v866, %v1031
  %v1155 = vadd.f32 %v871, %v1031
  %v1156 = vadd.f32 %v876, %v1035
  %v1157 = vadd.f32 %v881, %v1035
  %v1158 = vadd.f32 %v886, %v1035
  %v1159 = vadd.f32 %v891, %v1035
  %v1160 = vadd.f32 %v896, %v1035
  %v1161 = vadd.f32 %v901, %v1035
  %v1162 = vadd.f32 %v906, %v1035
  %v1163 = vadd.f32 %v911, %v1035
  %v1164 = vadd.f32 %v916, %v1035
  %v1165 = vadd.f32 %v921, %v1035
  %v1166 = vadd.f32 %v926, %v1035
  %v1167 = vadd.f32 %v931, %v1035
  %v1168 = vadd.f32 %v936, %v1035
  %v1169 = vadd.f32 %v941, %v1035
  %v1170 = vadd.f32 %v946, %v1035
  %v1171 = vadd.f32 %v951, %v1035
  %v1172 = vtanh.pop %v1044
  %v1173 = vtanh.pop %v1045
  %v1174 = vtanh.pop %v1046
  %v1175 = vtanh.pop %v1047
  %v1176 = vtanh.pop %v1048
  %v1177 = vtanh.pop %v1049
  %v1178 = vtanh.pop %v1050
  %v1179 = vtanh.pop %v1051
  %v1180 = vtanh.pop %v1052
  %v1181 = vtanh.pop %v1053
  %v1182 = vtanh.pop %v1054
  %v1183 = vtanh.pop %v1055
  %v1184 = vtanh.pop %v1056
  %v1185 = vtanh.pop %v1057
  %v1186 = vtanh.pop %v1058
  %v1187 = vtanh.pop %v1059
  %v1188 = vtanh.pop %v1060
  %v1189 = vtanh.pop %v1061
  %v1190 = vtanh.pop %v1062
  %v1191 = vtanh.pop %v1063
  %v1192 = vtanh.pop %v1064
  %v1193 = vtanh.pop %v1065
  %v1194 = vtanh.pop %v1066
  %v1195 = vtanh.pop %v1067
  %v1196 = vtanh.pop %v1068
  %v1197 = vtanh.pop %v1069
  %v1198 = vtanh.pop %v1070
  %v1199 = vtanh.pop %v1071
  %v1200 = vtanh.pop %v1072
  %v1201 = vtanh.pop %v1073
  %v1202 = vtanh.pop %v1074
  %v1203 = vtanh.pop %v1075
  %v1204 = vtanh.pop %v1076
  %v1205 = vtanh.pop %v1077
  %v1206 = vtanh.pop %v1078
  %v1207 = vtanh.pop %v1079
  %v1208 = vtanh.pop %v1080
  %v1209 = vtanh.pop %v1081
  %v1210 = vtanh.pop %v1082
  %v1211 = vtanh.pop %v1083
  %v1212 = vtanh.pop %v1084
  %v1213 = vtanh.pop %v1085
  %v1214 = vtanh.pop %v1086
  %v1215 = vtanh.pop %v1087
  %v1216 = vtanh.pop %v1088
  %v1217 = vtanh.pop %v1089
  %v1218 = vtanh.pop %v1090
  %v1219 = vtanh.pop %v1091
  %v1220 = vtanh.pop %v1092
  %v1221 = vtanh.pop %v1093
  %v1222 = vtanh.pop %v1094
  %v1223 = vtanh.pop %v1095
  %v1224 = vtanh.pop %v1096
  %v1225 = vtanh.pop %v1097
  %v1226 = vtanh.pop %v1098
  %v1227 = vtanh.pop %v1099
  %v1228 = vtanh.pop %v1100
  %v1229 = vtanh.pop %v1101
  %v1230 = vtanh.pop %v1102
  %v1231 = vtanh.pop %v1103
  %v1232 = vtanh.pop %v1104
  %v1233 = vtanh.pop %v1105
  %v1234 = vtanh.pop %v1106
  %v1235 = vtanh.pop %v1107
  %v1236 = vtanh.pop %v1108
  %v1237 = vtanh.pop %v1109
  %v1238 = vtanh.pop %v1110
  %v1239 = vtanh.pop %v1111
  %v1240 = vtanh.pop %v1112
  %v1241 = vtanh.pop %v1113
  %v1242 = vtanh.pop %v1114
  %v1243 = vtanh.pop %v1115
  %v1244 = vtanh.pop %v1116
  %v1245 = vtanh.pop %v1117
  %v1246 = vtanh.pop %v1118
  %v1247 = vtanh.pop %v1119
  %v1248 = vtanh.pop %v1120
  %v1249 = vtanh.pop %v1121
  %v1250 = vtanh.pop %v1122
  %v1251 = vtanh.pop %v1123
  %v1252 = vtanh.pop %v1124
  %v1253 = vtanh.pop %v1125
  %v1254 = vtanh.pop %v1126
  %v1255 = vtanh.pop %v1127
  %v1256 = vtanh.pop %v1128
  %v1257 = vtanh.pop %v1129
  %v1258 = vtanh.pop %v1130
  %v1259 = vtanh.pop %v1131
  %v1260 = vtanh.pop %v1132
  %v1261 = vtanh.pop %v1133
  %v1262 = vtanh.pop %v1134
  %v1263 = vtanh.pop %v1135
  %v1264 = vtanh.pop %v1136
  %v1265 = vtanh.pop %v1137
  %v1266 = vtanh.pop %v1138
  %v1267 = vtanh.pop %v1139
  %v1268 = vtanh.pop %v1140
  %v1269 = vtanh.pop %v1141
  %v1270 = vtanh.pop %v1142
  %v1271 = vtanh.pop %v1143
  %v1272 = vtanh.pop %v1144
  %v1273 = vtanh.pop %v1145
  %v1274 = vtanh.pop %v1146
  %v1275 = vtanh.pop %v1147
  %v1276 = vtanh.pop %v1148
  %v1277 = vtanh.pop %v1149
  %v1278 = vtanh.pop %v1150
  %v1279 = vtanh.pop %v1151
  %v1280 = vtanh.pop %v1152
  %v1281 = vtanh.pop %v1153
  %v1282 = vtanh.pop %v1154
  %v1283 = vtanh.pop %v1155
  %v1284 = vtanh.pop %v1156
  %v1285 = vtanh.pop %v1157
  %v1286 = vtanh.pop %v1158
  %v1287 = vtanh.pop %v1159
  %v1288 = vtanh.pop %v1160
  %v1289 = vtanh.pop %v1161
  %v1290 = vtanh.pop %v1162
  %v1291 = vtanh.pop %v1163
  %v1292 = vtanh.pop %v1164
  %v1293 = vtanh.pop %v1165
  %v1294 = vtanh.pop %v1166
  %v1295 = vtanh.pop %v1167
  %v1296 = vtanh.pop %v1168
  %v1297 = vtanh.pop %v1169
  %v1298 = vtanh.pop %v1170
  %v1299 = vtanh.pop %v1171
  %v1300 = vld [vmem:[%s5] sm:$0x1]
  %v1302 = vlaneseq
  %v1303 = vshrl.u32 %v1302, 7
  %v1304 = vsub.s32 0, %v1303
  %v1305 = vrot.slane %v1300, %v1304
  %v1307 = vmul.f32 %v1172, %v1305
  %v1308 = vmul.f32 %v1173, %v1305
  %v1309 = vmul.f32 %v1174, %v1305
  %v1310 = vmul.f32 %v1175, %v1305
  %v1311 = vmul.f32 %v1176, %v1305
  %v1312 = vmul.f32 %v1177, %v1305
  %v1313 = vmul.f32 %v1178, %v1305
  %v1314 = vmul.f32 %v1179, %v1305
  %v1315 = vmul.f32 %v1180, %v1305
  %v1316 = vmul.f32 %v1181, %v1305
  %v1317 = vmul.f32 %v1182, %v1305
  %v1318 = vmul.f32 %v1183, %v1305
  %v1319 = vmul.f32 %v1184, %v1305
  %v1320 = vmul.f32 %v1185, %v1305
  %v1321 = vmul.f32 %v1186, %v1305
  %v1322 = vmul.f32 %v1187, %v1305
  %v1323 = vmul.f32 %v1188, %v1305
  %v1324 = vmul.f32 %v1189, %v1305
  %v1325 = vmul.f32 %v1190, %v1305
  %v1326 = vmul.f32 %v1191, %v1305
  %v1327 = vmul.f32 %v1192, %v1305
  %v1328 = vmul.f32 %v1193, %v1305
  %v1329 = vmul.f32 %v1194, %v1305
  %v1330 = vmul.f32 %v1195, %v1305
  %v1331 = vmul.f32 %v1196, %v1305
  %v1332 = vmul.f32 %v1197, %v1305
  %v1333 = vmul.f32 %v1198, %v1305
  %v1334 = vmul.f32 %v1199, %v1305
  %v1335 = vmul.f32 %v1200, %v1305
  %v1336 = vmul.f32 %v1201, %v1305
  %v1337 = vmul.f32 %v1202, %v1305
  %v1338 = vmul.f32 %v1203, %v1305
  %v1339 = vmul.f32 %v1204, %v1305
  %v1340 = vmul.f32 %v1205, %v1305
  %v1341 = vmul.f32 %v1206, %v1305
  %v1342 = vmul.f32 %v1207, %v1305
  %v1343 = vmul.f32 %v1208, %v1305
  %v1344 = vmul.f32 %v1209, %v1305
  %v1345 = vmul.f32 %v1210, %v1305
  %v1346 = vmul.f32 %v1211, %v1305
  %v1347 = vmul.f32 %v1212, %v1305
  %v1348 = vmul.f32 %v1213, %v1305
  %v1349 = vmul.f32 %v1214, %v1305
  %v1350 = vmul.f32 %v1215, %v1305
  %v1351 = vmul.f32 %v1216, %v1305
  %v1352 = vmul.f32 %v1217, %v1305
  %v1353 = vmul.f32 %v1218, %v1305
  %v1354 = vmul.f32 %v1219, %v1305
  %v1355 = vmul.f32 %v1220, %v1305
  %v1356 = vmul.f32 %v1221, %v1305
  %v1357 = vmul.f32 %v1222, %v1305
  %v1358 = vmul.f32 %v1223, %v1305
  %v1359 = vmul.f32 %v1224, %v1305
  %v1360 = vmul.f32 %v1225, %v1305
  %v1361 = vmul.f32 %v1226, %v1305
  %v1362 = vmul.f32 %v1227, %v1305
  %v1363 = vmul.f32 %v1228, %v1305
  %v1364 = vmul.f32 %v1229, %v1305
  %v1365 = vmul.f32 %v1230, %v1305
  %v1366 = vmul.f32 %v1231, %v1305
  %v1367 = vmul.f32 %v1232, %v1305
  %v1368 = vmul.f32 %v1233, %v1305
  %v1369 = vmul.f32 %v1234, %v1305
  %v1370 = vmul.f32 %v1235, %v1305
  %v1371 = vmul.f32 %v1236, %v1305
  %v1372 = vmul.f32 %v1237, %v1305
  %v1373 = vmul.f32 %v1238, %v1305
  %v1374 = vmul.f32 %v1239, %v1305
  %v1375 = vmul.f32 %v1240, %v1305
  %v1376 = vmul.f32 %v1241, %v1305
  %v1377 = vmul.f32 %v1242, %v1305
  %v1378 = vmul.f32 %v1243, %v1305
  %v1379 = vmul.f32 %v1244, %v1305
  %v1380 = vmul.f32 %v1245, %v1305
  %v1381 = vmul.f32 %v1246, %v1305
  %v1382 = vmul.f32 %v1247, %v1305
  %v1383 = vmul.f32 %v1248, %v1305
  %v1384 = vmul.f32 %v1249, %v1305
  %v1385 = vmul.f32 %v1250, %v1305
  %v1386 = vmul.f32 %v1251, %v1305
  %v1387 = vmul.f32 %v1252, %v1305
  %v1388 = vmul.f32 %v1253, %v1305
  %v1389 = vmul.f32 %v1254, %v1305
  %v1390 = vmul.f32 %v1255, %v1305
  %v1391 = vmul.f32 %v1256, %v1305
  %v1392 = vmul.f32 %v1257, %v1305
  %v1393 = vmul.f32 %v1258, %v1305
  %v1394 = vmul.f32 %v1259, %v1305
  %v1395 = vmul.f32 %v1260, %v1305
  %v1396 = vmul.f32 %v1261, %v1305
  %v1397 = vmul.f32 %v1262, %v1305
  %v1398 = vmul.f32 %v1263, %v1305
  %v1399 = vmul.f32 %v1264, %v1305
  %v1400 = vmul.f32 %v1265, %v1305
  %v1401 = vmul.f32 %v1266, %v1305
  %v1402 = vmul.f32 %v1267, %v1305
  %v1403 = vmul.f32 %v1268, %v1305
  %v1404 = vmul.f32 %v1269, %v1305
  %v1405 = vmul.f32 %v1270, %v1305
  %v1406 = vmul.f32 %v1271, %v1305
  %v1407 = vmul.f32 %v1272, %v1305
  %v1408 = vmul.f32 %v1273, %v1305
  %v1409 = vmul.f32 %v1274, %v1305
  %v1410 = vmul.f32 %v1275, %v1305
  %v1411 = vmul.f32 %v1276, %v1305
  %v1412 = vmul.f32 %v1277, %v1305
  %v1413 = vmul.f32 %v1278, %v1305
  %v1414 = vmul.f32 %v1279, %v1305
  %v1415 = vmul.f32 %v1280, %v1305
  %v1416 = vmul.f32 %v1281, %v1305
  %v1417 = vmul.f32 %v1282, %v1305
  %v1418 = vmul.f32 %v1283, %v1305
  %v1419 = vmul.f32 %v1284, %v1305
  %v1420 = vmul.f32 %v1285, %v1305
  %v1421 = vmul.f32 %v1286, %v1305
  %v1422 = vmul.f32 %v1287, %v1305
  %v1423 = vmul.f32 %v1288, %v1305
  %v1424 = vmul.f32 %v1289, %v1305
  %v1425 = vmul.f32 %v1290, %v1305
  %v1426 = vmul.f32 %v1291, %v1305
  %v1427 = vmul.f32 %v1292, %v1305
  %v1428 = vmul.f32 %v1293, %v1305
  %v1429 = vmul.f32 %v1294, %v1305
  %v1430 = vmul.f32 %v1295, %v1305
  %v1431 = vmul.f32 %v1296, %v1305
  %v1432 = vmul.f32 %v1297, %v1305
  %v1433 = vmul.f32 %v1298, %v1305
  %v1434 = vmul.f32 %v1299, %v1305
  %v1435 = vsel %vm159, %v1307, 0.0
  %1436 = vadd.xlane.f32.xlu0 %v1435
  %v1437 = vpop.xlane.xlu0 %1436
  %v1438 = vsel %vm159, %v1308, 0.0
  %1439 = vadd.xlane.f32.xlu0 %v1438
  %v1440 = vpop.xlane.xlu0 %1439
  %v1441 = vsel %vm159, %v1309, 0.0
  %1442 = vadd.xlane.f32.xlu0 %v1441
  %v1443 = vpop.xlane.xlu0 %1442
  %v1444 = vsel %vm159, %v1310, 0.0
  %1445 = vadd.xlane.f32.xlu0 %v1444
  %v1446 = vpop.xlane.xlu0 %1445
  %v1447 = vsel %vm159, %v1311, 0.0
  %1448 = vadd.xlane.f32.xlu0 %v1447
  %v1449 = vpop.xlane.xlu0 %1448
  %v1450 = vsel %vm159, %v1312, 0.0
  %1451 = vadd.xlane.f32.xlu0 %v1450
  %v1452 = vpop.xlane.xlu0 %1451
  %v1453 = vsel %vm159, %v1313, 0.0
  %1454 = vadd.xlane.f32.xlu0 %v1453
  %v1455 = vpop.xlane.xlu0 %1454
  %v1456 = vsel %vm159, %v1314, 0.0
  %1457 = vadd.xlane.f32.xlu0 %v1456
  %v1458 = vpop.xlane.xlu0 %1457
  %v1459 = vsel %vm159, %v1315, 0.0
  %1460 = vadd.xlane.f32.xlu0 %v1459
  %v1461 = vpop.xlane.xlu0 %1460
  %v1462 = vsel %vm159, %v1316, 0.0
  %1463 = vadd.xlane.f32.xlu0 %v1462
  %v1464 = vpop.xlane.xlu0 %1463
  %v1465 = vsel %vm159, %v1317, 0.0
  %1466 = vadd.xlane.f32.xlu0 %v1465
  %v1467 = vpop.xlane.xlu0 %1466
  %v1468 = vsel %vm159, %v1318, 0.0
  %1469 = vadd.xlane.f32.xlu0 %v1468
  %v1470 = vpop.xlane.xlu0 %1469
  %v1471 = vsel %vm159, %v1319, 0.0
  %1472 = vadd.xlane.f32.xlu0 %v1471
  %v1473 = vpop.xlane.xlu0 %1472
  %v1474 = vsel %vm159, %v1320, 0.0
  %1475 = vadd.xlane.f32.xlu0 %v1474
  %v1476 = vpop.xlane.xlu0 %1475
  %v1477 = vsel %vm159, %v1321, 0.0
  %1478 = vadd.xlane.f32.xlu0 %v1477
  %v1479 = vpop.xlane.xlu0 %1478
  %v1480 = vsel %vm159, %v1322, 0.0
  %1481 = vadd.xlane.f32.xlu0 %v1480
  %v1482 = vpop.xlane.xlu0 %1481
  %v1483 = vsel %vm159, %v1323, 0.0
  %1484 = vadd.xlane.f32.xlu0 %v1483
  %v1485 = vpop.xlane.xlu0 %1484
  %v1486 = vsel %vm159, %v1324, 0.0
  %1487 = vadd.xlane.f32.xlu0 %v1486
  %v1488 = vpop.xlane.xlu0 %1487
  %v1489 = vsel %vm159, %v1325, 0.0
  %1490 = vadd.xlane.f32.xlu0 %v1489
  %v1491 = vpop.xlane.xlu0 %1490
  %v1492 = vsel %vm159, %v1326, 0.0
  %1493 = vadd.xlane.f32.xlu0 %v1492
  %v1494 = vpop.xlane.xlu0 %1493
  %v1495 = vsel %vm159, %v1327, 0.0
  %1496 = vadd.xlane.f32.xlu0 %v1495
  %v1497 = vpop.xlane.xlu0 %1496
  %v1498 = vsel %vm159, %v1328, 0.0
  %1499 = vadd.xlane.f32.xlu0 %v1498
  %v1500 = vpop.xlane.xlu0 %1499
  %v1501 = vsel %vm159, %v1329, 0.0
  %1502 = vadd.xlane.f32.xlu0 %v1501
  %v1503 = vpop.xlane.xlu0 %1502
  %v1504 = vsel %vm159, %v1330, 0.0
  %1505 = vadd.xlane.f32.xlu0 %v1504
  %v1506 = vpop.xlane.xlu0 %1505
  %v1507 = vsel %vm159, %v1331, 0.0
  %1508 = vadd.xlane.f32.xlu0 %v1507
  %v1509 = vpop.xlane.xlu0 %1508
  %v1510 = vsel %vm159, %v1332, 0.0
  %1511 = vadd.xlane.f32.xlu0 %v1510
  %v1512 = vpop.xlane.xlu0 %1511
  %v1513 = vsel %vm159, %v1333, 0.0
  %1514 = vadd.xlane.f32.xlu0 %v1513
  %v1515 = vpop.xlane.xlu0 %1514
  %v1516 = vsel %vm159, %v1334, 0.0
  %1517 = vadd.xlane.f32.xlu0 %v1516
  %v1518 = vpop.xlane.xlu0 %1517
  %v1519 = vsel %vm159, %v1335, 0.0
  %1520 = vadd.xlane.f32.xlu0 %v1519
  %v1521 = vpop.xlane.xlu0 %1520
  %v1522 = vsel %vm159, %v1336, 0.0
  %1523 = vadd.xlane.f32.xlu0 %v1522
  %v1524 = vpop.xlane.xlu0 %1523
  %v1525 = vsel %vm159, %v1337, 0.0
  %1526 = vadd.xlane.f32.xlu0 %v1525
  %v1527 = vpop.xlane.xlu0 %1526
  %v1528 = vsel %vm159, %v1338, 0.0
  %1529 = vadd.xlane.f32.xlu0 %v1528
  %v1530 = vpop.xlane.xlu0 %1529
  %v1531 = vsel %vm159, %v1339, 0.0
  %1532 = vadd.xlane.f32.xlu0 %v1531
  %v1533 = vpop.xlane.xlu0 %1532
  %v1534 = vsel %vm159, %v1340, 0.0
  %1535 = vadd.xlane.f32.xlu0 %v1534
  %v1536 = vpop.xlane.xlu0 %1535
  %v1537 = vsel %vm159, %v1341, 0.0
  %1538 = vadd.xlane.f32.xlu0 %v1537
  %v1539 = vpop.xlane.xlu0 %1538
  %v1540 = vsel %vm159, %v1342, 0.0
  %1541 = vadd.xlane.f32.xlu0 %v1540
  %v1542 = vpop.xlane.xlu0 %1541
  %v1543 = vsel %vm159, %v1343, 0.0
  %1544 = vadd.xlane.f32.xlu0 %v1543
  %v1545 = vpop.xlane.xlu0 %1544
  %v1546 = vsel %vm159, %v1344, 0.0
  %1547 = vadd.xlane.f32.xlu0 %v1546
  %v1548 = vpop.xlane.xlu0 %1547
  %v1549 = vsel %vm159, %v1345, 0.0
  %1550 = vadd.xlane.f32.xlu0 %v1549
  %v1551 = vpop.xlane.xlu0 %1550
  %v1552 = vsel %vm159, %v1346, 0.0
  %1553 = vadd.xlane.f32.xlu0 %v1552
  %v1554 = vpop.xlane.xlu0 %1553
  %v1555 = vsel %vm159, %v1347, 0.0
  %1556 = vadd.xlane.f32.xlu0 %v1555
  %v1557 = vpop.xlane.xlu0 %1556
  %v1558 = vsel %vm159, %v1348, 0.0
  %1559 = vadd.xlane.f32.xlu0 %v1558
  %v1560 = vpop.xlane.xlu0 %1559
  %v1561 = vsel %vm159, %v1349, 0.0
  %1562 = vadd.xlane.f32.xlu0 %v1561
  %v1563 = vpop.xlane.xlu0 %1562
  %v1564 = vsel %vm159, %v1350, 0.0
  %1565 = vadd.xlane.f32.xlu0 %v1564
  %v1566 = vpop.xlane.xlu0 %1565
  %v1567 = vsel %vm159, %v1351, 0.0
  %1568 = vadd.xlane.f32.xlu0 %v1567
  %v1569 = vpop.xlane.xlu0 %1568
  %v1570 = vsel %vm159, %v1352, 0.0
  %1571 = vadd.xlane.f32.xlu0 %v1570
  %v1572 = vpop.xlane.xlu0 %1571
  %v1573 = vsel %vm159, %v1353, 0.0
  %1574 = vadd.xlane.f32.xlu0 %v1573
  %v1575 = vpop.xlane.xlu0 %1574
  %v1576 = vsel %vm159, %v1354, 0.0
  %1577 = vadd.xlane.f32.xlu0 %v1576
  %v1578 = vpop.xlane.xlu0 %1577
  %v1579 = vsel %vm159, %v1355, 0.0
  %1580 = vadd.xlane.f32.xlu0 %v1579
  %v1581 = vpop.xlane.xlu0 %1580
  %v1582 = vsel %vm159, %v1356, 0.0
  %1583 = vadd.xlane.f32.xlu0 %v1582
  %v1584 = vpop.xlane.xlu0 %1583
  %v1585 = vsel %vm159, %v1357, 0.0
  %1586 = vadd.xlane.f32.xlu0 %v1585
  %v1587 = vpop.xlane.xlu0 %1586
  %v1588 = vsel %vm159, %v1358, 0.0
  %1589 = vadd.xlane.f32.xlu0 %v1588
  %v1590 = vpop.xlane.xlu0 %1589
  %v1591 = vsel %vm159, %v1359, 0.0
  %1592 = vadd.xlane.f32.xlu0 %v1591
  %v1593 = vpop.xlane.xlu0 %1592
  %v1594 = vsel %vm159, %v1360, 0.0
  %1595 = vadd.xlane.f32.xlu0 %v1594
  %v1596 = vpop.xlane.xlu0 %1595
  %v1597 = vsel %vm159, %v1361, 0.0
  %1598 = vadd.xlane.f32.xlu0 %v1597
  %v1599 = vpop.xlane.xlu0 %1598
  %v1600 = vsel %vm159, %v1362, 0.0
  %1601 = vadd.xlane.f32.xlu0 %v1600
  %v1602 = vpop.xlane.xlu0 %1601
  %v1603 = vsel %vm159, %v1363, 0.0
  %1604 = vadd.xlane.f32.xlu0 %v1603
  %v1605 = vpop.xlane.xlu0 %1604
  %v1606 = vsel %vm159, %v1364, 0.0
  %1607 = vadd.xlane.f32.xlu0 %v1606
  %v1608 = vpop.xlane.xlu0 %1607
  %v1609 = vsel %vm159, %v1365, 0.0
  %1610 = vadd.xlane.f32.xlu0 %v1609
  %v1611 = vpop.xlane.xlu0 %1610
  %v1612 = vsel %vm159, %v1366, 0.0
  %1613 = vadd.xlane.f32.xlu0 %v1612
  %v1614 = vpop.xlane.xlu0 %1613
  %v1615 = vsel %vm159, %v1367, 0.0
  %1616 = vadd.xlane.f32.xlu0 %v1615
  %v1617 = vpop.xlane.xlu0 %1616
  %v1618 = vsel %vm159, %v1368, 0.0
  %1619 = vadd.xlane.f32.xlu0 %v1618
  %v1620 = vpop.xlane.xlu0 %1619
  %v1621 = vsel %vm159, %v1369, 0.0
  %1622 = vadd.xlane.f32.xlu0 %v1621
  %v1623 = vpop.xlane.xlu0 %1622
  %v1624 = vsel %vm159, %v1370, 0.0
  %1625 = vadd.xlane.f32.xlu0 %v1624
  %v1626 = vpop.xlane.xlu0 %1625
  %v1627 = vsel %vm159, %v1371, 0.0
  %1628 = vadd.xlane.f32.xlu0 %v1627
  %v1629 = vpop.xlane.xlu0 %1628
  %v1630 = vsel %vm159, %v1372, 0.0
  %1631 = vadd.xlane.f32.xlu0 %v1630
  %v1632 = vpop.xlane.xlu0 %1631
  %v1633 = vsel %vm159, %v1373, 0.0
  %1634 = vadd.xlane.f32.xlu0 %v1633
  %v1635 = vpop.xlane.xlu0 %1634
  %v1636 = vsel %vm159, %v1374, 0.0
  %1637 = vadd.xlane.f32.xlu0 %v1636
  %v1638 = vpop.xlane.xlu0 %1637
  %v1639 = vsel %vm159, %v1375, 0.0
  %1640 = vadd.xlane.f32.xlu0 %v1639
  %v1641 = vpop.xlane.xlu0 %1640
  %v1642 = vsel %vm159, %v1376, 0.0
  %1643 = vadd.xlane.f32.xlu0 %v1642
  %v1644 = vpop.xlane.xlu0 %1643
  %v1645 = vsel %vm159, %v1377, 0.0
  %1646 = vadd.xlane.f32.xlu0 %v1645
  %v1647 = vpop.xlane.xlu0 %1646
  %v1648 = vsel %vm159, %v1378, 0.0
  %1649 = vadd.xlane.f32.xlu0 %v1648
  %v1650 = vpop.xlane.xlu0 %1649
  %v1651 = vsel %vm159, %v1379, 0.0
  %1652 = vadd.xlane.f32.xlu0 %v1651
  %v1653 = vpop.xlane.xlu0 %1652
  %v1654 = vsel %vm159, %v1380, 0.0
  %1655 = vadd.xlane.f32.xlu0 %v1654
  %v1656 = vpop.xlane.xlu0 %1655
  %v1657 = vsel %vm159, %v1381, 0.0
  %1658 = vadd.xlane.f32.xlu0 %v1657
  %v1659 = vpop.xlane.xlu0 %1658
  %v1660 = vsel %vm159, %v1382, 0.0
  %1661 = vadd.xlane.f32.xlu0 %v1660
  %v1662 = vpop.xlane.xlu0 %1661
  %v1663 = vsel %vm159, %v1383, 0.0
  %1664 = vadd.xlane.f32.xlu0 %v1663
  %v1665 = vpop.xlane.xlu0 %1664
  %v1666 = vsel %vm159, %v1384, 0.0
  %1667 = vadd.xlane.f32.xlu0 %v1666
  %v1668 = vpop.xlane.xlu0 %1667
  %v1669 = vsel %vm159, %v1385, 0.0
  %1670 = vadd.xlane.f32.xlu0 %v1669
  %v1671 = vpop.xlane.xlu0 %1670
  %v1672 = vsel %vm159, %v1386, 0.0
  %1673 = vadd.xlane.f32.xlu0 %v1672
  %v1674 = vpop.xlane.xlu0 %1673
  %v1675 = vsel %vm159, %v1387, 0.0
  %1676 = vadd.xlane.f32.xlu0 %v1675
  %v1677 = vpop.xlane.xlu0 %1676
  %v1678 = vsel %vm159, %v1388, 0.0
  %1679 = vadd.xlane.f32.xlu0 %v1678
  %v1680 = vpop.xlane.xlu0 %1679
  %v1681 = vsel %vm159, %v1389, 0.0
  %1682 = vadd.xlane.f32.xlu0 %v1681
  %v1683 = vpop.xlane.xlu0 %1682
  %v1684 = vsel %vm159, %v1390, 0.0
  %1685 = vadd.xlane.f32.xlu0 %v1684
  %v1686 = vpop.xlane.xlu0 %1685
  %v1687 = vsel %vm159, %v1391, 0.0
  %1688 = vadd.xlane.f32.xlu0 %v1687
  %v1689 = vpop.xlane.xlu0 %1688
  %v1690 = vsel %vm159, %v1392, 0.0
  %1691 = vadd.xlane.f32.xlu0 %v1690
  %v1692 = vpop.xlane.xlu0 %1691
  %v1693 = vsel %vm159, %v1393, 0.0
  %1694 = vadd.xlane.f32.xlu0 %v1693
  %v1695 = vpop.xlane.xlu0 %1694
  %v1696 = vsel %vm159, %v1394, 0.0
  %1697 = vadd.xlane.f32.xlu0 %v1696
  %v1698 = vpop.xlane.xlu0 %1697
  %v1699 = vsel %vm159, %v1395, 0.0
  %1700 = vadd.xlane.f32.xlu0 %v1699
  %v1701 = vpop.xlane.xlu0 %1700
  %v1702 = vsel %vm159, %v1396, 0.0
  %1703 = vadd.xlane.f32.xlu0 %v1702
  %v1704 = vpop.xlane.xlu0 %1703
  %v1705 = vsel %vm159, %v1397, 0.0
  %1706 = vadd.xlane.f32.xlu0 %v1705
  %v1707 = vpop.xlane.xlu0 %1706
  %v1708 = vsel %vm159, %v1398, 0.0
  %1709 = vadd.xlane.f32.xlu0 %v1708
  %v1710 = vpop.xlane.xlu0 %1709
  %v1711 = vsel %vm159, %v1399, 0.0
  %1712 = vadd.xlane.f32.xlu0 %v1711
  %v1713 = vpop.xlane.xlu0 %1712
  %v1714 = vsel %vm159, %v1400, 0.0
  %1715 = vadd.xlane.f32.xlu0 %v1714
  %v1716 = vpop.xlane.xlu0 %1715
  %v1717 = vsel %vm159, %v1401, 0.0
  %1718 = vadd.xlane.f32.xlu0 %v1717
  %v1719 = vpop.xlane.xlu0 %1718
  %v1720 = vsel %vm159, %v1402, 0.0
  %1721 = vadd.xlane.f32.xlu0 %v1720
  %v1722 = vpop.xlane.xlu0 %1721
  %v1723 = vsel %vm159, %v1403, 0.0
  %1724 = vadd.xlane.f32.xlu0 %v1723
  %v1725 = vpop.xlane.xlu0 %1724
  %v1726 = vsel %vm159, %v1404, 0.0
  %1727 = vadd.xlane.f32.xlu0 %v1726
  %v1728 = vpop.xlane.xlu0 %1727
  %v1729 = vsel %vm159, %v1405, 0.0
  %1730 = vadd.xlane.f32.xlu0 %v1729
  %v1731 = vpop.xlane.xlu0 %1730
  %v1732 = vsel %vm159, %v1406, 0.0
  %1733 = vadd.xlane.f32.xlu0 %v1732
  %v1734 = vpop.xlane.xlu0 %1733
  %v1735 = vsel %vm159, %v1407, 0.0
  %1736 = vadd.xlane.f32.xlu0 %v1735
  %v1737 = vpop.xlane.xlu0 %1736
  %v1738 = vsel %vm159, %v1408, 0.0
  %1739 = vadd.xlane.f32.xlu0 %v1738
  %v1740 = vpop.xlane.xlu0 %1739
  %v1741 = vsel %vm159, %v1409, 0.0
  %1742 = vadd.xlane.f32.xlu0 %v1741
  %v1743 = vpop.xlane.xlu0 %1742
  %v1744 = vsel %vm159, %v1410, 0.0
  %1745 = vadd.xlane.f32.xlu0 %v1744
  %v1746 = vpop.xlane.xlu0 %1745
  %v1747 = vsel %vm159, %v1411, 0.0
  %1748 = vadd.xlane.f32.xlu0 %v1747
  %v1749 = vpop.xlane.xlu0 %1748
  %v1750 = vsel %vm159, %v1412, 0.0
  %1751 = vadd.xlane.f32.xlu0 %v1750
  %v1752 = vpop.xlane.xlu0 %1751
  %v1753 = vsel %vm159, %v1413, 0.0
  %1754 = vadd.xlane.f32.xlu0 %v1753
  %v1755 = vpop.xlane.xlu0 %1754
  %v1756 = vsel %vm159, %v1414, 0.0
  %1757 = vadd.xlane.f32.xlu0 %v1756
  %v1758 = vpop.xlane.xlu0 %1757
  %v1759 = vsel %vm159, %v1415, 0.0
  %1760 = vadd.xlane.f32.xlu0 %v1759
  %v1761 = vpop.xlane.xlu0 %1760
  %v1762 = vsel %vm159, %v1416, 0.0
  %1763 = vadd.xlane.f32.xlu0 %v1762
  %v1764 = vpop.xlane.xlu0 %1763
  %v1765 = vsel %vm159, %v1417, 0.0
  %1766 = vadd.xlane.f32.xlu0 %v1765
  %v1767 = vpop.xlane.xlu0 %1766
  %v1768 = vsel %vm159, %v1418, 0.0
  %1769 = vadd.xlane.f32.xlu0 %v1768
  %v1770 = vpop.xlane.xlu0 %1769
  %v1771 = vsel %vm159, %v1419, 0.0
  %1772 = vadd.xlane.f32.xlu0 %v1771
  %v1773 = vpop.xlane.xlu0 %1772
  %v1774 = vsel %vm159, %v1420, 0.0
  %1775 = vadd.xlane.f32.xlu0 %v1774
  %v1776 = vpop.xlane.xlu0 %1775
  %v1777 = vsel %vm159, %v1421, 0.0
  %1778 = vadd.xlane.f32.xlu0 %v1777
  %v1779 = vpop.xlane.xlu0 %1778
  %v1780 = vsel %vm159, %v1422, 0.0
  %1781 = vadd.xlane.f32.xlu0 %v1780
  %v1782 = vpop.xlane.xlu0 %1781
  %v1783 = vsel %vm159, %v1423, 0.0
  %1784 = vadd.xlane.f32.xlu0 %v1783
  %v1785 = vpop.xlane.xlu0 %1784
  %v1786 = vsel %vm159, %v1424, 0.0
  %1787 = vadd.xlane.f32.xlu0 %v1786
  %v1788 = vpop.xlane.xlu0 %1787
  %v1789 = vsel %vm159, %v1425, 0.0
  %1790 = vadd.xlane.f32.xlu0 %v1789
  %v1791 = vpop.xlane.xlu0 %1790
  %v1792 = vsel %vm159, %v1426, 0.0
  %1793 = vadd.xlane.f32.xlu0 %v1792
  %v1794 = vpop.xlane.xlu0 %1793
  %v1795 = vsel %vm159, %v1427, 0.0
  %1796 = vadd.xlane.f32.xlu0 %v1795
  %v1797 = vpop.xlane.xlu0 %1796
  %v1798 = vsel %vm159, %v1428, 0.0
  %1799 = vadd.xlane.f32.xlu0 %v1798
  %v1800 = vpop.xlane.xlu0 %1799
  %v1801 = vsel %vm159, %v1429, 0.0
  %1802 = vadd.xlane.f32.xlu0 %v1801
  %v1803 = vpop.xlane.xlu0 %1802
  %v1804 = vsel %vm159, %v1430, 0.0
  %1805 = vadd.xlane.f32.xlu0 %v1804
  %v1806 = vpop.xlane.xlu0 %1805
  %v1807 = vsel %vm159, %v1431, 0.0
  %1808 = vadd.xlane.f32.xlu0 %v1807
  %v1809 = vpop.xlane.xlu0 %1808
  %v1810 = vsel %vm159, %v1432, 0.0
  %1811 = vadd.xlane.f32.xlu0 %v1810
  %v1812 = vpop.xlane.xlu0 %1811
  %v1813 = vsel %vm159, %v1433, 0.0
  %1814 = vadd.xlane.f32.xlu0 %v1813
  %v1815 = vpop.xlane.xlu0 %1814
  %v1816 = vsel %vm159, %v1434, 0.0
  %1817 = vadd.xlane.f32.xlu0 %v1816
  %v1818 = vpop.xlane.xlu0 %1817
  %vm1819 = vcmp.gt.f32.partialorder %v154, 0.5
  %v1948 = vlaneseq
  %v1949 = vand.u32 %v1948, 127
  %v1950 = vlaneseq
  %v1951 = vshrl.u32 %v1950, 7
  %v1952 = vsub.s32 %v1949, %v1951
  %v1953 = vrot.slane %v1437, %v1952
  %v1954 = vadd.s32 %v1949, 4294967288
  %v1955 = vlaneseq
  %v1956 = vshrl.u32 %v1955, 7
  %v1957 = vsub.s32 %v1954, %v1956
  %v1958 = vrot.slane %v1440, %v1957
  %vm1959 = vcmask 130112
  %v1960 = vsel %vm1959, %v1958, %v1953
  %v1961 = vadd.s32 %v1949, 4294967280
  %v1962 = vlaneseq
  %v1963 = vshrl.u32 %v1962, 7
  %v1964 = vsub.s32 %v1961, %v1963
  %v1965 = vrot.slane %v1443, %v1964
  %vm1966 = vcmask 195712
  %v1967 = vsel %vm1966, %v1965, %v1960
  %v1968 = vadd.s32 %v1949, 4294967272
  %v1969 = vlaneseq
  %v1970 = vshrl.u32 %v1969, 7
  %v1971 = vsub.s32 %v1968, %v1970
  %v1972 = vrot.slane %v1446, %v1971
  %vm1973 = vcmask 261312
  %v1974 = vsel %vm1973, %v1972, %v1967
  %v1975 = vadd.s32 %v1949, 4294967264
  %v1976 = vlaneseq
  %v1977 = vshrl.u32 %v1976, 7
  %v1978 = vsub.s32 %v1975, %v1977
  %v1979 = vrot.slane %v1449, %v1978
  %vm1980 = vcmask 326912
  %v1981 = vsel %vm1980, %v1979, %v1974
  %v1982 = vadd.s32 %v1949, 4294967256
  %v1983 = vlaneseq
  %v1984 = vshrl.u32 %v1983, 7
  %v1985 = vsub.s32 %v1982, %v1984
  %v1986 = vrot.slane %v1452, %v1985
  %vm1987 = vcmask 392512
  %v1988 = vsel %vm1987, %v1986, %v1981
  %v1989 = vadd.s32 %v1949, 4294967248
  %v1990 = vlaneseq
  %v1991 = vshrl.u32 %v1990, 7
  %v1992 = vsub.s32 %v1989, %v1991
  %v1993 = vrot.slane %v1455, %v1992
  %vm1994 = vcmask 458112
  %v1995 = vsel %vm1994, %v1993, %v1988
  %v1996 = vadd.s32 %v1949, 4294967240
  %v1997 = vlaneseq
  %v1998 = vshrl.u32 %v1997, 7
  %v1999 = vsub.s32 %v1996, %v1998
  %v2000 = vrot.slane %v1458, %v1999
  %vm2001 = vcmask 523712
  %v2002 = vsel %vm2001, %v2000, %v1995
  %v2003 = vadd.s32 %v1949, 4294967232
  %v2004 = vlaneseq
  %v2005 = vshrl.u32 %v2004, 7
  %v2006 = vsub.s32 %v2003, %v2005
  %v2007 = vrot.slane %v1461, %v2006
  %vm2008 = vcmask 589312
  %v2009 = vsel %vm2008, %v2007, %v2002
  %v2010 = vadd.s32 %v1949, 4294967224
  %v2011 = vlaneseq
  %v2012 = vshrl.u32 %v2011, 7
  %v2013 = vsub.s32 %v2010, %v2012
  %v2014 = vrot.slane %v1464, %v2013
  %vm2015 = vcmask 654912
  %v2016 = vsel %vm2015, %v2014, %v2009
  %v2017 = vadd.s32 %v1949, 4294967216
  %v2018 = vlaneseq
  %v2019 = vshrl.u32 %v2018, 7
  %v2020 = vsub.s32 %v2017, %v2019
  %v2021 = vrot.slane %v1467, %v2020
  %vm2022 = vcmask 720512
  %v2023 = vsel %vm2022, %v2021, %v2016
  %v2024 = vadd.s32 %v1949, 4294967208
  %v2025 = vlaneseq
  %v2026 = vshrl.u32 %v2025, 7
  %v2027 = vsub.s32 %v2024, %v2026
  %v2028 = vrot.slane %v1470, %v2027
  %vm2029 = vcmask 786112
  %v2030 = vsel %vm2029, %v2028, %v2023
  %v2031 = vadd.s32 %v1949, 4294967200
  %v2032 = vlaneseq
  %v2033 = vshrl.u32 %v2032, 7
  %v2034 = vsub.s32 %v2031, %v2033
  %v2035 = vrot.slane %v1473, %v2034
  %vm2036 = vcmask 851712
  %v2037 = vsel %vm2036, %v2035, %v2030
  %v2038 = vadd.s32 %v1949, 4294967192
  %v2039 = vlaneseq
  %v2040 = vshrl.u32 %v2039, 7
  %v2041 = vsub.s32 %v2038, %v2040
  %v2042 = vrot.slane %v1476, %v2041
  %vm2043 = vcmask 917312
  %v2044 = vsel %vm2043, %v2042, %v2037
  %v2045 = vadd.s32 %v1949, 4294967184
  %v2046 = vlaneseq
  %v2047 = vshrl.u32 %v2046, 7
  %v2048 = vsub.s32 %v2045, %v2047
  %v2049 = vrot.slane %v1479, %v2048
  %vm2050 = vcmask 982912
  %v2051 = vsel %vm2050, %v2049, %v2044
  %v2052 = vadd.s32 %v1949, 4294967176
  %v2053 = vlaneseq
  %v2054 = vshrl.u32 %v2053, 7
  %v2055 = vsub.s32 %v2052, %v2054
  %v2056 = vrot.slane %v1482, %v2055
  %vm2057 = vcmask 1048512
  %v2058 = vsel %vm2057, %v2056, %v2051
  %v2059 = vlaneseq
  %v2060 = vshrl.u32 %v2059, 7
  %v2061 = vsub.s32 %v1949, %v2060
  %v2062 = vrot.slane %v1485, %v2061
  %v2063 = vlaneseq
  %v2064 = vshrl.u32 %v2063, 7
  %v2065 = vsub.s32 %v1954, %v2064
  %v2066 = vrot.slane %v1488, %v2065
  %v2067 = vsel %vm1959, %v2066, %v2062
  %v2068 = vlaneseq
  %v2069 = vshrl.u32 %v2068, 7
  %v2070 = vsub.s32 %v1961, %v2069
  %v2071 = vrot.slane %v1491, %v2070
  %v2072 = vsel %vm1966, %v2071, %v2067
  %v2073 = vlaneseq
  %v2074 = vshrl.u32 %v2073, 7
  %v2075 = vsub.s32 %v1968, %v2074
  %v2076 = vrot.slane %v1494, %v2075
  %v2077 = vsel %vm1973, %v2076, %v2072
  %v2078 = vlaneseq
  %v2079 = vshrl.u32 %v2078, 7
  %v2080 = vsub.s32 %v1975, %v2079
  %v2081 = vrot.slane %v1497, %v2080
  %v2082 = vsel %vm1980, %v2081, %v2077
  %v2083 = vlaneseq
  %v2084 = vshrl.u32 %v2083, 7
  %v2085 = vsub.s32 %v1982, %v2084
  %v2086 = vrot.slane %v1500, %v2085
  %v2087 = vsel %vm1987, %v2086, %v2082
  %v2088 = vlaneseq
  %v2089 = vshrl.u32 %v2088, 7
  %v2090 = vsub.s32 %v1989, %v2089
  %v2091 = vrot.slane %v1503, %v2090
  %v2092 = vsel %vm1994, %v2091, %v2087
  %v2093 = vlaneseq
  %v2094 = vshrl.u32 %v2093, 7
  %v2095 = vsub.s32 %v1996, %v2094
  %v2096 = vrot.slane %v1506, %v2095
  %v2097 = vsel %vm2001, %v2096, %v2092
  %v2098 = vlaneseq
  %v2099 = vshrl.u32 %v2098, 7
  %v2100 = vsub.s32 %v2003, %v2099
  %v2101 = vrot.slane %v1509, %v2100
  %v2102 = vsel %vm2008, %v2101, %v2097
  %v2103 = vlaneseq
  %v2104 = vshrl.u32 %v2103, 7
  %v2105 = vsub.s32 %v2010, %v2104
  %v2106 = vrot.slane %v1512, %v2105
  %v2107 = vsel %vm2015, %v2106, %v2102
  %v2108 = vlaneseq
  %v2109 = vshrl.u32 %v2108, 7
  %v2110 = vsub.s32 %v2017, %v2109
  %v2111 = vrot.slane %v1515, %v2110
  %v2112 = vsel %vm2022, %v2111, %v2107
  %v2113 = vlaneseq
  %v2114 = vshrl.u32 %v2113, 7
  %v2115 = vsub.s32 %v2024, %v2114
  %v2116 = vrot.slane %v1518, %v2115
  %v2117 = vsel %vm2029, %v2116, %v2112
  %v2118 = vlaneseq
  %v2119 = vshrl.u32 %v2118, 7
  %v2120 = vsub.s32 %v2031, %v2119
  %v2121 = vrot.slane %v1521, %v2120
  %v2122 = vsel %vm2036, %v2121, %v2117
  %v2123 = vlaneseq
  %v2124 = vshrl.u32 %v2123, 7
  %v2125 = vsub.s32 %v2038, %v2124
  %v2126 = vrot.slane %v1524, %v2125
  %v2127 = vsel %vm2043, %v2126, %v2122
  %v2128 = vlaneseq
  %v2129 = vshrl.u32 %v2128, 7
  %v2130 = vsub.s32 %v2045, %v2129
  %v2131 = vrot.slane %v1527, %v2130
  %v2132 = vsel %vm2050, %v2131, %v2127
  %v2133 = vlaneseq
  %v2134 = vshrl.u32 %v2133, 7
  %v2135 = vsub.s32 %v2052, %v2134
  %v2136 = vrot.slane %v1530, %v2135
  %v2137 = vsel %vm2057, %v2136, %v2132
  %v2138 = vlaneseq
  %v2139 = vshrl.u32 %v2138, 7
  %v2140 = vsub.s32 %v1949, %v2139
  %v2141 = vrot.slane %v1533, %v2140
  %v2142 = vlaneseq
  %v2143 = vshrl.u32 %v2142, 7
  %v2144 = vsub.s32 %v1954, %v2143
  %v2145 = vrot.slane %v1536, %v2144
  %v2146 = vsel %vm1959, %v2145, %v2141
  %v2147 = vlaneseq
  %v2148 = vshrl.u32 %v2147, 7
  %v2149 = vsub.s32 %v1961, %v2148
  %v2150 = vrot.slane %v1539, %v2149
  %v2151 = vsel %vm1966, %v2150, %v2146
  %v2152 = vlaneseq
  %v2153 = vshrl.u32 %v2152, 7
  %v2154 = vsub.s32 %v1968, %v2153
  %v2155 = vrot.slane %v1542, %v2154
  %v2156 = vsel %vm1973, %v2155, %v2151
  %v2157 = vlaneseq
  %v2158 = vshrl.u32 %v2157, 7
  %v2159 = vsub.s32 %v1975, %v2158
  %v2160 = vrot.slane %v1545, %v2159
  %v2161 = vsel %vm1980, %v2160, %v2156
  %v2162 = vlaneseq
  %v2163 = vshrl.u32 %v2162, 7
  %v2164 = vsub.s32 %v1982, %v2163
  %v2165 = vrot.slane %v1548, %v2164
  %v2166 = vsel %vm1987, %v2165, %v2161
  %v2167 = vlaneseq
  %v2168 = vshrl.u32 %v2167, 7
  %v2169 = vsub.s32 %v1989, %v2168
  %v2170 = vrot.slane %v1551, %v2169
  %v2171 = vsel %vm1994, %v2170, %v2166
  %v2172 = vlaneseq
  %v2173 = vshrl.u32 %v2172, 7
  %v2174 = vsub.s32 %v1996, %v2173
  %v2175 = vrot.slane %v1554, %v2174
  %v2176 = vsel %vm2001, %v2175, %v2171
  %v2177 = vlaneseq
  %v2178 = vshrl.u32 %v2177, 7
  %v2179 = vsub.s32 %v2003, %v2178
  %v2180 = vrot.slane %v1557, %v2179
  %v2181 = vsel %vm2008, %v2180, %v2176
  %v2182 = vlaneseq
  %v2183 = vshrl.u32 %v2182, 7
  %v2184 = vsub.s32 %v2010, %v2183
  %v2185 = vrot.slane %v1560, %v2184
  %v2186 = vsel %vm2015, %v2185, %v2181
  %v2187 = vlaneseq
  %v2188 = vshrl.u32 %v2187, 7
  %v2189 = vsub.s32 %v2017, %v2188
  %v2190 = vrot.slane %v1563, %v2189
  %v2191 = vsel %vm2022, %v2190, %v2186
  %v2192 = vlaneseq
  %v2193 = vshrl.u32 %v2192, 7
  %v2194 = vsub.s32 %v2024, %v2193
  %v2195 = vrot.slane %v1566, %v2194
  %v2196 = vsel %vm2029, %v2195, %v2191
  %v2197 = vlaneseq
  %v2198 = vshrl.u32 %v2197, 7
  %v2199 = vsub.s32 %v2031, %v2198
  %v2200 = vrot.slane %v1569, %v2199
  %v2201 = vsel %vm2036, %v2200, %v2196
  %v2202 = vlaneseq
  %v2203 = vshrl.u32 %v2202, 7
  %v2204 = vsub.s32 %v2038, %v2203
  %v2205 = vrot.slane %v1572, %v2204
  %v2206 = vsel %vm2043, %v2205, %v2201
  %v2207 = vlaneseq
  %v2208 = vshrl.u32 %v2207, 7
  %v2209 = vsub.s32 %v2045, %v2208
  %v2210 = vrot.slane %v1575, %v2209
  %v2211 = vsel %vm2050, %v2210, %v2206
  %v2212 = vlaneseq
  %v2213 = vshrl.u32 %v2212, 7
  %v2214 = vsub.s32 %v2052, %v2213
  %v2215 = vrot.slane %v1578, %v2214
  %v2216 = vsel %vm2057, %v2215, %v2211
  %v2217 = vlaneseq
  %v2218 = vshrl.u32 %v2217, 7
  %v2219 = vsub.s32 %v1949, %v2218
  %v2220 = vrot.slane %v1581, %v2219
  %v2221 = vlaneseq
  %v2222 = vshrl.u32 %v2221, 7
  %v2223 = vsub.s32 %v1954, %v2222
  %v2224 = vrot.slane %v1584, %v2223
  %v2225 = vsel %vm1959, %v2224, %v2220
  %v2226 = vlaneseq
  %v2227 = vshrl.u32 %v2226, 7
  %v2228 = vsub.s32 %v1961, %v2227
  %v2229 = vrot.slane %v1587, %v2228
  %v2230 = vsel %vm1966, %v2229, %v2225
  %v2231 = vlaneseq
  %v2232 = vshrl.u32 %v2231, 7
  %v2233 = vsub.s32 %v1968, %v2232
  %v2234 = vrot.slane %v1590, %v2233
  %v2235 = vsel %vm1973, %v2234, %v2230
  %v2236 = vlaneseq
  %v2237 = vshrl.u32 %v2236, 7
  %v2238 = vsub.s32 %v1975, %v2237
  %v2239 = vrot.slane %v1593, %v2238
  %v2240 = vsel %vm1980, %v2239, %v2235
  %v2241 = vlaneseq
  %v2242 = vshrl.u32 %v2241, 7
  %v2243 = vsub.s32 %v1982, %v2242
  %v2244 = vrot.slane %v1596, %v2243
  %v2245 = vsel %vm1987, %v2244, %v2240
  %v2246 = vlaneseq
  %v2247 = vshrl.u32 %v2246, 7
  %v2248 = vsub.s32 %v1989, %v2247
  %v2249 = vrot.slane %v1599, %v2248
  %v2250 = vsel %vm1994, %v2249, %v2245
  %v2251 = vlaneseq
  %v2252 = vshrl.u32 %v2251, 7
  %v2253 = vsub.s32 %v1996, %v2252
  %v2254 = vrot.slane %v1602, %v2253
  %v2255 = vsel %vm2001, %v2254, %v2250
  %v2256 = vlaneseq
  %v2257 = vshrl.u32 %v2256, 7
  %v2258 = vsub.s32 %v2003, %v2257
  %v2259 = vrot.slane %v1605, %v2258
  %v2260 = vsel %vm2008, %v2259, %v2255
  %v2261 = vlaneseq
  %v2262 = vshrl.u32 %v2261, 7
  %v2263 = vsub.s32 %v2010, %v2262
  %v2264 = vrot.slane %v1608, %v2263
  %v2265 = vsel %vm2015, %v2264, %v2260
  %v2266 = vlaneseq
  %v2267 = vshrl.u32 %v2266, 7
  %v2268 = vsub.s32 %v2017, %v2267
  %v2269 = vrot.slane %v1611, %v2268
  %v2270 = vsel %vm2022, %v2269, %v2265
  %v2271 = vlaneseq
  %v2272 = vshrl.u32 %v2271, 7
  %v2273 = vsub.s32 %v2024, %v2272
  %v2274 = vrot.slane %v1614, %v2273
  %v2275 = vsel %vm2029, %v2274, %v2270
  %v2276 = vlaneseq
  %v2277 = vshrl.u32 %v2276, 7
  %v2278 = vsub.s32 %v2031, %v2277
  %v2279 = vrot.slane %v1617, %v2278
  %v2280 = vsel %vm2036, %v2279, %v2275
  %v2281 = vlaneseq
  %v2282 = vshrl.u32 %v2281, 7
  %v2283 = vsub.s32 %v2038, %v2282
  %v2284 = vrot.slane %v1620, %v2283
  %v2285 = vsel %vm2043, %v2284, %v2280
  %v2286 = vlaneseq
  %v2287 = vshrl.u32 %v2286, 7
  %v2288 = vsub.s32 %v2045, %v2287
  %v2289 = vrot.slane %v1623, %v2288
  %v2290 = vsel %vm2050, %v2289, %v2285
  %v2291 = vlaneseq
  %v2292 = vshrl.u32 %v2291, 7
  %v2293 = vsub.s32 %v2052, %v2292
  %v2294 = vrot.slane %v1626, %v2293
  %v2295 = vsel %vm2057, %v2294, %v2290
  %v2296 = vlaneseq
  %v2297 = vshrl.u32 %v2296, 7
  %v2298 = vsub.s32 %v1949, %v2297
  %v2299 = vrot.slane %v1629, %v2298
  %v2300 = vlaneseq
  %v2301 = vshrl.u32 %v2300, 7
  %v2302 = vsub.s32 %v1954, %v2301
  %v2303 = vrot.slane %v1632, %v2302
  %v2304 = vsel %vm1959, %v2303, %v2299
  %v2305 = vlaneseq
  %v2306 = vshrl.u32 %v2305, 7
  %v2307 = vsub.s32 %v1961, %v2306
  %v2308 = vrot.slane %v1635, %v2307
  %v2309 = vsel %vm1966, %v2308, %v2304
  %v2310 = vlaneseq
  %v2311 = vshrl.u32 %v2310, 7
  %v2312 = vsub.s32 %v1968, %v2311
  %v2313 = vrot.slane %v1638, %v2312
  %v2314 = vsel %vm1973, %v2313, %v2309
  %v2315 = vlaneseq
  %v2316 = vshrl.u32 %v2315, 7
  %v2317 = vsub.s32 %v1975, %v2316
  %v2318 = vrot.slane %v1641, %v2317
  %v2319 = vsel %vm1980, %v2318, %v2314
  %v2320 = vlaneseq
  %v2321 = vshrl.u32 %v2320, 7
  %v2322 = vsub.s32 %v1982, %v2321
  %v2323 = vrot.slane %v1644, %v2322
  %v2324 = vsel %vm1987, %v2323, %v2319
  %v2325 = vlaneseq
  %v2326 = vshrl.u32 %v2325, 7
  %v2327 = vsub.s32 %v1989, %v2326
  %v2328 = vrot.slane %v1647, %v2327
  %v2329 = vsel %vm1994, %v2328, %v2324
  %v2330 = vlaneseq
  %v2331 = vshrl.u32 %v2330, 7
  %v2332 = vsub.s32 %v1996, %v2331
  %v2333 = vrot.slane %v1650, %v2332
  %v2334 = vsel %vm2001, %v2333, %v2329
  %v2335 = vlaneseq
  %v2336 = vshrl.u32 %v2335, 7
  %v2337 = vsub.s32 %v2003, %v2336
  %v2338 = vrot.slane %v1653, %v2337
  %v2339 = vsel %vm2008, %v2338, %v2334
  %v2340 = vlaneseq
  %v2341 = vshrl.u32 %v2340, 7
  %v2342 = vsub.s32 %v2010, %v2341
  %v2343 = vrot.slane %v1656, %v2342
  %v2344 = vsel %vm2015, %v2343, %v2339
  %v2345 = vlaneseq
  %v2346 = vshrl.u32 %v2345, 7
  %v2347 = vsub.s32 %v2017, %v2346
  %v2348 = vrot.slane %v1659, %v2347
  %v2349 = vsel %vm2022, %v2348, %v2344
  %v2350 = vlaneseq
  %v2351 = vshrl.u32 %v2350, 7
  %v2352 = vsub.s32 %v2024, %v2351
  %v2353 = vrot.slane %v1662, %v2352
  %v2354 = vsel %vm2029, %v2353, %v2349
  %v2355 = vlaneseq
  %v2356 = vshrl.u32 %v2355, 7
  %v2357 = vsub.s32 %v2031, %v2356
  %v2358 = vrot.slane %v1665, %v2357
  %v2359 = vsel %vm2036, %v2358, %v2354
  %v2360 = vlaneseq
  %v2361 = vshrl.u32 %v2360, 7
  %v2362 = vsub.s32 %v2038, %v2361
  %v2363 = vrot.slane %v1668, %v2362
  %v2364 = vsel %vm2043, %v2363, %v2359
  %v2365 = vlaneseq
  %v2366 = vshrl.u32 %v2365, 7
  %v2367 = vsub.s32 %v2045, %v2366
  %v2368 = vrot.slane %v1671, %v2367
  %v2369 = vsel %vm2050, %v2368, %v2364
  %v2370 = vlaneseq
  %v2371 = vshrl.u32 %v2370, 7
  %v2372 = vsub.s32 %v2052, %v2371
  %v2373 = vrot.slane %v1674, %v2372
  %v2374 = vsel %vm2057, %v2373, %v2369
  %v2375 = vlaneseq
  %v2376 = vshrl.u32 %v2375, 7
  %v2377 = vsub.s32 %v1949, %v2376
  %v2378 = vrot.slane %v1677, %v2377
  %v2379 = vlaneseq
  %v2380 = vshrl.u32 %v2379, 7
  %v2381 = vsub.s32 %v1954, %v2380
  %v2382 = vrot.slane %v1680, %v2381
  %v2383 = vsel %vm1959, %v2382, %v2378
  %v2384 = vlaneseq
  %v2385 = vshrl.u32 %v2384, 7
  %v2386 = vsub.s32 %v1961, %v2385
  %v2387 = vrot.slane %v1683, %v2386
  %v2388 = vsel %vm1966, %v2387, %v2383
  %v2389 = vlaneseq
  %v2390 = vshrl.u32 %v2389, 7
  %v2391 = vsub.s32 %v1968, %v2390
  %v2392 = vrot.slane %v1686, %v2391
  %v2393 = vsel %vm1973, %v2392, %v2388
  %v2394 = vlaneseq
  %v2395 = vshrl.u32 %v2394, 7
  %v2396 = vsub.s32 %v1975, %v2395
  %v2397 = vrot.slane %v1689, %v2396
  %v2398 = vsel %vm1980, %v2397, %v2393
  %v2399 = vlaneseq
  %v2400 = vshrl.u32 %v2399, 7
  %v2401 = vsub.s32 %v1982, %v2400
  %v2402 = vrot.slane %v1692, %v2401
  %v2403 = vsel %vm1987, %v2402, %v2398
  %v2404 = vlaneseq
  %v2405 = vshrl.u32 %v2404, 7
  %v2406 = vsub.s32 %v1989, %v2405
  %v2407 = vrot.slane %v1695, %v2406
  %v2408 = vsel %vm1994, %v2407, %v2403
  %v2409 = vlaneseq
  %v2410 = vshrl.u32 %v2409, 7
  %v2411 = vsub.s32 %v1996, %v2410
  %v2412 = vrot.slane %v1698, %v2411
  %v2413 = vsel %vm2001, %v2412, %v2408
  %v2414 = vlaneseq
  %v2415 = vshrl.u32 %v2414, 7
  %v2416 = vsub.s32 %v2003, %v2415
  %v2417 = vrot.slane %v1701, %v2416
  %v2418 = vsel %vm2008, %v2417, %v2413
  %v2419 = vlaneseq
  %v2420 = vshrl.u32 %v2419, 7
  %v2421 = vsub.s32 %v2010, %v2420
  %v2422 = vrot.slane %v1704, %v2421
  %v2423 = vsel %vm2015, %v2422, %v2418
  %v2424 = vlaneseq
  %v2425 = vshrl.u32 %v2424, 7
  %v2426 = vsub.s32 %v2017, %v2425
  %v2427 = vrot.slane %v1707, %v2426
  %v2428 = vsel %vm2022, %v2427, %v2423
  %v2429 = vlaneseq
  %v2430 = vshrl.u32 %v2429, 7
  %v2431 = vsub.s32 %v2024, %v2430
  %v2432 = vrot.slane %v1710, %v2431
  %v2433 = vsel %vm2029, %v2432, %v2428
  %v2434 = vlaneseq
  %v2435 = vshrl.u32 %v2434, 7
  %v2436 = vsub.s32 %v2031, %v2435
  %v2437 = vrot.slane %v1713, %v2436
  %v2438 = vsel %vm2036, %v2437, %v2433
  %v2439 = vlaneseq
  %v2440 = vshrl.u32 %v2439, 7
  %v2441 = vsub.s32 %v2038, %v2440
  %v2442 = vrot.slane %v1716, %v2441
  %v2443 = vsel %vm2043, %v2442, %v2438
  %v2444 = vlaneseq
  %v2445 = vshrl.u32 %v2444, 7
  %v2446 = vsub.s32 %v2045, %v2445
  %v2447 = vrot.slane %v1719, %v2446
  %v2448 = vsel %vm2050, %v2447, %v2443
  %v2449 = vlaneseq
  %v2450 = vshrl.u32 %v2449, 7
  %v2451 = vsub.s32 %v2052, %v2450
  %v2452 = vrot.slane %v1722, %v2451
  %v2453 = vsel %vm2057, %v2452, %v2448
  %v2454 = vlaneseq
  %v2455 = vshrl.u32 %v2454, 7
  %v2456 = vsub.s32 %v1949, %v2455
  %v2457 = vrot.slane %v1725, %v2456
  %v2458 = vlaneseq
  %v2459 = vshrl.u32 %v2458, 7
  %v2460 = vsub.s32 %v1954, %v2459
  %v2461 = vrot.slane %v1728, %v2460
  %v2462 = vsel %vm1959, %v2461, %v2457
  %v2463 = vlaneseq
  %v2464 = vshrl.u32 %v2463, 7
  %v2465 = vsub.s32 %v1961, %v2464
  %v2466 = vrot.slane %v1731, %v2465
  %v2467 = vsel %vm1966, %v2466, %v2462
  %v2468 = vlaneseq
  %v2469 = vshrl.u32 %v2468, 7
  %v2470 = vsub.s32 %v1968, %v2469
  %v2471 = vrot.slane %v1734, %v2470
  %v2472 = vsel %vm1973, %v2471, %v2467
  %v2473 = vlaneseq
  %v2474 = vshrl.u32 %v2473, 7
  %v2475 = vsub.s32 %v1975, %v2474
  %v2476 = vrot.slane %v1737, %v2475
  %v2477 = vsel %vm1980, %v2476, %v2472
  %v2478 = vlaneseq
  %v2479 = vshrl.u32 %v2478, 7
  %v2480 = vsub.s32 %v1982, %v2479
  %v2481 = vrot.slane %v1740, %v2480
  %v2482 = vsel %vm1987, %v2481, %v2477
  %v2483 = vlaneseq
  %v2484 = vshrl.u32 %v2483, 7
  %v2485 = vsub.s32 %v1989, %v2484
  %v2486 = vrot.slane %v1743, %v2485
  %v2487 = vsel %vm1994, %v2486, %v2482
  %v2488 = vlaneseq
  %v2489 = vshrl.u32 %v2488, 7
  %v2490 = vsub.s32 %v1996, %v2489
  %v2491 = vrot.slane %v1746, %v2490
  %v2492 = vsel %vm2001, %v2491, %v2487
  %v2493 = vlaneseq
  %v2494 = vshrl.u32 %v2493, 7
  %v2495 = vsub.s32 %v2003, %v2494
  %v2496 = vrot.slane %v1749, %v2495
  %v2497 = vsel %vm2008, %v2496, %v2492
  %v2498 = vlaneseq
  %v2499 = vshrl.u32 %v2498, 7
  %v2500 = vsub.s32 %v2010, %v2499
  %v2501 = vrot.slane %v1752, %v2500
  %v2502 = vsel %vm2015, %v2501, %v2497
  %v2503 = vlaneseq
  %v2504 = vshrl.u32 %v2503, 7
  %v2505 = vsub.s32 %v2017, %v2504
  %v2506 = vrot.slane %v1755, %v2505
  %v2507 = vsel %vm2022, %v2506, %v2502
  %v2508 = vlaneseq
  %v2509 = vshrl.u32 %v2508, 7
  %v2510 = vsub.s32 %v2024, %v2509
  %v2511 = vrot.slane %v1758, %v2510
  %v2512 = vsel %vm2029, %v2511, %v2507
  %v2513 = vlaneseq
  %v2514 = vshrl.u32 %v2513, 7
  %v2515 = vsub.s32 %v2031, %v2514
  %v2516 = vrot.slane %v1761, %v2515
  %v2517 = vsel %vm2036, %v2516, %v2512
  %v2518 = vlaneseq
  %v2519 = vshrl.u32 %v2518, 7
  %v2520 = vsub.s32 %v2038, %v2519
  %v2521 = vrot.slane %v1764, %v2520
  %v2522 = vsel %vm2043, %v2521, %v2517
  %v2523 = vlaneseq
  %v2524 = vshrl.u32 %v2523, 7
  %v2525 = vsub.s32 %v2045, %v2524
  %v2526 = vrot.slane %v1767, %v2525
  %v2527 = vsel %vm2050, %v2526, %v2522
  %v2528 = vlaneseq
  %v2529 = vshrl.u32 %v2528, 7
  %v2530 = vsub.s32 %v2052, %v2529
  %v2531 = vrot.slane %v1770, %v2530
  %v2532 = vsel %vm2057, %v2531, %v2527
  %v2533 = vlaneseq
  %v2534 = vshrl.u32 %v2533, 7
  %v2535 = vsub.s32 %v1949, %v2534
  %v2536 = vrot.slane %v1773, %v2535
  %v2537 = vlaneseq
  %v2538 = vshrl.u32 %v2537, 7
  %v2539 = vsub.s32 %v1954, %v2538
  %v2540 = vrot.slane %v1776, %v2539
  %v2541 = vsel %vm1959, %v2540, %v2536
  %v2542 = vlaneseq
  %v2543 = vshrl.u32 %v2542, 7
  %v2544 = vsub.s32 %v1961, %v2543
  %v2545 = vrot.slane %v1779, %v2544
  %v2546 = vsel %vm1966, %v2545, %v2541
  %v2547 = vlaneseq
  %v2548 = vshrl.u32 %v2547, 7
  %v2549 = vsub.s32 %v1968, %v2548
  %v2550 = vrot.slane %v1782, %v2549
  %v2551 = vsel %vm1973, %v2550, %v2546
  %v2552 = vlaneseq
  %v2553 = vshrl.u32 %v2552, 7
  %v2554 = vsub.s32 %v1975, %v2553
  %v2555 = vrot.slane %v1785, %v2554
  %v2556 = vsel %vm1980, %v2555, %v2551
  %v2557 = vlaneseq
  %v2558 = vshrl.u32 %v2557, 7
  %v2559 = vsub.s32 %v1982, %v2558
  %v2560 = vrot.slane %v1788, %v2559
  %v2561 = vsel %vm1987, %v2560, %v2556
  %v2562 = vlaneseq
  %v2563 = vshrl.u32 %v2562, 7
  %v2564 = vsub.s32 %v1989, %v2563
  %v2565 = vrot.slane %v1791, %v2564
  %v2566 = vsel %vm1994, %v2565, %v2561
  %v2567 = vlaneseq
  %v2568 = vshrl.u32 %v2567, 7
  %v2569 = vsub.s32 %v1996, %v2568
  %v2570 = vrot.slane %v1794, %v2569
  %v2571 = vsel %vm2001, %v2570, %v2566
  %v2572 = vlaneseq
  %v2573 = vshrl.u32 %v2572, 7
  %v2574 = vsub.s32 %v2003, %v2573
  %v2575 = vrot.slane %v1797, %v2574
  %v2576 = vsel %vm2008, %v2575, %v2571
  %v2577 = vlaneseq
  %v2578 = vshrl.u32 %v2577, 7
  %v2579 = vsub.s32 %v2010, %v2578
  %v2580 = vrot.slane %v1800, %v2579
  %v2581 = vsel %vm2015, %v2580, %v2576
  %v2582 = vlaneseq
  %v2583 = vshrl.u32 %v2582, 7
  %v2584 = vsub.s32 %v2017, %v2583
  %v2585 = vrot.slane %v1803, %v2584
  %v2586 = vsel %vm2022, %v2585, %v2581
  %v2587 = vlaneseq
  %v2588 = vshrl.u32 %v2587, 7
  %v2589 = vsub.s32 %v2024, %v2588
  %v2590 = vrot.slane %v1806, %v2589
  %v2591 = vsel %vm2029, %v2590, %v2586
  %v2592 = vlaneseq
  %v2593 = vshrl.u32 %v2592, 7
  %v2594 = vsub.s32 %v2031, %v2593
  %v2595 = vrot.slane %v1809, %v2594
  %v2596 = vsel %vm2036, %v2595, %v2591
  %v2597 = vlaneseq
  %v2598 = vshrl.u32 %v2597, 7
  %v2599 = vsub.s32 %v2038, %v2598
  %v2600 = vrot.slane %v1812, %v2599
  %v2601 = vsel %vm2043, %v2600, %v2596
  %v2602 = vlaneseq
  %v2603 = vshrl.u32 %v2602, 7
  %v2604 = vsub.s32 %v2045, %v2603
  %v2605 = vrot.slane %v1815, %v2604
  %v2606 = vsel %vm2050, %v2605, %v2601
  %v2607 = vlaneseq
  %v2608 = vshrl.u32 %v2607, 7
  %v2609 = vsub.s32 %v2052, %v2608
  %v2610 = vrot.slane %v1818, %v2609
  %v2611 = vsel %vm2057, %v2610, %v2606
  %vm2612 = vcmask 1041409
  %v2613 = vsel %vm2612, %v2137, %v2058
  %vm2614 = vcmask 1042434
  %v2615 = vsel %vm2614, %v2216, %v2613
  %vm2616 = vcmask 1043459
  %v2617 = vsel %vm2616, %v2295, %v2615
  %vm2618 = vcmask 1044484
  %v2619 = vsel %vm2618, %v2374, %v2617
  %vm2620 = vcmask 1045509
  %v2621 = vsel %vm2620, %v2453, %v2619
  %vm2622 = vcmask 1046534
  %v2623 = vsel %vm2622, %v2532, %v2621
  %vm2624 = vcmask 1047559
  %v2625 = vsel %vm2624, %v2611, %v2623
  %v2627 = vsel %vm1819, %v2625, -1e+30
  %2628 = vmax.xlane.f32.xlu0 %v2627
  %v2629 = vpop.xlane.xlu0 %2628
  %v2630 = vsub.f32 %v2627, %v2629
  %v2631 = vmul.f32 %v2630, 1.442695
  %v2632 = vpow.pop %v2631
  %2633 = vadd.xlane.f32.xlu0 %v2632
  %v2634 = vpop.xlane.xlu0 %2633
  %v2635 = vrcp.pop %v2634
  %v2636 = vmul.f32 %v2634, %v2635
  %v2637 = vsub.f32 2.0, %v2636
  %v2638 = vmul.f32 %v2635, %v2637
  %v2639 = vmul.f32 %v2632, %v2638
  %v2640 = vlaneseq
  %v2641 = vshrl.u32 %v2640, 7
  %v2642 = vsub.s32 0, %v2641
  %v2643 = vrot.slane %v2639, %v2642
  %2645 = vbcast.lane.b32.xlu0 %v2643, 256
  %v2646 = vpop.permute.xlu0 %2645
  %s2648 = sor.u32 256, 8
  %2649 = vbcast.lane.b32.xlu0 %v2643, %s2648
  %v2650 = vpop.permute.xlu0 %2649
  %s2652 = sor.u32 256, 16
  %2653 = vbcast.lane.b32.xlu0 %v2643, %s2652
  %v2654 = vpop.permute.xlu0 %2653
  %s2656 = sor.u32 256, 24
  %2657 = vbcast.lane.b32.xlu0 %v2643, %s2656
  %v2658 = vpop.permute.xlu0 %2657
  %s2660 = sor.u32 256, 32
  %2661 = vbcast.lane.b32.xlu0 %v2643, %s2660
  %v2662 = vpop.permute.xlu0 %2661
  %s2664 = sor.u32 256, 40
  %2665 = vbcast.lane.b32.xlu0 %v2643, %s2664
  %v2666 = vpop.permute.xlu0 %2665
  %s2668 = sor.u32 256, 48
  %2669 = vbcast.lane.b32.xlu0 %v2643, %s2668
  %v2670 = vpop.permute.xlu0 %2669
  %s2672 = sor.u32 256, 56
  %2673 = vbcast.lane.b32.xlu0 %v2643, %s2672
  %v2674 = vpop.permute.xlu0 %2673
  %s2676 = sor.u32 256, 64
  %2677 = vbcast.lane.b32.xlu0 %v2643, %s2676
  %v2678 = vpop.permute.xlu0 %2677
  %s2680 = sor.u32 256, 72
  %2681 = vbcast.lane.b32.xlu0 %v2643, %s2680
  %v2682 = vpop.permute.xlu0 %2681
  %s2684 = sor.u32 256, 80
  %2685 = vbcast.lane.b32.xlu0 %v2643, %s2684
  %v2686 = vpop.permute.xlu0 %2685
  %s2688 = sor.u32 256, 88
  %2689 = vbcast.lane.b32.xlu0 %v2643, %s2688
  %v2690 = vpop.permute.xlu0 %2689
  %s2692 = sor.u32 256, 96
  %2693 = vbcast.lane.b32.xlu0 %v2643, %s2692
  %v2694 = vpop.permute.xlu0 %2693
  %s2696 = sor.u32 256, 104
  %2697 = vbcast.lane.b32.xlu0 %v2643, %s2696
  %v2698 = vpop.permute.xlu0 %2697
  %s2700 = sor.u32 256, 112
  %2701 = vbcast.lane.b32.xlu0 %v2643, %s2700
  %v2702 = vpop.permute.xlu0 %2701
  %s2704 = sor.u32 256, 120
  %2705 = vbcast.lane.b32.xlu0 %v2643, %s2704
  %v2706 = vpop.permute.xlu0 %2705
  %v2707 = vlaneseq
  %v2708 = vshrl.u32 %v2707, 7
  %v2709 = vsub.s32 1, %v2708
  %v2710 = vrot.slane %v2639, %v2709
  %2712 = vbcast.lane.b32.xlu0 %v2710, 256
  %v2713 = vpop.permute.xlu0 %2712
  %s2715 = sor.u32 256, 8
  %2716 = vbcast.lane.b32.xlu0 %v2710, %s2715
  %v2717 = vpop.permute.xlu0 %2716
  %s2719 = sor.u32 256, 16
  %2720 = vbcast.lane.b32.xlu0 %v2710, %s2719
  %v2721 = vpop.permute.xlu0 %2720
  %s2723 = sor.u32 256, 24
  %2724 = vbcast.lane.b32.xlu0 %v2710, %s2723
  %v2725 = vpop.permute.xlu0 %2724
  %s2727 = sor.u32 256, 32
  %2728 = vbcast.lane.b32.xlu0 %v2710, %s2727
  %v2729 = vpop.permute.xlu0 %2728
  %s2731 = sor.u32 256, 40
  %2732 = vbcast.lane.b32.xlu0 %v2710, %s2731
  %v2733 = vpop.permute.xlu0 %2732
  %s2735 = sor.u32 256, 48
  %2736 = vbcast.lane.b32.xlu0 %v2710, %s2735
  %v2737 = vpop.permute.xlu0 %2736
  %s2739 = sor.u32 256, 56
  %2740 = vbcast.lane.b32.xlu0 %v2710, %s2739
  %v2741 = vpop.permute.xlu0 %2740
  %s2743 = sor.u32 256, 64
  %2744 = vbcast.lane.b32.xlu0 %v2710, %s2743
  %v2745 = vpop.permute.xlu0 %2744
  %s2747 = sor.u32 256, 72
  %2748 = vbcast.lane.b32.xlu0 %v2710, %s2747
  %v2749 = vpop.permute.xlu0 %2748
  %s2751 = sor.u32 256, 80
  %2752 = vbcast.lane.b32.xlu0 %v2710, %s2751
  %v2753 = vpop.permute.xlu0 %2752
  %s2755 = sor.u32 256, 88
  %2756 = vbcast.lane.b32.xlu0 %v2710, %s2755
  %v2757 = vpop.permute.xlu0 %2756
  %s2759 = sor.u32 256, 96
  %2760 = vbcast.lane.b32.xlu0 %v2710, %s2759
  %v2761 = vpop.permute.xlu0 %2760
  %s2763 = sor.u32 256, 104
  %2764 = vbcast.lane.b32.xlu0 %v2710, %s2763
  %v2765 = vpop.permute.xlu0 %2764
  %s2767 = sor.u32 256, 112
  %2768 = vbcast.lane.b32.xlu0 %v2710, %s2767
  %v2769 = vpop.permute.xlu0 %2768
  %s2771 = sor.u32 256, 120
  %2772 = vbcast.lane.b32.xlu0 %v2710, %s2771
  %v2773 = vpop.permute.xlu0 %2772
  %v2774 = vlaneseq
  %v2775 = vshrl.u32 %v2774, 7
  %v2776 = vsub.s32 2, %v2775
  %v2777 = vrot.slane %v2639, %v2776
  %2779 = vbcast.lane.b32.xlu0 %v2777, 256
  %v2780 = vpop.permute.xlu0 %2779
  %s2782 = sor.u32 256, 8
  %2783 = vbcast.lane.b32.xlu0 %v2777, %s2782
  %v2784 = vpop.permute.xlu0 %2783
  %s2786 = sor.u32 256, 16
  %2787 = vbcast.lane.b32.xlu0 %v2777, %s2786
  %v2788 = vpop.permute.xlu0 %2787
  %s2790 = sor.u32 256, 24
  %2791 = vbcast.lane.b32.xlu0 %v2777, %s2790
  %v2792 = vpop.permute.xlu0 %2791
  %s2794 = sor.u32 256, 32
  %2795 = vbcast.lane.b32.xlu0 %v2777, %s2794
  %v2796 = vpop.permute.xlu0 %2795
  %s2798 = sor.u32 256, 40
  %2799 = vbcast.lane.b32.xlu0 %v2777, %s2798
  %v2800 = vpop.permute.xlu0 %2799
  %s2802 = sor.u32 256, 48
  %2803 = vbcast.lane.b32.xlu0 %v2777, %s2802
  %v2804 = vpop.permute.xlu0 %2803
  %s2806 = sor.u32 256, 56
  %2807 = vbcast.lane.b32.xlu0 %v2777, %s2806
  %v2808 = vpop.permute.xlu0 %2807
  %s2810 = sor.u32 256, 64
  %2811 = vbcast.lane.b32.xlu0 %v2777, %s2810
  %v2812 = vpop.permute.xlu0 %2811
  %s2814 = sor.u32 256, 72
  %2815 = vbcast.lane.b32.xlu0 %v2777, %s2814
  %v2816 = vpop.permute.xlu0 %2815
  %s2818 = sor.u32 256, 80
  %2819 = vbcast.lane.b32.xlu0 %v2777, %s2818
  %v2820 = vpop.permute.xlu0 %2819
  %s2822 = sor.u32 256, 88
  %2823 = vbcast.lane.b32.xlu0 %v2777, %s2822
  %v2824 = vpop.permute.xlu0 %2823
  %s2826 = sor.u32 256, 96
  %2827 = vbcast.lane.b32.xlu0 %v2777, %s2826
  %v2828 = vpop.permute.xlu0 %2827
  %s2830 = sor.u32 256, 104
  %2831 = vbcast.lane.b32.xlu0 %v2777, %s2830
  %v2832 = vpop.permute.xlu0 %2831
  %s2834 = sor.u32 256, 112
  %2835 = vbcast.lane.b32.xlu0 %v2777, %s2834
  %v2836 = vpop.permute.xlu0 %2835
  %s2838 = sor.u32 256, 120
  %2839 = vbcast.lane.b32.xlu0 %v2777, %s2838
  %v2840 = vpop.permute.xlu0 %2839
  %v2841 = vlaneseq
  %v2842 = vshrl.u32 %v2841, 7
  %v2843 = vsub.s32 3, %v2842
  %v2844 = vrot.slane %v2639, %v2843
  %2846 = vbcast.lane.b32.xlu0 %v2844, 256
  %v2847 = vpop.permute.xlu0 %2846
  %s2849 = sor.u32 256, 8
  %2850 = vbcast.lane.b32.xlu0 %v2844, %s2849
  %v2851 = vpop.permute.xlu0 %2850
  %s2853 = sor.u32 256, 16
  %2854 = vbcast.lane.b32.xlu0 %v2844, %s2853
  %v2855 = vpop.permute.xlu0 %2854
  %s2857 = sor.u32 256, 24
  %2858 = vbcast.lane.b32.xlu0 %v2844, %s2857
  %v2859 = vpop.permute.xlu0 %2858
  %s2861 = sor.u32 256, 32
  %2862 = vbcast.lane.b32.xlu0 %v2844, %s2861
  %v2863 = vpop.permute.xlu0 %2862
  %s2865 = sor.u32 256, 40
  %2866 = vbcast.lane.b32.xlu0 %v2844, %s2865
  %v2867 = vpop.permute.xlu0 %2866
  %s2869 = sor.u32 256, 48
  %2870 = vbcast.lane.b32.xlu0 %v2844, %s2869
  %v2871 = vpop.permute.xlu0 %2870
  %s2873 = sor.u32 256, 56
  %2874 = vbcast.lane.b32.xlu0 %v2844, %s2873
  %v2875 = vpop.permute.xlu0 %2874
  %s2877 = sor.u32 256, 64
  %2878 = vbcast.lane.b32.xlu0 %v2844, %s2877
  %v2879 = vpop.permute.xlu0 %2878
  %s2881 = sor.u32 256, 72
  %2882 = vbcast.lane.b32.xlu0 %v2844, %s2881
  %v2883 = vpop.permute.xlu0 %2882
  %s2885 = sor.u32 256, 80
  %2886 = vbcast.lane.b32.xlu0 %v2844, %s2885
  %v2887 = vpop.permute.xlu0 %2886
  %s2889 = sor.u32 256, 88
  %2890 = vbcast.lane.b32.xlu0 %v2844, %s2889
  %v2891 = vpop.permute.xlu0 %2890
  %s2893 = sor.u32 256, 96
  %2894 = vbcast.lane.b32.xlu0 %v2844, %s2893
  %v2895 = vpop.permute.xlu0 %2894
  %s2897 = sor.u32 256, 104
  %2898 = vbcast.lane.b32.xlu0 %v2844, %s2897
  %v2899 = vpop.permute.xlu0 %2898
  %s2901 = sor.u32 256, 112
  %2902 = vbcast.lane.b32.xlu0 %v2844, %s2901
  %v2903 = vpop.permute.xlu0 %2902
  %s2905 = sor.u32 256, 120
  %2906 = vbcast.lane.b32.xlu0 %v2844, %s2905
  %v2907 = vpop.permute.xlu0 %2906
  %v2908 = vlaneseq
  %v2909 = vshrl.u32 %v2908, 7
  %v2910 = vsub.s32 4, %v2909
  %v2911 = vrot.slane %v2639, %v2910
  %2913 = vbcast.lane.b32.xlu0 %v2911, 256
  %v2914 = vpop.permute.xlu0 %2913
  %s2916 = sor.u32 256, 8
  %2917 = vbcast.lane.b32.xlu0 %v2911, %s2916
  %v2918 = vpop.permute.xlu0 %2917
  %s2920 = sor.u32 256, 16
  %2921 = vbcast.lane.b32.xlu0 %v2911, %s2920
  %v2922 = vpop.permute.xlu0 %2921
  %s2924 = sor.u32 256, 24
  %2925 = vbcast.lane.b32.xlu0 %v2911, %s2924
  %v2926 = vpop.permute.xlu0 %2925
  %s2928 = sor.u32 256, 32
  %2929 = vbcast.lane.b32.xlu0 %v2911, %s2928
  %v2930 = vpop.permute.xlu0 %2929
  %s2932 = sor.u32 256, 40
  %2933 = vbcast.lane.b32.xlu0 %v2911, %s2932
  %v2934 = vpop.permute.xlu0 %2933
  %s2936 = sor.u32 256, 48
  %2937 = vbcast.lane.b32.xlu0 %v2911, %s2936
  %v2938 = vpop.permute.xlu0 %2937
  %s2940 = sor.u32 256, 56
  %2941 = vbcast.lane.b32.xlu0 %v2911, %s2940
  %v2942 = vpop.permute.xlu0 %2941
  %s2944 = sor.u32 256, 64
  %2945 = vbcast.lane.b32.xlu0 %v2911, %s2944
  %v2946 = vpop.permute.xlu0 %2945
  %s2948 = sor.u32 256, 72
  %2949 = vbcast.lane.b32.xlu0 %v2911, %s2948
  %v2950 = vpop.permute.xlu0 %2949
  %s2952 = sor.u32 256, 80
  %2953 = vbcast.lane.b32.xlu0 %v2911, %s2952
  %v2954 = vpop.permute.xlu0 %2953
  %s2956 = sor.u32 256, 88
  %2957 = vbcast.lane.b32.xlu0 %v2911, %s2956
  %v2958 = vpop.permute.xlu0 %2957
  %s2960 = sor.u32 256, 96
  %2961 = vbcast.lane.b32.xlu0 %v2911, %s2960
  %v2962 = vpop.permute.xlu0 %2961
  %s2964 = sor.u32 256, 104
  %2965 = vbcast.lane.b32.xlu0 %v2911, %s2964
  %v2966 = vpop.permute.xlu0 %2965
  %s2968 = sor.u32 256, 112
  %2969 = vbcast.lane.b32.xlu0 %v2911, %s2968
  %v2970 = vpop.permute.xlu0 %2969
  %s2972 = sor.u32 256, 120
  %2973 = vbcast.lane.b32.xlu0 %v2911, %s2972
  %v2974 = vpop.permute.xlu0 %2973
  %v2975 = vlaneseq
  %v2976 = vshrl.u32 %v2975, 7
  %v2977 = vsub.s32 5, %v2976
  %v2978 = vrot.slane %v2639, %v2977
  %2980 = vbcast.lane.b32.xlu0 %v2978, 256
  %v2981 = vpop.permute.xlu0 %2980
  %s2983 = sor.u32 256, 8
  %2984 = vbcast.lane.b32.xlu0 %v2978, %s2983
  %v2985 = vpop.permute.xlu0 %2984
  %s2987 = sor.u32 256, 16
  %2988 = vbcast.lane.b32.xlu0 %v2978, %s2987
  %v2989 = vpop.permute.xlu0 %2988
  %s2991 = sor.u32 256, 24
  %2992 = vbcast.lane.b32.xlu0 %v2978, %s2991
  %v2993 = vpop.permute.xlu0 %2992
  %s2995 = sor.u32 256, 32
  %2996 = vbcast.lane.b32.xlu0 %v2978, %s2995
  %v2997 = vpop.permute.xlu0 %2996
  %s2999 = sor.u32 256, 40
  %3000 = vbcast.lane.b32.xlu0 %v2978, %s2999
  %v3001 = vpop.permute.xlu0 %3000
  %s3003 = sor.u32 256, 48
  %3004 = vbcast.lane.b32.xlu0 %v2978, %s3003
  %v3005 = vpop.permute.xlu0 %3004
  %s3007 = sor.u32 256, 56
  %3008 = vbcast.lane.b32.xlu0 %v2978, %s3007
  %v3009 = vpop.permute.xlu0 %3008
  %s3011 = sor.u32 256, 64
  %3012 = vbcast.lane.b32.xlu0 %v2978, %s3011
  %v3013 = vpop.permute.xlu0 %3012
  %s3015 = sor.u32 256, 72
  %3016 = vbcast.lane.b32.xlu0 %v2978, %s3015
  %v3017 = vpop.permute.xlu0 %3016
  %s3019 = sor.u32 256, 80
  %3020 = vbcast.lane.b32.xlu0 %v2978, %s3019
  %v3021 = vpop.permute.xlu0 %3020
  %s3023 = sor.u32 256, 88
  %3024 = vbcast.lane.b32.xlu0 %v2978, %s3023
  %v3025 = vpop.permute.xlu0 %3024
  %s3027 = sor.u32 256, 96
  %3028 = vbcast.lane.b32.xlu0 %v2978, %s3027
  %v3029 = vpop.permute.xlu0 %3028
  %s3031 = sor.u32 256, 104
  %3032 = vbcast.lane.b32.xlu0 %v2978, %s3031
  %v3033 = vpop.permute.xlu0 %3032
  %s3035 = sor.u32 256, 112
  %3036 = vbcast.lane.b32.xlu0 %v2978, %s3035
  %v3037 = vpop.permute.xlu0 %3036
  %s3039 = sor.u32 256, 120
  %3040 = vbcast.lane.b32.xlu0 %v2978, %s3039
  %v3041 = vpop.permute.xlu0 %3040
  %v3042 = vlaneseq
  %v3043 = vshrl.u32 %v3042, 7
  %v3044 = vsub.s32 6, %v3043
  %v3045 = vrot.slane %v2639, %v3044
  %3047 = vbcast.lane.b32.xlu0 %v3045, 256
  %v3048 = vpop.permute.xlu0 %3047
  %s3050 = sor.u32 256, 8
  %3051 = vbcast.lane.b32.xlu0 %v3045, %s3050
  %v3052 = vpop.permute.xlu0 %3051
  %s3054 = sor.u32 256, 16
  %3055 = vbcast.lane.b32.xlu0 %v3045, %s3054
  %v3056 = vpop.permute.xlu0 %3055
  %s3058 = sor.u32 256, 24
  %3059 = vbcast.lane.b32.xlu0 %v3045, %s3058
  %v3060 = vpop.permute.xlu0 %3059
  %s3062 = sor.u32 256, 32
  %3063 = vbcast.lane.b32.xlu0 %v3045, %s3062
  %v3064 = vpop.permute.xlu0 %3063
  %s3066 = sor.u32 256, 40
  %3067 = vbcast.lane.b32.xlu0 %v3045, %s3066
  %v3068 = vpop.permute.xlu0 %3067
  %s3070 = sor.u32 256, 48
  %3071 = vbcast.lane.b32.xlu0 %v3045, %s3070
  %v3072 = vpop.permute.xlu0 %3071
  %s3074 = sor.u32 256, 56
  %3075 = vbcast.lane.b32.xlu0 %v3045, %s3074
  %v3076 = vpop.permute.xlu0 %3075
  %s3078 = sor.u32 256, 64
  %3079 = vbcast.lane.b32.xlu0 %v3045, %s3078
  %v3080 = vpop.permute.xlu0 %3079
  %s3082 = sor.u32 256, 72
  %3083 = vbcast.lane.b32.xlu0 %v3045, %s3082
  %v3084 = vpop.permute.xlu0 %3083
  %s3086 = sor.u32 256, 80
  %3087 = vbcast.lane.b32.xlu0 %v3045, %s3086
  %v3088 = vpop.permute.xlu0 %3087
  %s3090 = sor.u32 256, 88
  %3091 = vbcast.lane.b32.xlu0 %v3045, %s3090
  %v3092 = vpop.permute.xlu0 %3091
  %s3094 = sor.u32 256, 96
  %3095 = vbcast.lane.b32.xlu0 %v3045, %s3094
  %v3096 = vpop.permute.xlu0 %3095
  %s3098 = sor.u32 256, 104
  %3099 = vbcast.lane.b32.xlu0 %v3045, %s3098
  %v3100 = vpop.permute.xlu0 %3099
  %s3102 = sor.u32 256, 112
  %3103 = vbcast.lane.b32.xlu0 %v3045, %s3102
  %v3104 = vpop.permute.xlu0 %3103
  %s3106 = sor.u32 256, 120
  %3107 = vbcast.lane.b32.xlu0 %v3045, %s3106
  %v3108 = vpop.permute.xlu0 %3107
  %v3109 = vlaneseq
  %v3110 = vshrl.u32 %v3109, 7
  %v3111 = vsub.s32 7, %v3110
  %v3112 = vrot.slane %v2639, %v3111
  %3114 = vbcast.lane.b32.xlu0 %v3112, 256
  %v3115 = vpop.permute.xlu0 %3114
  %s3117 = sor.u32 256, 8
  %3118 = vbcast.lane.b32.xlu0 %v3112, %s3117
  %v3119 = vpop.permute.xlu0 %3118
  %s3121 = sor.u32 256, 16
  %3122 = vbcast.lane.b32.xlu0 %v3112, %s3121
  %v3123 = vpop.permute.xlu0 %3122
  %s3125 = sor.u32 256, 24
  %3126 = vbcast.lane.b32.xlu0 %v3112, %s3125
  %v3127 = vpop.permute.xlu0 %3126
  %s3129 = sor.u32 256, 32
  %3130 = vbcast.lane.b32.xlu0 %v3112, %s3129
  %v3131 = vpop.permute.xlu0 %3130
  %s3133 = sor.u32 256, 40
  %3134 = vbcast.lane.b32.xlu0 %v3112, %s3133
  %v3135 = vpop.permute.xlu0 %3134
  %s3137 = sor.u32 256, 48
  %3138 = vbcast.lane.b32.xlu0 %v3112, %s3137
  %v3139 = vpop.permute.xlu0 %3138
  %s3141 = sor.u32 256, 56
  %3142 = vbcast.lane.b32.xlu0 %v3112, %s3141
  %v3143 = vpop.permute.xlu0 %3142
  %s3145 = sor.u32 256, 64
  %3146 = vbcast.lane.b32.xlu0 %v3112, %s3145
  %v3147 = vpop.permute.xlu0 %3146
  %s3149 = sor.u32 256, 72
  %3150 = vbcast.lane.b32.xlu0 %v3112, %s3149
  %v3151 = vpop.permute.xlu0 %3150
  %s3153 = sor.u32 256, 80
  %3154 = vbcast.lane.b32.xlu0 %v3112, %s3153
  %v3155 = vpop.permute.xlu0 %3154
  %s3157 = sor.u32 256, 88
  %3158 = vbcast.lane.b32.xlu0 %v3112, %s3157
  %v3159 = vpop.permute.xlu0 %3158
  %s3161 = sor.u32 256, 96
  %3162 = vbcast.lane.b32.xlu0 %v3112, %s3161
  %v3163 = vpop.permute.xlu0 %3162
  %s3165 = sor.u32 256, 104
  %3166 = vbcast.lane.b32.xlu0 %v3112, %s3165
  %v3167 = vpop.permute.xlu0 %3166
  %s3169 = sor.u32 256, 112
  %3170 = vbcast.lane.b32.xlu0 %v3112, %s3169
  %v3171 = vpop.permute.xlu0 %3170
  %s3173 = sor.u32 256, 120
  %3174 = vbcast.lane.b32.xlu0 %v3112, %s3173
  %v3175 = vpop.permute.xlu0 %3174
  %v3176 = vmul.f32 %v2646, %v26
  %v3177 = vmul.f32 %v2650, %v27
  %v3178 = vmul.f32 %v2654, %v28
  %v3179 = vmul.f32 %v2658, %v29
  %v3180 = vmul.f32 %v2662, %v30
  %v3181 = vmul.f32 %v2666, %v31
  %v3182 = vmul.f32 %v2670, %v32
  %v3183 = vmul.f32 %v2674, %v33
  %v3184 = vmul.f32 %v2678, %v34
  %v3185 = vmul.f32 %v2682, %v35
  %v3186 = vmul.f32 %v2686, %v36
  %v3187 = vmul.f32 %v2690, %v37
  %v3188 = vmul.f32 %v2694, %v38
  %v3189 = vmul.f32 %v2698, %v39
  %v3190 = vmul.f32 %v2702, %v40
  %v3191 = vmul.f32 %v2706, %v41
  %v3192 = vmul.f32 %v2713, %v42
  %v3193 = vmul.f32 %v2717, %v43
  %v3194 = vmul.f32 %v2721, %v44
  %v3195 = vmul.f32 %v2725, %v45
  %v3196 = vmul.f32 %v2729, %v46
  %v3197 = vmul.f32 %v2733, %v47
  %v3198 = vmul.f32 %v2737, %v48
  %v3199 = vmul.f32 %v2741, %v49
  %v3200 = vmul.f32 %v2745, %v50
  %v3201 = vmul.f32 %v2749, %v51
  %v3202 = vmul.f32 %v2753, %v52
  %v3203 = vmul.f32 %v2757, %v53
  %v3204 = vmul.f32 %v2761, %v54
  %v3205 = vmul.f32 %v2765, %v55
  %v3206 = vmul.f32 %v2769, %v56
  %v3207 = vmul.f32 %v2773, %v57
  %v3208 = vmul.f32 %v2780, %v58
  %v3209 = vmul.f32 %v2784, %v59
  %v3210 = vmul.f32 %v2788, %v60
  %v3211 = vmul.f32 %v2792, %v61
  %v3212 = vmul.f32 %v2796, %v62
  %v3213 = vmul.f32 %v2800, %v63
  %v3214 = vmul.f32 %v2804, %v64
  %v3215 = vmul.f32 %v2808, %v65
  %v3216 = vmul.f32 %v2812, %v66
  %v3217 = vmul.f32 %v2816, %v67
  %v3218 = vmul.f32 %v2820, %v68
  %v3219 = vmul.f32 %v2824, %v69
  %v3220 = vmul.f32 %v2828, %v70
  %v3221 = vmul.f32 %v2832, %v71
  %v3222 = vmul.f32 %v2836, %v72
  %v3223 = vmul.f32 %v2840, %v73
  %v3224 = vmul.f32 %v2847, %v74
  %v3225 = vmul.f32 %v2851, %v75
  %v3226 = vmul.f32 %v2855, %v76
  %v3227 = vmul.f32 %v2859, %v77
  %v3228 = vmul.f32 %v2863, %v78
  %v3229 = vmul.f32 %v2867, %v79
  %v3230 = vmul.f32 %v2871, %v80
  %v3231 = vmul.f32 %v2875, %v81
  %v3232 = vmul.f32 %v2879, %v82
  %v3233 = vmul.f32 %v2883, %v83
  %v3234 = vmul.f32 %v2887, %v84
  %v3235 = vmul.f32 %v2891, %v85
  %v3236 = vmul.f32 %v2895, %v86
  %v3237 = vmul.f32 %v2899, %v87
  %v3238 = vmul.f32 %v2903, %v88
  %v3239 = vmul.f32 %v2907, %v89
  %v3240 = vmul.f32 %v2914, %v90
  %v3241 = vmul.f32 %v2918, %v91
  %v3242 = vmul.f32 %v2922, %v92
  %v3243 = vmul.f32 %v2926, %v93
  %v3244 = vmul.f32 %v2930, %v94
  %v3245 = vmul.f32 %v2934, %v95
  %v3246 = vmul.f32 %v2938, %v96
  %v3247 = vmul.f32 %v2942, %v97
  %v3248 = vmul.f32 %v2946, %v98
  %v3249 = vmul.f32 %v2950, %v99
  %v3250 = vmul.f32 %v2954, %v100
  %v3251 = vmul.f32 %v2958, %v101
  %v3252 = vmul.f32 %v2962, %v102
  %v3253 = vmul.f32 %v2966, %v103
  %v3254 = vmul.f32 %v2970, %v104
  %v3255 = vmul.f32 %v2974, %v105
  %v3256 = vmul.f32 %v2981, %v106
  %v3257 = vmul.f32 %v2985, %v107
  %v3258 = vmul.f32 %v2989, %v108
  %v3259 = vmul.f32 %v2993, %v109
  %v3260 = vmul.f32 %v2997, %v110
  %v3261 = vmul.f32 %v3001, %v111
  %v3262 = vmul.f32 %v3005, %v112
  %v3263 = vmul.f32 %v3009, %v113
  %v3264 = vmul.f32 %v3013, %v114
  %v3265 = vmul.f32 %v3017, %v115
  %v3266 = vmul.f32 %v3021, %v116
  %v3267 = vmul.f32 %v3025, %v117
  %v3268 = vmul.f32 %v3029, %v118
  %v3269 = vmul.f32 %v3033, %v119
  %v3270 = vmul.f32 %v3037, %v120
  %v3271 = vmul.f32 %v3041, %v121
  %v3272 = vmul.f32 %v3048, %v122
  %v3273 = vmul.f32 %v3052, %v123
  %v3274 = vmul.f32 %v3056, %v124
  %v3275 = vmul.f32 %v3060, %v125
  %v3276 = vmul.f32 %v3064, %v126
  %v3277 = vmul.f32 %v3068, %v127
  %v3278 = vmul.f32 %v3072, %v128
  %v3279 = vmul.f32 %v3076, %v129
  %v3280 = vmul.f32 %v3080, %v130
  %v3281 = vmul.f32 %v3084, %v131
  %v3282 = vmul.f32 %v3088, %v132
  %v3283 = vmul.f32 %v3092, %v133
  %v3284 = vmul.f32 %v3096, %v134
  %v3285 = vmul.f32 %v3100, %v135
  %v3286 = vmul.f32 %v3104, %v136
  %v3287 = vmul.f32 %v3108, %v137
  %v3288 = vmul.f32 %v3115, %v138
  %v3289 = vmul.f32 %v3119, %v139
  %v3290 = vmul.f32 %v3123, %v140
  %v3291 = vmul.f32 %v3127, %v141
  %v3292 = vmul.f32 %v3131, %v142
  %v3293 = vmul.f32 %v3135, %v143
  %v3294 = vmul.f32 %v3139, %v144
  %v3295 = vmul.f32 %v3143, %v145
  %v3296 = vmul.f32 %v3147, %v146
  %v3297 = vmul.f32 %v3151, %v147
  %v3298 = vmul.f32 %v3155, %v148
  %v3299 = vmul.f32 %v3159, %v149
  %v3300 = vmul.f32 %v3163, %v150
  %v3301 = vmul.f32 %v3167, %v151
  %v3302 = vmul.f32 %v3171, %v152
  %v3303 = vmul.f32 %v3175, %v153
  %v3304 = vadd.f32 %v3176, %v3177
  %v3305 = vadd.f32 %v3304, %v3178
  %v3306 = vadd.f32 %v3305, %v3179
  %v3307 = vadd.f32 %v3306, %v3180
  %v3308 = vadd.f32 %v3307, %v3181
  %v3309 = vadd.f32 %v3308, %v3182
  %v3310 = vadd.f32 %v3309, %v3183
  %v3311 = vadd.f32 %v3310, %v3184
  %v3312 = vadd.f32 %v3311, %v3185
  %v3313 = vadd.f32 %v3312, %v3186
  %v3314 = vadd.f32 %v3313, %v3187
  %v3315 = vadd.f32 %v3314, %v3188
  %v3316 = vadd.f32 %v3315, %v3189
  %v3317 = vadd.f32 %v3316, %v3190
  %v3318 = vadd.f32 %v3317, %v3191
  %v3319 = vrot.slane %v3318, 4
  %v3320 = vadd.f32 %v3318, %v3319
  %v3321 = vrot.slane %v3320, 2
  %v3322 = vadd.f32 %v3320, %v3321
  %v3323 = vrot.slane %v3322, 1
  %v3324 = vadd.f32 %v3322, %v3323
  %v3325 = vadd.f32 %v3192, %v3193
  %v3326 = vadd.f32 %v3325, %v3194
  %v3327 = vadd.f32 %v3326, %v3195
  %v3328 = vadd.f32 %v3327, %v3196
  %v3329 = vadd.f32 %v3328, %v3197
  %v3330 = vadd.f32 %v3329, %v3198
  %v3331 = vadd.f32 %v3330, %v3199
  %v3332 = vadd.f32 %v3331, %v3200
  %v3333 = vadd.f32 %v3332, %v3201
  %v3334 = vadd.f32 %v3333, %v3202
  %v3335 = vadd.f32 %v3334, %v3203
  %v3336 = vadd.f32 %v3335, %v3204
  %v3337 = vadd.f32 %v3336, %v3205
  %v3338 = vadd.f32 %v3337, %v3206
  %v3339 = vadd.f32 %v3338, %v3207
  %v3340 = vrot.slane %v3339, 4
  %v3341 = vadd.f32 %v3339, %v3340
  %v3342 = vrot.slane %v3341, 2
  %v3343 = vadd.f32 %v3341, %v3342
  %v3344 = vrot.slane %v3343, 1
  %v3345 = vadd.f32 %v3343, %v3344
  %v3346 = vadd.f32 %v3208, %v3209
  %v3347 = vadd.f32 %v3346, %v3210
  %v3348 = vadd.f32 %v3347, %v3211
  %v3349 = vadd.f32 %v3348, %v3212
  %v3350 = vadd.f32 %v3349, %v3213
  %v3351 = vadd.f32 %v3350, %v3214
  %v3352 = vadd.f32 %v3351, %v3215
  %v3353 = vadd.f32 %v3352, %v3216
  %v3354 = vadd.f32 %v3353, %v3217
  %v3355 = vadd.f32 %v3354, %v3218
  %v3356 = vadd.f32 %v3355, %v3219
  %v3357 = vadd.f32 %v3356, %v3220
  %v3358 = vadd.f32 %v3357, %v3221
  %v3359 = vadd.f32 %v3358, %v3222
  %v3360 = vadd.f32 %v3359, %v3223
  %v3361 = vrot.slane %v3360, 4
  %v3362 = vadd.f32 %v3360, %v3361
  %v3363 = vrot.slane %v3362, 2
  %v3364 = vadd.f32 %v3362, %v3363
  %v3365 = vrot.slane %v3364, 1
  %v3366 = vadd.f32 %v3364, %v3365
  %v3367 = vadd.f32 %v3224, %v3225
  %v3368 = vadd.f32 %v3367, %v3226
  %v3369 = vadd.f32 %v3368, %v3227
  %v3370 = vadd.f32 %v3369, %v3228
  %v3371 = vadd.f32 %v3370, %v3229
  %v3372 = vadd.f32 %v3371, %v3230
  %v3373 = vadd.f32 %v3372, %v3231
  %v3374 = vadd.f32 %v3373, %v3232
  %v3375 = vadd.f32 %v3374, %v3233
  %v3376 = vadd.f32 %v3375, %v3234
  %v3377 = vadd.f32 %v3376, %v3235
  %v3378 = vadd.f32 %v3377, %v3236
  %v3379 = vadd.f32 %v3378, %v3237
  %v3380 = vadd.f32 %v3379, %v3238
  %v3381 = vadd.f32 %v3380, %v3239
  %v3382 = vrot.slane %v3381, 4
  %v3383 = vadd.f32 %v3381, %v3382
  %v3384 = vrot.slane %v3383, 2
  %v3385 = vadd.f32 %v3383, %v3384
  %v3386 = vrot.slane %v3385, 1
  %v3387 = vadd.f32 %v3385, %v3386
  %v3388 = vadd.f32 %v3240, %v3241
  %v3389 = vadd.f32 %v3388, %v3242
  %v3390 = vadd.f32 %v3389, %v3243
  %v3391 = vadd.f32 %v3390, %v3244
  %v3392 = vadd.f32 %v3391, %v3245
  %v3393 = vadd.f32 %v3392, %v3246
  %v3394 = vadd.f32 %v3393, %v3247
  %v3395 = vadd.f32 %v3394, %v3248
  %v3396 = vadd.f32 %v3395, %v3249
  %v3397 = vadd.f32 %v3396, %v3250
  %v3398 = vadd.f32 %v3397, %v3251
  %v3399 = vadd.f32 %v3398, %v3252
  %v3400 = vadd.f32 %v3399, %v3253
  %v3401 = vadd.f32 %v3400, %v3254
  %v3402 = vadd.f32 %v3401, %v3255
  %v3403 = vrot.slane %v3402, 4
  %v3404 = vadd.f32 %v3402, %v3403
  %v3405 = vrot.slane %v3404, 2
  %v3406 = vadd.f32 %v3404, %v3405
  %v3407 = vrot.slane %v3406, 1
  %v3408 = vadd.f32 %v3406, %v3407
  %v3409 = vadd.f32 %v3256, %v3257
  %v3410 = vadd.f32 %v3409, %v3258
  %v3411 = vadd.f32 %v3410, %v3259
  %v3412 = vadd.f32 %v3411, %v3260
  %v3413 = vadd.f32 %v3412, %v3261
  %v3414 = vadd.f32 %v3413, %v3262
  %v3415 = vadd.f32 %v3414, %v3263
  %v3416 = vadd.f32 %v3415, %v3264
  %v3417 = vadd.f32 %v3416, %v3265
  %v3418 = vadd.f32 %v3417, %v3266
  %v3419 = vadd.f32 %v3418, %v3267
  %v3420 = vadd.f32 %v3419, %v3268
  %v3421 = vadd.f32 %v3420, %v3269
  %v3422 = vadd.f32 %v3421, %v3270
  %v3423 = vadd.f32 %v3422, %v3271
  %v3424 = vrot.slane %v3423, 4
  %v3425 = vadd.f32 %v3423, %v3424
  %v3426 = vrot.slane %v3425, 2
  %v3427 = vadd.f32 %v3425, %v3426
  %v3428 = vrot.slane %v3427, 1
  %v3429 = vadd.f32 %v3427, %v3428
  %v3430 = vadd.f32 %v3272, %v3273
  %v3431 = vadd.f32 %v3430, %v3274
  %v3432 = vadd.f32 %v3431, %v3275
  %v3433 = vadd.f32 %v3432, %v3276
  %v3434 = vadd.f32 %v3433, %v3277
  %v3435 = vadd.f32 %v3434, %v3278
  %v3436 = vadd.f32 %v3435, %v3279
  %v3437 = vadd.f32 %v3436, %v3280
  %v3438 = vadd.f32 %v3437, %v3281
  %v3439 = vadd.f32 %v3438, %v3282
  %v3440 = vadd.f32 %v3439, %v3283
  %v3441 = vadd.f32 %v3440, %v3284
  %v3442 = vadd.f32 %v3441, %v3285
  %v3443 = vadd.f32 %v3442, %v3286
  %v3444 = vadd.f32 %v3443, %v3287
  %v3445 = vrot.slane %v3444, 4
  %v3446 = vadd.f32 %v3444, %v3445
  %v3447 = vrot.slane %v3446, 2
  %v3448 = vadd.f32 %v3446, %v3447
  %v3449 = vrot.slane %v3448, 1
  %v3450 = vadd.f32 %v3448, %v3449
  %v3451 = vadd.f32 %v3288, %v3289
  %v3452 = vadd.f32 %v3451, %v3290
  %v3453 = vadd.f32 %v3452, %v3291
  %v3454 = vadd.f32 %v3453, %v3292
  %v3455 = vadd.f32 %v3454, %v3293
  %v3456 = vadd.f32 %v3455, %v3294
  %v3457 = vadd.f32 %v3456, %v3295
  %v3458 = vadd.f32 %v3457, %v3296
  %v3459 = vadd.f32 %v3458, %v3297
  %v3460 = vadd.f32 %v3459, %v3298
  %v3461 = vadd.f32 %v3460, %v3299
  %v3462 = vadd.f32 %v3461, %v3300
  %v3463 = vadd.f32 %v3462, %v3301
  %v3464 = vadd.f32 %v3463, %v3302
  %v3465 = vadd.f32 %v3464, %v3303
  %v3466 = vrot.slane %v3465, 4
  %v3467 = vadd.f32 %v3465, %v3466
  %v3468 = vrot.slane %v3467, 2
  %v3469 = vadd.f32 %v3467, %v3468
  %v3470 = vrot.slane %v3469, 1
  %v3471 = vadd.f32 %v3469, %v3470
  %v3480 = vsel %vm2612, %v3345, %v3324
  %v3481 = vsel %vm2614, %v3366, %v3480
  %v3482 = vsel %vm2616, %v3387, %v3481
  %v3483 = vsel %vm2618, %v3408, %v3482
  %v3484 = vsel %vm2620, %v3429, %v3483
  %v3485 = vsel %vm2622, %v3450, %v3484
  %v3486 = vsel %vm2624, %v3471, %v3485
  %3488 = vst [vmem:[%s6] sm:$0xff] %v3486
  %3489 = vst [vmem:[%s7] sm:$0xff] %v2639
  // Predicated region
  $region26: #{bahdanau_attention.1} parent=0 // pred_check
    _
  $region27: #{bahdanau_attention.1} parent=0 // pred_check_branch
    %3491 = sbr.rel (0) target = $region29
  $region28: #{bahdanau_attention.1} parent=0 // pred_region
    _
  $region29: #{bahdanau_attention.1} parent=0 // pred_fallthru
    _
  // Predicated region
  $region30: #{bahdanau_attention.1} parent=0 // pred_check
    _
  $region31: #{bahdanau_attention.1} parent=0 // pred_check_branch
    %3493 = sbr.rel (0) target = $region33
  $region32: #{bahdanau_attention.1} parent=0 // pred_region
    _
  $region33: #{bahdanau_attention.1} parent=0 // pred_fallthru
    _
  // Predicated region
  $region34: #{bahdanau_attention.1} parent=0 // pred_check
    _
  $region35: #{bahdanau_attention.1} parent=0 // pred_check_branch
    %3495 = sbr.rel (0) target = $region37
  $region36: #{bahdanau_attention.1} parent=0 // pred_region
    _
  $region37: #{bahdanau_attention.1} parent=0 // pred_fallthru
    _
  // Predicated region
  $region38: #{bahdanau_attention.1} parent=0 // pred_check
    _
  $region39: #{bahdanau_attention.1} parent=0 // pred_check_branch
    %3497 = sbr.rel (0) target = $region41
  $region40: #{bahdanau_attention.1} parent=0 // pred_region
    _
  $region41: #{bahdanau_attention.1} parent=0 // pred_fallthru
    _

</llo_original>
